<compile_context>
chip_gen: v7x
topology: tpu7x:2x2x1
jax: 0.10.0
libtpu: 0.0.40
codegen_flags: <defaults>
</compile_context>

<pallas_src>
import math

import jax
import jax.numpy as jnp
import numpy as np
from jax.experimental import pallas as pl
from jax.experimental.pallas import tpu as pltpu

HIDDEN = 128


def _gated_mlp_kernel(x_ref, w1_ref, b1_ref, w2_ref, b2_ref, w3_ref, pe_ref, o_ref):
    """One tile of (TR, R*P) packed patches -> (TR, R*E) packed embeddings."""
    x = x_ref[...]                                                   # (TR, R*P) bf16
    # Gate branch first: its EUP exp / rcp overlaps the inner branch's MXU matmul.
    g = jnp.dot(x, w1_ref[...], preferred_element_type=jnp.float32) + b1_ref[...]
    # mish(g) = g * tanh(softplus(g)) = g * (1 - 2 / ((1 + e^g)^2 + 1))
    # -> 1 exp + 1 approx reciprocal (both EUP). Overflow-safe: e -> inf gives
    # gate -> g; e -> 0 gives gate -> 0.
    e = jnp.exp(g)
    q = (1.0 + e) * (1.0 + e)
    gate = g * (1.0 - 2.0 * pl.reciprocal(q + 1.0, approx=True))
    inner = jnp.dot(x, w2_ref[...], preferred_element_type=jnp.float32) + b2_ref[...]
    h = (gate * inner).astype(jnp.bfloat16)                          # (TR, R*128)
    out = jnp.dot(h, w3_ref[...], preferred_element_type=jnp.float32)
    o_ref[...] = out + pe_ref[...]                                   # pe has b3 pre-folded


def init_params(key, patch_hw, emb_dim, max_len, n_channel=1, sigma_zero=0.1):
    kH, kW = patch_hw
    P = n_channel * kH * kW
    ks = jax.random.split(key, 10)

    # nn.Linear default init: U(-1/sqrt(fan_in), 1/sqrt(fan_in)).
    b_in = 1.0 / math.sqrt(P)
    w1 = jax.random.uniform(ks[0], (HIDDEN, P), minval=-b_in, maxval=b_in)
    b1 = jax.random.uniform(ks[1], (HIDDEN,), minval=-b_in, maxval=b_in)
    w2 = jax.random.uniform(ks[2], (HIDDEN, P), minval=-b_in, maxval=b_in)
    b2 = jax.random.uniform(ks[3], (HIDDEN,), minval=-b_in, maxval=b_in)
    b_h = 1.0 / math.sqrt(HIDDEN)
    w3 = jax.random.uniform(ks[4], (emb_dim, HIDDEN), minval=-b_h, maxval=b_h)
    b3 = jax.random.uniform(ks[5], (emb_dim,), minval=-b_h, maxval=b_h)

    # NoisyFactorizedLinear: W_eff = W + sigma*(eps_out ⊗ eps_in), b_eff = b + sigma*eps_out,
    # eps = sign(n)*sqrt(|n|), n ~ N(0,1). One deterministic draw stands in for the
    # per-forward sampling (folded into effective weights).
    sigma = sigma_zero / math.sqrt(P)
    f = lambda e: jnp.sign(e) * jnp.sqrt(jnp.abs(e))
    eps_in1 = f(jax.random.normal(ks[6], (1, P)))
    eps_out1 = f(jax.random.normal(ks[7], (HIDDEN, 1)))
    eps_in2 = f(jax.random.normal(ks[8], (1, P)))
    eps_out2 = f(jax.random.normal(ks[9], (HIDDEN, 1)))
    w1_eff = w1 + sigma * (eps_out1 * eps_in1)
    b1_eff = b1 + sigma * eps_out1[:, 0]
    w2_eff = w2 + sigma * (eps_out2 * eps_in2)
    b2_eff = b2 + sigma * eps_out2[:, 0]

    # Standard sinusoidal positional encoding over the patch axis (emb_dim even).
    pos = jnp.arange(max_len, dtype=jnp.float32)[:, None]
    div = jnp.exp(jnp.arange(0, emb_dim, 2, dtype=jnp.float32)
                  * (-math.log(10000.0) / emb_dim))
    pe = jnp.zeros((max_len, emb_dim), jnp.float32)
    pe = pe.at[:, 0::2].set(jnp.sin(pos * div))
    pe = pe.at[:, 1::2].set(jnp.cos(pos * div))
    # TODO(synk): PositionalEncoding's dropout is omitted (eval semantics).

    return {
        "w1": w1_eff.T.astype(jnp.float32),                  # (P, 128)
        "b1": b1_eff.reshape(1, HIDDEN).astype(jnp.float32),
        "w2": w2_eff.T.astype(jnp.float32),                  # (P, 128)
        "b2": b2_eff.reshape(1, HIDDEN).astype(jnp.float32),
        "w3": w3.T.astype(jnp.float32),                      # (128, E)
        "b3": b3.reshape(1, emb_dim).astype(jnp.float32),
        "pe": pe,                                            # (max_len, E)
    }


def _pack_factor(emb_dim):
    """Consecutive patches packed per kernel row so R*emb_dim is a multiple of 128.

    (Optionally R could be doubled on 256-deep-MXU parts (v6e/v7x) to make the x
    tile 128 lanes wide, but that hurts v5e's 128-deep MXU; keep the portable value.)
    """
    return 128 // math.gcd(emb_dim, 128)


def pack_params(params, emb_dim):
    """Block-diagonal (R-way) bf16 weight packing.  Call ONCE, outside the jit."""
    R = _pack_factor(emb_dim)
    eye = jnp.eye(R, dtype=jnp.float32)
    return {
        "w1": jnp.kron(eye, params["w1"]).astype(jnp.bfloat16),   # (R*P, R*128)
        "b1": jnp.tile(params["b1"], (1, R)).astype(jnp.float32),  # (1, R*128)
        "w2": jnp.kron(eye, params["w2"]).astype(jnp.bfloat16),   # (R*P, R*128)
        "b2": jnp.tile(params["b2"], (1, R)).astype(jnp.float32),
        "w3": jnp.kron(eye, params["w3"]).astype(jnp.bfloat16),   # (R*128, R*E)
        # b3 folded into the positional-encoding table: one less input/DMA + add.
        "pe": (params["pe"] + params["b3"]).astype(jnp.float32),  # (max_len, E)
    }


def _unfold_patches(x_nchw, patch_hw):
    """nn.Unfold((kH,kW), stride=(kH,kW)) followed by transpose(-1, 1)."""
    kH, kW = patch_hw
    N, C, H, W = x_nchw.shape
    assert H % kH == 0 and W % kW == 0, "spatial dims must be divisible by the patch size"
    nH, nW = H // kH, W // kW
    x = x_nchw.reshape(N, C, nH, kH, nW, kW)
    x = jnp.transpose(x, (0, 2, 4, 1, 3, 5))                 # (N, nH, nW, C, kH, kW)
    return x.reshape(N, nH * nW, C * kH * kW)                # (N, L, P)


def _choose_row_tile(rows, batch):
    """Largest packed-row tile dividing `rows`, keeping >= 2 total parallel grid
    steps so both v7x TensorCores get work (v5e/v6e are single-TC: harmless)."""
    for t in (512, 256, 128, 64, 32, 16, 8):
        if rows % t == 0 and batch * (rows // t) >= 2:
            return t
    return rows


def make_patches_forward(x_nchw, packed, patch_hw, emb_dim):
    patches = _unfold_patches(x_nchw, patch_hw)              # (N, L, P)
    N, L, P = patches.shape
    pe = packed["pe"]
    assert L <= pe.shape[0], "sequence length exceeds positional-encoding table"

    # Lane-dense packing: R consecutive patches per kernel row (R*E multiple of 128).
    # Zero-pad L to a multiple of R (padded rows sliced off after the call) instead
    # of falling back to lane-sparse masked stores.
    R = _pack_factor(emb_dim)
    Lpad = ((L + R - 1) // R) * R
    if Lpad != L:
        patches = jnp.pad(patches, ((0, 0), (0, Lpad - L), (0, 0)))
    Lp, Pp, Ep, Hp = Lpad // R, R * P, R * emb_dim, R * HIDDEN

    xp = patches.reshape(N, Lp, Pp).astype(jnp.bfloat16)     # (N, Lp, R*P), bf16 operand
    pe_rows = pe[:Lpad] if pe.shape[0] >= Lpad else jnp.pad(
        pe, ((0, Lpad - pe.shape[0]), (0, 0)))
    pe_p = pe_rows.reshape(Lp, Ep)                           # (Lp, R*E) f32, free reshape

    TR = _choose_row_tile(Lp, N)
    grid = (N, Lp // TR)

    M = N * Lpad
    flops = 2 * M * (P * 2 * HIDDEN + HIDDEN * emb_dim)
    transcendentals = 2 * M * HIDDEN
    bytes_accessed = (2 * (xp.size + packed["w1"].size + packed["w2"].size + packed["w3"].size)
                      + 4 * (packed["b1"].size + packed["b2"].size + pe_p.size + N * Lp * Ep))

    # VMEM note: all weight/bias buffers total well under 1 MiB here; if R or TR is
    # scaled up, add pipeline_mode=pl.Buffered(1) on the constant-index specs to
    # stay inside v7x's 64 MiB VMEM.
    out = pl.pallas_call(
        _gated_mlp_kernel,
        out_shape=jax.ShapeDtypeStruct((N, Lp, Ep), jnp.float32),
        grid=grid,
        in_specs=[
            pl.BlockSpec((None, TR, Pp), lambda n, l: (n, l, 0)),   # x tile (bf16)
            pl.BlockSpec((Pp, Hp), lambda n, l: (0, 0)),            # W1 block-diag (bf16)
            pl.BlockSpec((1, Hp), lambda n, l: (0, 0)),             # b1 (f32)
            pl.BlockSpec((Pp, Hp), lambda n, l: (0, 0)),            # W2 block-diag (bf16)
            pl.BlockSpec((1, Hp), lambda n, l: (0, 0)),             # b2 (f32)
            pl.BlockSpec((Hp, Ep), lambda n, l: (0, 0)),            # W3 block-diag (bf16)
            pl.BlockSpec((TR, Ep), lambda n, l: (l, 0)),            # pos. encoding (+b3)
        ],
        out_specs=pl.BlockSpec((None, TR, Ep), lambda n, l: (n, l, 0)),
        compiler_params=pltpu.CompilerParams(
            dimension_semantics=("parallel", "parallel"),
            vmem_limit_bytes=32 * 1024 * 1024),
        cost_estimate=pl.CostEstimate(flops=flops,
                                      transcendentals=transcendentals,
                                      bytes_accessed=bytes_accessed),
    )(xp, packed["w1"], packed["b1"], packed["w2"], packed["b2"], packed["w3"], pe_p)

    # (N, Lp, R*E) is byte-identical row-major to (N, Lpad, E): free reshape.
    out = out.reshape(N, Lpad, emb_dim)
    return out[:, :L] if Lpad != L else out


def make_patches_reference(x_nchw, params, patch_hw, emb_dim):
    """Pure-f32 JAX reference of the module forward (exact mish) for verification."""
    patches = _unfold_patches(x_nchw, patch_hw)
    N, L, P = patches.shape
    x = patches.reshape(N * L, P).astype(jnp.float32)
    g = x @ params["w1"] + params["b1"]
    sp = jnp.maximum(g, 0.0) + jnp.log1p(jnp.exp(-jnp.abs(g)))   # stable softplus
    gate = g * jnp.tanh(sp)                                      # F.mish
    inner = x @ params["w2"] + params["b2"]
    out = (gate * inner) @ params["w3"] + params["b3"]
    return out.reshape(N, L, emb_dim) + params["pe"][:L][None, :, :]


if __name__ == "__main__":
    # Small, module-consistent shapes: batch=2, n_channel=1, 128x128 image,
    # 4x4 patches -> L=1024 patches of P=16 features, emb_dim=32.
    # Packing R=4, TR=256 packed rows -> grid (2, 1) with 128-lane dense tiles.
    N, C, H, W = 2, 1, 128, 128
    patch_hw = (4, 4)
    emb_dim = 32
    L = (H // patch_hw[0]) * (W // patch_hw[1])

    key = jax.random.PRNGKey(0)
    k_x, k_p = jax.random.split(key)
    x = jax.random.normal(k_x, (N, C, H, W), dtype=jnp.float32)
    params = init_params(k_p, patch_hw, emb_dim, max_len=max(L, 64))
    packed = pack_params(params, emb_dim)        # block-diag bf16 packing, done ONCE

    fwd = jax.jit(make_patches_forward, static_argnums=(2, 3))
    out = jax.block_until_ready(fwd(x, params := packed, patch_hw, emb_dim))

    ref = make_patches_reference(x, init_params(k_p, patch_hw, emb_dim, max_len=max(L, 64)),
                                 patch_hw, emb_dim)
    # bf16 MXU operands (f32 accumulation) + approx-EUP reciprocal vs the pure-f32
    # reference: tolerance loosened accordingly.
    np.testing.assert_allclose(np.asarray(out), np.asarray(ref), rtol=5e-2, atol=1e-1)
    assert out.shape == (N, L, emb_dim)
    print("KERNEL_OK")
</pallas_src>

<mosaic_0001>
module attributes {stable_mosaic.version = 11 : i64} {
  func.func @_gated_mlp_kernel(%arg0: i32, %arg1: i32, %arg2: memref<1x256x64xbf16, #tpu.memory_space<vmem>>, %arg3: memref<64x512xbf16, #tpu.memory_space<vmem>>, %arg4: memref<1x512xf32, #tpu.memory_space<vmem>>, %arg5: memref<64x512xbf16, #tpu.memory_space<vmem>>, %arg6: memref<1x512xf32, #tpu.memory_space<vmem>>, %arg7: memref<512x128xbf16, #tpu.memory_space<vmem>>, %arg8: memref<256x128xf32, #tpu.memory_space<vmem>>, %arg9: memref<1x256x128xf32, #tpu.memory_space<vmem>>) attributes {dimension_semantics = [#tpu.dimension_semantics<parallel>, #tpu.dimension_semantics<parallel>], iteration_bounds = array<i64: 2, 1>, scalar_prefetch = 0 : i64, scratch_operands = 0 : i64, tpu.core_type = #tpu.core_type<tc>, window_params = [{transform_indices = @transform_0, window_bounds = array<i64: 1, 256, 64>}, {pipeline_mode = #tpu.pipeline_mode<synchronous>, transform_indices = @transform_1, window_bounds = array<i64: 64, 512>}, {pipeline_mode = #tpu.pipeline_mode<synchronous>, transform_indices = @transform_2, window_bounds = array<i64: 1, 512>}, {pipeline_mode = #tpu.pipeline_mode<synchronous>, transform_indices = @transform_3, window_bounds = array<i64: 64, 512>}, {pipeline_mode = #tpu.pipeline_mode<synchronous>, transform_indices = @transform_4, window_bounds = array<i64: 1, 512>}, {pipeline_mode = #tpu.pipeline_mode<synchronous>, transform_indices = @transform_5, window_bounds = array<i64: 512, 128>}, {transform_indices = @transform_6, window_bounds = array<i64: 256, 128>}, {transform_indices = @transform_7, window_bounds = array<i64: 1, 256, 128>}]} {
    %c0 = arith.constant 0 : index
    %c0_0 = arith.constant 0 : index
    %c0_1 = arith.constant 0 : index
    %0 = vector.load %arg2[%c0, %c0_0, %c0_1] : memref<1x256x64xbf16, #tpu.memory_space<vmem>>, vector<1x256x64xbf16>
    %1 = vector.shape_cast %0 : vector<1x256x64xbf16> to vector<256x64xbf16>
    %c0_2 = arith.constant 0 : index
    %c0_3 = arith.constant 0 : index
    %2 = vector.load %arg3[%c0_2, %c0_3] : memref<64x512xbf16, #tpu.memory_space<vmem>>, vector<64x512xbf16>
    %cst = arith.constant dense<0.000000e+00> : vector<256x512xf32>
    %3 = tpu.matmul %1, %2, %cst {dimension_numbers = #tpu.dot_dimension_numbers<[1], [0], [0], [1], [0, 0, 1, 1], [], []>} : vector<256x64xbf16>, vector<64x512xbf16>, vector<256x512xf32> -> vector<256x512xf32>
    %c0_4 = arith.constant 0 : index
    %c0_5 = arith.constant 0 : index
    %4 = vector.load %arg4[%c0_4, %c0_5] : memref<1x512xf32, #tpu.memory_space<vmem>>, vector<1x512xf32>
    %5 = vector.broadcast %4 : vector<1x512xf32> to vector<256x512xf32>
    %6 = arith.addf %3, %5 : vector<256x512xf32>
    %7 = math.exp %6 : vector<256x512xf32>
    %cst_6 = arith.constant 1.000000e+00 : f32
    %8 = vector.broadcast %cst_6 : f32 to vector<256x512xf32>
    %9 = arith.addf %8, %7 : vector<256x512xf32>
    %cst_7 = arith.constant 1.000000e+00 : f32
    %10 = vector.broadcast %cst_7 : f32 to vector<256x512xf32>
    %11 = arith.addf %10, %7 : vector<256x512xf32>
    %12 = arith.mulf %9, %11 : vector<256x512xf32>
    %cst_8 = arith.constant 1.000000e+00 : f32
    %13 = vector.broadcast %cst_8 : f32 to vector<256x512xf32>
    %14 = arith.addf %12, %13 : vector<256x512xf32>
    %15 = tpu.reciprocal %14 {approx = true} : vector<256x512xf32> -> vector<256x512xf32>
    %cst_9 = arith.constant 2.000000e+00 : f32
    %16 = vector.broadcast %cst_9 : f32 to vector<256x512xf32>
    %17 = arith.mulf %16, %15 : vector<256x512xf32>
    %cst_10 = arith.constant 1.000000e+00 : f32
    %18 = vector.broadcast %cst_10 : f32 to vector<256x512xf32>
    %19 = arith.subf %18, %17 : vector<256x512xf32>
    %20 = arith.mulf %6, %19 : vector<256x512xf32>
    %c0_11 = arith.constant 0 : index
    %c0_12 = arith.constant 0 : index
    %21 = vector.load %arg5[%c0_11, %c0_12] : memref<64x512xbf16, #tpu.memory_space<vmem>>, vector<64x512xbf16>
    %cst_13 = arith.constant dense<0.000000e+00> : vector<256x512xf32>
    %22 = tpu.matmul %1, %21, %cst_13 {dimension_numbers = #tpu.dot_dimension_numbers<[1], [0], [0], [1], [0, 0, 1, 1], [], []>} : vector<256x64xbf16>, vector<64x512xbf16>, vector<256x512xf32> -> vector<256x512xf32>
    %c0_14 = arith.constant 0 : index
    %c0_15 = arith.constant 0 : index
    %23 = vector.load %arg6[%c0_14, %c0_15] : memref<1x512xf32, #tpu.memory_space<vmem>>, vector<1x512xf32>
    %24 = vector.broadcast %23 : vector<1x512xf32> to vector<256x512xf32>
    %25 = arith.addf %22, %24 : vector<256x512xf32>
    %26 = arith.mulf %20, %25 : vector<256x512xf32>
    %27 = arith.truncf %26 : vector<256x512xf32> to vector<256x512xbf16>
    %c0_16 = arith.constant 0 : index
    %c0_17 = arith.constant 0 : index
    %28 = vector.load %arg7[%c0_16, %c0_17] : memref<512x128xbf16, #tpu.memory_space<vmem>>, vector<512x128xbf16>
    %cst_18 = arith.constant dense<0.000000e+00> : vector<256x128xf32>
    %29 = tpu.matmul %27, %28, %cst_18 {dimension_numbers = #tpu.dot_dimension_numbers<[1], [0], [0], [1], [0, 0, 1, 1], [], []>} : vector<256x512xbf16>, vector<512x128xbf16>, vector<256x128xf32> -> vector<256x128xf32>
    %c0_19 = arith.constant 0 : index
    %c0_20 = arith.constant 0 : index
    %30 = vector.load %arg8[%c0_19, %c0_20] : memref<256x128xf32, #tpu.memory_space<vmem>>, vector<256x128xf32>
    %31 = arith.addf %29, %30 : vector<256x128xf32>
    %c0_21 = arith.constant 0 : index
    %c0_22 = arith.constant 0 : index
    %c0_23 = arith.constant 0 : index
    %32 = vector.load %arg9[%c0_21, %c0_22, %c0_23] : memref<1x256x128xf32, #tpu.memory_space<vmem>>, vector<1x256x128xf32>
    %33 = vector.shape_cast %32 : vector<1x256x128xf32> to vector<256x128xf32>
    %34 = vector.shape_cast %31 : vector<256x128xf32> to vector<1x256x128xf32>
    tpu.vector_store %arg9[%c0_21, %c0_22, %c0_23], %34 {strides = array<i32>} : memref<1x256x128xf32, #tpu.memory_space<vmem>>, vector<1x256x128xf32>,
    return
  }
  func.func @transform_0(%arg0: i32, %arg1: i32) -> (i32, i32, i32) {
    %c0_i32 = arith.constant 0 : i32
    %c0_i32_0 = arith.constant 0 : i32
    return %arg0, %arg1, %c0_i32 : i32, i32, i32
  }
  func.func @transform_1(%arg0: i32, %arg1: i32) -> (i32, i32) {
    %c0_i32 = arith.constant 0 : i32
    %c0_i32_0 = arith.constant 0 : i32
    %c0_i32_1 = arith.constant 0 : i32
    return %c0_i32, %c0_i32_0 : i32, i32
  }
  func.func @transform_2(%arg0: i32, %arg1: i32) -> (i32, i32) {
    %c0_i32 = arith.constant 0 : i32
    %c0_i32_0 = arith.constant 0 : i32
    %c0_i32_1 = arith.constant 0 : i32
    return %c0_i32, %c0_i32_0 : i32, i32
  }
  func.func @transform_3(%arg0: i32, %arg1: i32) -> (i32, i32) {
    %c0_i32 = arith.constant 0 : i32
    %c0_i32_0 = arith.constant 0 : i32
    %c0_i32_1 = arith.constant 0 : i32
    return %c0_i32, %c0_i32_0 : i32, i32
  }
  func.func @transform_4(%arg0: i32, %arg1: i32) -> (i32, i32) {
    %c0_i32 = arith.constant 0 : i32
    %c0_i32_0 = arith.constant 0 : i32
    %c0_i32_1 = arith.constant 0 : i32
    return %c0_i32, %c0_i32_0 : i32, i32
  }
  func.func @transform_5(%arg0: i32, %arg1: i32) -> (i32, i32) {
    %c0_i32 = arith.constant 0 : i32
    %c0_i32_0 = arith.constant 0 : i32
    %c0_i32_1 = arith.constant 0 : i32
    return %c0_i32, %c0_i32_0 : i32, i32
  }
  func.func @transform_6(%arg0: i32, %arg1: i32) -> (i32, i32) {
    %c0_i32 = arith.constant 0 : i32
    %c0_i32_0 = arith.constant 0 : i32
    return %arg1, %c0_i32 : i32, i32
  }
  func.func @transform_7(%arg0: i32, %arg1: i32) -> (i32, i32, i32) {
    %c0_i32 = arith.constant 0 : i32
    %c0_i32_0 = arith.constant 0 : i32
    return %arg0, %arg1, %c0_i32 : i32, i32, i32
  }
}

</mosaic_0001>

<llo_original>
// kernel: make_patches_forward.1
$region0: #{make_patches_forward.1}
  #allocation0 [shape = 'u32[]', space=smem, size = 0x4, offset = 0x4, fixed_abs, tag = 'smem constant byte address 0x4 - core index']
  #allocation1 [shape = 'u32[144,128]{1,0:T(1,128)}', space=vmem, size = 0x12000, scoped, tag = 'internal scratch']
  %s0 = inlined_call_operand.vmem [shape: bf16[2,256,64], index: 0, kind: input, shape index: {}]
  %s1 = inlined_call_operand.vmem [shape: bf16[64,512], index: 1, kind: input, shape index: {}]
  %s2 = inlined_call_operand.vmem [shape: f32[1,512], index: 2, kind: input, shape index: {}]
  %s3 = inlined_call_operand.vmem [shape: bf16[64,512], index: 3, kind: input, shape index: {}]
  %s4 = inlined_call_operand.vmem [shape: f32[1,512], index: 4, kind: input, shape index: {}]
  %s5 = inlined_call_operand.vmem [shape: bf16[512,128], index: 5, kind: input, shape index: {}]
  %s6 = inlined_call_operand.vmem [shape: f32[256,128], index: 6, kind: input, shape index: {}]
  %s7 = inlined_call_operand.vmem [shape: f32[2,256,128], index: 7, kind: output, shape index: {}]
  %s8 = sld [smem:[#allocation0]]
  $region61: #{make_patches_forward.1} parent=0
    _
  %s10 = ssub.s32 1, %s8
  %s11 = scalar_select 0, %s10, %s8
  loop: start=0, step=1, limit=4
  $region2: #{make_patches_forward.1} parent=0 // loop_pre_header
    _
  $region3: #{make_patches_forward.1} parent=0 // loop_header
    %s13 = sphi 0, %s17
    %p14 = scmp.ge.s32.totalorder %s13, 4
    %s20 = sphi 0, %s32
    %s21 = sphi 0, %s28
    %s22 = sphi 0, %s20
    %s23 = sphi 0, %s21
    %s24 = sphi 0, %s22
    %s25 = sphi 0, %s23
    %s37 = sphi 0, %s39
    %s40 = sphi 0, %s37
    %s41 = sphi 0, %s40
    %s57 = sphi 0, %s41
    %s61 = sphi 0, %s61
    %s63 = sphi 0, %s61
    %s64 = sphi 0, %s63
    %s78 = sphi 0, %s64
    %s82 = sphi 0, %s82
    %s84 = sphi 0, %s82
    %s85 = sphi 0, %s84
    %s99 = sphi 0, %s85
    %s103 = sphi 0, %s103
    %s105 = sphi 0, %s103
    %s106 = sphi 0, %s105
    %s120 = sphi 0, %s106
    %s124 = sphi 0, %s124
    %s126 = sphi 0, %s124
    %s127 = sphi 0, %s126
    %s141 = sphi 0, %s127
    %s145 = sphi 0, %s145
    %s147 = sphi 0, %s145
    %s148 = sphi 0, %s147
    %s162 = sphi 0, %s148
    %s168 = sphi 0, %s170
    %s171 = sphi 0, %s168
    %s172 = sphi 0, %s171
    %s188 = sphi 0, %s172
    %s196 = sphi 0, %s198
    %s199 = sphi 0, %s196
    %s200 = sphi 0, %s199
    %s216 = sphi 0, %s200
  $region4: #{make_patches_forward.1} parent=0 // loop_header_branch
    %16 = sbr.rel (%p14) target = $region8
  $region5: #{make_patches_forward.1} parent=0 // loop_body
    %s18 = ssub.s32 %s13, 1
    %s19 = ssub.s32 %s13, 2
    %s26 = sadd.s32 1, %s21
    %p27 = scmp.ge.s32.totalorder %s26, 1
    %s28 = scalar_select %p27, 0, %s26
    %s29 = sadd.s32 1, %s20
    %s30 = scalar_select %p27, %s29, %s20
    %p31 = scmp.ge.s32.totalorder %s30, 2
    %s32 = scalar_select %p31, 0, %s30
    %s33 = ssub.s32 %s20, %s32
    %s34 = ssub.s32 %s21, %s28
    %s35 = sor.u32 %s33, %s34
    %p36 = scmp.eq.s32.totalorder %s35, 0
    %s38 = sadd.s32 %s37, 1
    %s39 = scalar_select %p36, %s37, %s38
    %p42 = pneg %p36
    %p43 = scmp.eq.s32.totalorder %s13, 1
    %p44 = por %p42, %p43
    %p45 = scmp.ne.s32.totalorder %s37, %s40
    %p46 = scmp.eq.s32.totalorder %s13, 0
    %p47 = por %p45, %p46
    %p48 = scmp.ne.s32.totalorder %s37, %s40
    %p49 = scmp.eq.s32.totalorder %s18, 1
    %p50 = por %p48, %p49
    %p51 = scmp.ne.s32.totalorder %s40, %s41
    %p52 = scmp.eq.s32.totalorder %s18, 0
    %p53 = por %p51, %p52
    %p54 = scmp.ne.s32.totalorder %s40, %s41
    %p55 = scmp.eq.s32.totalorder %s19, 1
    %p56 = por %p54, %p55
    %p58 = scmp.ne.s32.totalorder %s41, %s57
    %p59 = scmp.eq.s32.totalorder %s19, 0
    %p60 = por %p58, %p59
    %s62 = sadd.s32 %s61, 1
    %p65 = scmp.eq.s32.totalorder %s13, 1
    %p66 = scmp.ne.s32.totalorder %s61, %s63
    %p67 = scmp.eq.s32.totalorder %s13, 0
    %p68 = por %p66, %p67
    %p69 = scmp.ne.s32.totalorder %s61, %s63
    %p70 = scmp.eq.s32.totalorder %s18, 1
    %p71 = por %p69, %p70
    %p72 = scmp.ne.s32.totalorder %s63, %s64
    %p73 = scmp.eq.s32.totalorder %s18, 0
    %p74 = por %p72, %p73
    %p75 = scmp.ne.s32.totalorder %s63, %s64
    %p76 = scmp.eq.s32.totalorder %s19, 1
    %p77 = por %p75, %p76
    %p79 = scmp.ne.s32.totalorder %s64, %s78
    %p80 = scmp.eq.s32.totalorder %s19, 0
    %p81 = por %p79, %p80
    %s83 = sadd.s32 %s82, 1
    %p86 = scmp.eq.s32.totalorder %s13, 1
    %p87 = scmp.ne.s32.totalorder %s82, %s84
    %p88 = scmp.eq.s32.totalorder %s13, 0
    %p89 = por %p87, %p88
    %p90 = scmp.ne.s32.totalorder %s82, %s84
    %p91 = scmp.eq.s32.totalorder %s18, 1
    %p92 = por %p90, %p91
    %p93 = scmp.ne.s32.totalorder %s84, %s85
    %p94 = scmp.eq.s32.totalorder %s18, 0
    %p95 = por %p93, %p94
    %p96 = scmp.ne.s32.totalorder %s84, %s85
    %p97 = scmp.eq.s32.totalorder %s19, 1
    %p98 = por %p96, %p97
    %p100 = scmp.ne.s32.totalorder %s85, %s99
    %p101 = scmp.eq.s32.totalorder %s19, 0
    %p102 = por %p100, %p101
    %s104 = sadd.s32 %s103, 1
    %p107 = scmp.eq.s32.totalorder %s13, 1
    %p108 = scmp.ne.s32.totalorder %s103, %s105
    %p109 = scmp.eq.s32.totalorder %s13, 0
    %p110 = por %p108, %p109
    %p111 = scmp.ne.s32.totalorder %s103, %s105
    %p112 = scmp.eq.s32.totalorder %s18, 1
    %p113 = por %p111, %p112
    %p114 = scmp.ne.s32.totalorder %s105, %s106
    %p115 = scmp.eq.s32.totalorder %s18, 0
    %p116 = por %p114, %p115
    %p117 = scmp.ne.s32.totalorder %s105, %s106
    %p118 = scmp.eq.s32.totalorder %s19, 1
    %p119 = por %p117, %p118
    %p121 = scmp.ne.s32.totalorder %s106, %s120
    %p122 = scmp.eq.s32.totalorder %s19, 0
    %p123 = por %p121, %p122
    %s125 = sadd.s32 %s124, 1
    %p128 = scmp.eq.s32.totalorder %s13, 1
    %p129 = scmp.ne.s32.totalorder %s124, %s126
    %p130 = scmp.eq.s32.totalorder %s13, 0
    %p131 = por %p129, %p130
    %p132 = scmp.ne.s32.totalorder %s124, %s126
    %p133 = scmp.eq.s32.totalorder %s18, 1
    %p134 = por %p132, %p133
    %p135 = scmp.ne.s32.totalorder %s126, %s127
    %p136 = scmp.eq.s32.totalorder %s18, 0
    %p137 = por %p135, %p136
    %p138 = scmp.ne.s32.totalorder %s126, %s127
    %p139 = scmp.eq.s32.totalorder %s19, 1
    %p140 = por %p138, %p139
    %p142 = scmp.ne.s32.totalorder %s127, %s141
    %p143 = scmp.eq.s32.totalorder %s19, 0
    %p144 = por %p142, %p143
    %s146 = sadd.s32 %s145, 1
    %p149 = scmp.eq.s32.totalorder %s13, 1
    %p150 = scmp.ne.s32.totalorder %s145, %s147
    %p151 = scmp.eq.s32.totalorder %s13, 0
    %p152 = por %p150, %p151
    %p153 = scmp.ne.s32.totalorder %s145, %s147
    %p154 = scmp.eq.s32.totalorder %s18, 1
    %p155 = por %p153, %p154
    %p156 = scmp.ne.s32.totalorder %s147, %s148
    %p157 = scmp.eq.s32.totalorder %s18, 0
    %p158 = por %p156, %p157
    %p159 = scmp.ne.s32.totalorder %s147, %s148
    %p160 = scmp.eq.s32.totalorder %s19, 1
    %p161 = por %p159, %p160
    %p163 = scmp.ne.s32.totalorder %s148, %s162
    %p164 = scmp.eq.s32.totalorder %s19, 0
    %p165 = por %p163, %p164
    %s166 = ssub.s32 %s21, %s28
    %p167 = scmp.eq.s32.totalorder %s166, 0
    %s169 = sadd.s32 %s168, 1
    %s170 = scalar_select %p167, %s168, %s169
    %p173 = pneg %p167
    %p174 = scmp.eq.s32.totalorder %s13, 1
    %p175 = por %p173, %p174
    %p176 = scmp.ne.s32.totalorder %s168, %s171
    %p177 = scmp.eq.s32.totalorder %s13, 0
    %p178 = por %p176, %p177
    %p179 = scmp.ne.s32.totalorder %s168, %s171
    %p180 = scmp.eq.s32.totalorder %s18, 1
    %p181 = por %p179, %p180
    %p182 = scmp.ne.s32.totalorder %s171, %s172
    %p183 = scmp.eq.s32.totalorder %s18, 0
    %p184 = por %p182, %p183
    %p185 = scmp.ne.s32.totalorder %s171, %s172
    %p186 = scmp.eq.s32.totalorder %s19, 1
    %p187 = por %p185, %p186
    %p189 = scmp.ne.s32.totalorder %s172, %s188
    %p190 = scmp.eq.s32.totalorder %s19, 0
    %p191 = por %p189, %p190
    %s192 = ssub.s32 %s20, %s32
    %s193 = ssub.s32 %s21, %s28
    %s194 = sor.u32 %s192, %s193
    %p195 = scmp.eq.s32.totalorder %s194, 0
    %s197 = sadd.s32 %s196, 1
    %s198 = scalar_select %p195, %s196, %s197
    %p201 = pneg %p195
    %p202 = scmp.eq.s32.totalorder %s13, 1
    %p203 = por %p201, %p202
    %p204 = scmp.ne.s32.totalorder %s196, %s199
    %p205 = scmp.eq.s32.totalorder %s13, 0
    %p206 = por %p204, %p205
    %p207 = scmp.ne.s32.totalorder %s196, %s199
    %p208 = scmp.eq.s32.totalorder %s18, 1
    %p209 = por %p207, %p208
    %p210 = scmp.ne.s32.totalorder %s199, %s200
    %p211 = scmp.eq.s32.totalorder %s18, 0
    %p212 = por %p210, %p211
    %p213 = scmp.ne.s32.totalorder %s199, %s200
    %p214 = scmp.eq.s32.totalorder %s19, 1
    %p215 = por %p213, %p214
    %p217 = scmp.ne.s32.totalorder %s200, %s216
    %p218 = scmp.eq.s32.totalorder %s19, 0
    %p219 = por %p217, %p218
    %p220 = scmp.le.s32.totalorder 1, %s13
    %p221 = scmp.lt.s32.totalorder %s13, 3
    %p222 = pnand %p220, %p221
    %p223 = pneg %p222
    // Predicated region
    $region9: #{make_patches_forward.1} parent=5 // pred_check
      _
    $region10: #{make_patches_forward.1} parent=5 // pred_check_branch
      %225 = sbr.rel (%p222) target = $region12
    $region11: #{make_patches_forward.1} parent=5 // pred_region
      %s226 = ssub.s32 %s13, 1
      // Predicated region
      $region13: #{make_patches_forward.1} parent=11 // pred_check
        %p227 = pneg %p74
      $region14: #{make_patches_forward.1} parent=11 // pred_check_branch
        %229 = sbr.rel (%p227) target = $region16
      $region15: #{make_patches_forward.1} parent=11 // pred_region
        _
      $region16: #{make_patches_forward.1} parent=11 // pred_fallthru
        _
      // Predicated region
      $region17: #{make_patches_forward.1} parent=11 // pred_check
        %p230 = pneg %p95
      $region18: #{make_patches_forward.1} parent=11 // pred_check_branch
        %232 = sbr.rel (%p230) target = $region20
      $region19: #{make_patches_forward.1} parent=11 // pred_region
        _
      $region20: #{make_patches_forward.1} parent=11 // pred_fallthru
        _
      // Predicated region
      $region21: #{make_patches_forward.1} parent=11 // pred_check
        %p233 = pneg %p116
      $region22: #{make_patches_forward.1} parent=11 // pred_check_branch
        %235 = sbr.rel (%p233) target = $region24
      $region23: #{make_patches_forward.1} parent=11 // pred_region
        _
      $region24: #{make_patches_forward.1} parent=11 // pred_fallthru
        _
      // Predicated region
      $region25: #{make_patches_forward.1} parent=11 // pred_check
        %p236 = pneg %p137
      $region26: #{make_patches_forward.1} parent=11 // pred_check_branch
        %238 = sbr.rel (%p236) target = $region28
      $region27: #{make_patches_forward.1} parent=11 // pred_region
        _
      $region28: #{make_patches_forward.1} parent=11 // pred_fallthru
        _
      // Predicated region
      $region29: #{make_patches_forward.1} parent=11 // pred_check
        %p239 = pneg %p158
      $region30: #{make_patches_forward.1} parent=11 // pred_check_branch
        %241 = sbr.rel (%p239) target = $region32
      $region31: #{make_patches_forward.1} parent=11 // pred_region
        _
      $region32: #{make_patches_forward.1} parent=11 // pred_fallthru
        _
      // Predicated region
      $region33: #{make_patches_forward.1} parent=11 // pred_check
        %p242 = pneg %p184
      $region34: #{make_patches_forward.1} parent=11 // pred_check_branch
        %244 = sbr.rel (%p242) target = $region36
      $region35: #{make_patches_forward.1} parent=11 // pred_region
        %s245 = smul.u32 32, %s23
        %p246 = scmp.lt.s32.totalorder %s245, 31
        %s247 = scalar_select %p246, %s245, 31
        %s248 = smul.addr %s247, 8
        %s249 = scalar_lea.vmem %s6, %s248
        %s250 = smul.u32 32, %s23
      $region36: #{make_patches_forward.1} parent=11 // pred_fallthru
        _
    $region12: #{make_patches_forward.1} parent=5 // pred_fallthru
      _
    %p251 = scmp.lt.s32.totalorder %s13, 2
    // Predicated region
    $region37: #{make_patches_forward.1} parent=5 // pred_check
      %p252 = pneg %p251
    $region38: #{make_patches_forward.1} parent=5 // pred_check_branch
      %254 = sbr.rel (%p252) target = $region40
    $region39: #{make_patches_forward.1} parent=5 // pred_region
      // Predicated region
      $region41: #{make_patches_forward.1} parent=39 // pred_check
        %p255 = pneg %p47
      $region42: #{make_patches_forward.1} parent=39 // pred_check_branch
        %257 = sbr.rel (%p255) target = $region44
      $region43: #{make_patches_forward.1} parent=39 // pred_region
        %s258 = smul.u32 32, %s21
        %p259 = scmp.lt.s32.totalorder %s20, 1
        %s260 = scalar_select %p259, %s20, 1
        %p261 = scmp.lt.s32.totalorder %s258, 31
        %s262 = scalar_select %p261, %s258, 31
        %s263 = smul.addr %s260, 32
        %s264 = sadd.s32 %s262, %s263
        %s265 = smul.addr %s264, 4
        %s266 = scalar_lea.vmem %s0, %s265
        %s267 = smul.u32 32, %s21
      $region44: #{make_patches_forward.1} parent=39 // pred_fallthru
        _
    $region40: #{make_patches_forward.1} parent=5 // pred_fallthru
      _
    %p268 = scmp.le.s32.totalorder 1, %s13
    %p269 = scmp.lt.s32.totalorder %s13, 3
    %p270 = pnand %p268, %p269
    %p271 = pneg %p270
    // Predicated region
    $region45: #{make_patches_forward.1} parent=5 // pred_check
      _
    $region46: #{make_patches_forward.1} parent=5 // pred_check_branch
      %273 = sbr.rel (%p270) target = $region48
    $region47: #{make_patches_forward.1} parent=5 // pred_region
      %s274 = ssub.s32 %s13, 1
      %s275 = smul.u32 32, %s23
      %p276 = scmp.lt.s32.totalorder %s22, 1
      %s277 = scalar_select %p276, %s22, 1
      %p278 = scmp.lt.s32.totalorder %s275, 31
      %s279 = scalar_select %p278, %s275, 31
      %s280 = smul.addr %s277, 32
      %s281 = sadd.s32 %s279, %s280
      %s282 = smul.addr %s281, 4
      %s283 = scalar_lea.vmem %s0, %s282
      %p284 = pneg %p53
      %p285 = pneg %p50
      %p286 = pneg %p74
      %p287 = pneg %p71
      %p288 = pneg %p95
      %p289 = pneg %p92
      %p290 = pneg %p116
      %p291 = pneg %p113
      %p292 = pneg %p137
      %p293 = pneg %p134
      %p294 = pneg %p158
      %p295 = pneg %p155
      %s296 = smul.u32 32, %s23
      %p297 = scmp.lt.s32.totalorder %s296, 31
      %s298 = scalar_select %p297, %s296, 31
      %s299 = smul.addr %s298, 8
      %s300 = scalar_lea.vmem %s6, %s299
      %p301 = pneg %p184
      %p302 = pneg %p181
      %p303 = pneg %p212
      %p304 = pneg %p209
      %s305 = smul.u32 32, %s23
      %p306 = scmp.lt.s32.totalorder %s22, 1
      %s307 = scalar_select %p306, %s22, 1
      %p308 = scmp.lt.s32.totalorder %s305, 31
      %s309 = scalar_select %p308, %s305, 31
      %s310 = smul.addr %s307, 32
      %s311 = sadd.s32 %s309, %s310
      %s312 = smul.addr %s311, 8
      %s313 = scalar_lea.vmem %s7, %s312
      %s314 = smul.u32 32, %s23
      %p315 = scmp.lt.s32.totalorder %s22, 1
      %s316 = scalar_select %p315, %s22, 1
      %p317 = scmp.lt.s32.totalorder %s314, 31
      %s318 = scalar_select %p317, %s314, 31
      %s319 = smul.addr %s316, 32
      %s320 = sadd.s32 %s318, %s319
      %s321 = smul.addr %s320, 4
      %s322 = scalar_lea.vmem %s0, %s321
      %s323 = smul.u32 32, %s23
      %s324 = smul.u32 32, %s23
      %p325 = scmp.lt.s32.totalorder %s324, 31
      %s326 = scalar_select %p325, %s324, 31
      %s327 = smul.addr %s326, 8
      %s328 = scalar_lea.vmem %s6, %s327
      %s329 = smul.u32 32, %s23
      %s330 = smul.u32 32, %s23
      %p331 = scmp.lt.s32.totalorder %s22, 1
      %s332 = scalar_select %p331, %s22, 1
      %p333 = scmp.lt.s32.totalorder %s330, 31
      %s334 = scalar_select %p333, %s330, 31
      %s335 = smul.addr %s332, 32
      %s336 = sadd.s32 %s334, %s335
      %s337 = smul.addr %s336, 8
      %s338 = scalar_lea.vmem %s7, %s337
      %s339 = smul.u32 32, %s23
      %v341 = vld [vmem:[%s322] sm:$0xf]
      %v342 = vld [vmem:[%s322 + $0x4] sm:$0xf]
      %v343 = vld [vmem:[%s322 + $0x8] sm:$0xf]
      %v344 = vld [vmem:[%s322 + $0xc] sm:$0xf]
      %v345 = vld [vmem:[%s322 + $0x10] sm:$0xf]
      %v346 = vld [vmem:[%s322 + $0x14] sm:$0xf]
      %v347 = vld [vmem:[%s322 + $0x18] sm:$0xf]
      %v348 = vld [vmem:[%s322 + $0x1c] sm:$0xf]
      %v349 = vld [vmem:[%s322 + $0x20] sm:$0xf]
      %v350 = vld [vmem:[%s322 + $0x24] sm:$0xf]
      %v351 = vld [vmem:[%s322 + $0x28] sm:$0xf]
      %v352 = vld [vmem:[%s322 + $0x2c] sm:$0xf]
      %v353 = vld [vmem:[%s322 + $0x30] sm:$0xf]
      %v354 = vld [vmem:[%s322 + $0x34] sm:$0xf]
      %v355 = vld [vmem:[%s322 + $0x38] sm:$0xf]
      %v356 = vld [vmem:[%s322 + $0x3c] sm:$0xf]
      %v357 = vld [vmem:[%s322 + $0x40] sm:$0xf]
      %v358 = vld [vmem:[%s322 + $0x44] sm:$0xf]
      %v359 = vld [vmem:[%s322 + $0x48] sm:$0xf]
      %v360 = vld [vmem:[%s322 + $0x4c] sm:$0xf]
      %v361 = vld [vmem:[%s322 + $0x50] sm:$0xf]
      %v362 = vld [vmem:[%s322 + $0x54] sm:$0xf]
      %v363 = vld [vmem:[%s322 + $0x58] sm:$0xf]
      %v364 = vld [vmem:[%s322 + $0x5c] sm:$0xf]
      %v365 = vld [vmem:[%s322 + $0x60] sm:$0xf]
      %v366 = vld [vmem:[%s322 + $0x64] sm:$0xf]
      %v367 = vld [vmem:[%s322 + $0x68] sm:$0xf]
      %v368 = vld [vmem:[%s322 + $0x6c] sm:$0xf]
      %v369 = vld [vmem:[%s322 + $0x70] sm:$0xf]
      %v370 = vld [vmem:[%s322 + $0x74] sm:$0xf]
      %v371 = vld [vmem:[%s322 + $0x78] sm:$0xf]
      %v372 = vld [vmem:[%s322 + $0x7c] sm:$0xf]
      %v373 = vld [vmem:[%s1] sm:$0xff]
      %v374 = vld [vmem:[%s1 + $0x8] sm:$0xff]
      %v375 = vld [vmem:[%s1 + $0x10] sm:$0xff]
      %v376 = vld [vmem:[%s1 + $0x18] sm:$0xff]
      %v377 = vld [vmem:[%s1 + $0x20] sm:$0xff]
      %v378 = vld [vmem:[%s1 + $0x28] sm:$0xff]
      %v379 = vld [vmem:[%s1 + $0x30] sm:$0xff]
      %v380 = vld [vmem:[%s1 + $0x38] sm:$0xff]
      %v381 = vld [vmem:[%s1 + $0x40] sm:$0xff]
      %v382 = vld [vmem:[%s1 + $0x48] sm:$0xff]
      %v383 = vld [vmem:[%s1 + $0x50] sm:$0xff]
      %v384 = vld [vmem:[%s1 + $0x58] sm:$0xff]
      %v385 = vld [vmem:[%s1 + $0x60] sm:$0xff]
      %v386 = vld [vmem:[%s1 + $0x68] sm:$0xff]
      %v387 = vld [vmem:[%s1 + $0x70] sm:$0xff]
      %v388 = vld [vmem:[%s1 + $0x78] sm:$0xff]
      %v389 = vld [vmem:[%s2] sm:$0xf]
      %v391 = vlaneseq
      %v392 = vshrl.u32 %v391, 7
      %v393 = vsub.s32 0, %v392
      %v394 = vrot.slane %v389, %v393
      %v395 = vlaneseq
      %v396 = vshrl.u32 %v395, 7
      %v397 = vsub.s32 1, %v396
      %v398 = vrot.slane %v389, %v397
      %v399 = vlaneseq
      %v400 = vshrl.u32 %v399, 7
      %v401 = vsub.s32 2, %v400
      %v402 = vrot.slane %v389, %v401
      %v403 = vlaneseq
      %v404 = vshrl.u32 %v403, 7
      %v405 = vsub.s32 3, %v404
      %v406 = vrot.slane %v389, %v405
      %v443 = vunpack.c.l.b16 %v341
      %v444 = vunpack.c.l.b16 %v342
      %v445 = vunpack.c.l.b16 %v343
      %v446 = vunpack.c.l.b16 %v344
      %v447 = vunpack.c.l.b16 %v345
      %v448 = vunpack.c.l.b16 %v346
      %v449 = vunpack.c.l.b16 %v347
      %v450 = vunpack.c.l.b16 %v348
      %v451 = vunpack.c.l.b16 %v349
      %v452 = vunpack.c.l.b16 %v350
      %v453 = vunpack.c.l.b16 %v351
      %v454 = vunpack.c.l.b16 %v352
      %v455 = vunpack.c.l.b16 %v353
      %v456 = vunpack.c.l.b16 %v354
      %v457 = vunpack.c.l.b16 %v355
      %v458 = vunpack.c.l.b16 %v356
      %v459 = vunpack.c.l.b16 %v357
      %v460 = vunpack.c.l.b16 %v358
      %v461 = vunpack.c.l.b16 %v359
      %v462 = vunpack.c.l.b16 %v360
      %v463 = vunpack.c.l.b16 %v361
      %v464 = vunpack.c.l.b16 %v362
      %v465 = vunpack.c.l.b16 %v363
      %v466 = vunpack.c.l.b16 %v364
      %v467 = vunpack.c.l.b16 %v365
      %v468 = vunpack.c.l.b16 %v366
      %v469 = vunpack.c.l.b16 %v367
      %v470 = vunpack.c.l.b16 %v368
      %v471 = vunpack.c.l.b16 %v369
      %v472 = vunpack.c.l.b16 %v370
      %v473 = vunpack.c.l.b16 %v371
      %v474 = vunpack.c.l.b16 %v372
      %v475 = vpack.c.b16 %v444, %v443
      %v476 = vpack.c.b16 %v446, %v445
      %v477 = vpack.c.b16 %v448, %v447
      %v478 = vpack.c.b16 %v450, %v449
      %v479 = vpack.c.b16 %v452, %v451
      %v480 = vpack.c.b16 %v454, %v453
      %v481 = vpack.c.b16 %v456, %v455
      %v482 = vpack.c.b16 %v458, %v457
      %v483 = vpack.c.b16 %v460, %v459
      %v484 = vpack.c.b16 %v462, %v461
      %v485 = vpack.c.b16 %v464, %v463
      %v486 = vpack.c.b16 %v466, %v465
      %v487 = vpack.c.b16 %v468, %v467
      %v488 = vpack.c.b16 %v470, %v469
      %v489 = vpack.c.b16 %v472, %v471
      %v490 = vpack.c.b16 %v474, %v473
      %v507 = vunpack.c.l.b16 %v373
      %v508 = vunpack.c.h.b16 %v373
      %v509 = vunpack.c.l.b16 %v374
      %v510 = vunpack.c.h.b16 %v374
      %v511 = vunpack.c.l.b16 %v375
      %v512 = vunpack.c.h.b16 %v375
      %v513 = vunpack.c.l.b16 %v376
      %v514 = vunpack.c.h.b16 %v376
      %v515 = vunpack.c.l.b16 %v377
      %v516 = vunpack.c.h.b16 %v377
      %v517 = vunpack.c.l.b16 %v378
      %v518 = vunpack.c.h.b16 %v378
      %v519 = vunpack.c.l.b16 %v379
      %v520 = vunpack.c.h.b16 %v379
      %v521 = vunpack.c.l.b16 %v380
      %v522 = vunpack.c.h.b16 %v380
      %v523 = vunpack.c.l.b16 %v381
      %v524 = vunpack.c.h.b16 %v381
      %v525 = vunpack.c.l.b16 %v382
      %v526 = vunpack.c.h.b16 %v382
      %v527 = vunpack.c.l.b16 %v383
      %v528 = vunpack.c.h.b16 %v383
      %v529 = vunpack.c.l.b16 %v384
      %v530 = vunpack.c.h.b16 %v384
      %v531 = vunpack.c.l.b16 %v385
      %v532 = vunpack.c.h.b16 %v385
      %v533 = vunpack.c.l.b16 %v386
      %v534 = vunpack.c.h.b16 %v386
      %v535 = vunpack.c.l.b16 %v387
      %v536 = vunpack.c.h.b16 %v387
      %v537 = vunpack.c.l.b16 %v388
      %v538 = vunpack.c.h.b16 %v388
      %v539 = vpack.c.b16 %v511, %v507
      %v540 = vpack.c.b16 %v512, %v508
      %v541 = vpack.c.b16 %v513, %v509
      %v542 = vpack.c.b16 %v514, %v510
      %v543 = vpack.c.b16 %v519, %v515
      %v544 = vpack.c.b16 %v520, %v516
      %v545 = vpack.c.b16 %v521, %v517
      %v546 = vpack.c.b16 %v522, %v518
      %v547 = vpack.c.b16 %v527, %v523
      %v548 = vpack.c.b16 %v528, %v524
      %v549 = vpack.c.b16 %v529, %v525
      %v550 = vpack.c.b16 %v530, %v526
      %v551 = vpack.c.b16 %v535, %v531
      %v552 = vpack.c.b16 %v536, %v532
      %v553 = vpack.c.b16 %v537, %v533
      %v554 = vpack.c.b16 %v538, %v534
      %vm571 = vcmask 523264
      %v573 = vsel %vm571, %v475, 0
      %v576 = vsel %vm571, %v476, 0
      %v579 = vsel %vm571, %v477, 0
      %v582 = vsel %vm571, %v478, 0
      %v585 = vsel %vm571, %v479, 0
      %v588 = vsel %vm571, %v480, 0
      %v591 = vsel %vm571, %v481, 0
      %v594 = vsel %vm571, %v482, 0
      %v597 = vsel %vm571, %v483, 0
      %v600 = vsel %vm571, %v484, 0
      %v603 = vsel %vm571, %v485, 0
      %v606 = vsel %vm571, %v486, 0
      %v609 = vsel %vm571, %v487, 0
      %v612 = vsel %vm571, %v488, 0
      %v615 = vsel %vm571, %v489, 0
      %v618 = vsel %vm571, %v490, 0
      %620 = vmatprep.subr.bf16.mxu0 %v540
      %621 = vmatpush1.bf16.msra.mxu0 %v539
      %622 = vmatprep.subr.bf16.mxu0 %v544
      %623 = vmatpush1.bf16.msra.mxu0 %v543
      %624 = vmatprep.subr.bf16.mxu0 %v548
      %625 = vmatpush1.bf16.msra.mxu0 %v547
      %626 = vmatprep.subr.bf16.mxu0 %v552
      %627 = vmatpush1.bf16.msra.mxu0 %v551
      %628 = vmatprep.subr.bf16.mxu0 0
      %629 = vmatpush1.bf16.msra.mxu0 0
      %630 = vmatprep.subr.bf16.mxu0 0
      %631 = vmatpush1.bf16.msra.mxu0 0
      %632 = vmatprep.subr.bf16.mxu0 0
      %633 = vmatpush1.bf16.msra.mxu0 0
      %634 = vmatprep.subr.bf16.mxu0 0
      %635 = vmatpush1.bf16.msra.mxu0 0
      %636 = vmatprep.subr.bf16.mxu0 0
      %637 = vmatpush1.bf16.msra.mxu0 0
      %638 = vmatprep.subr.bf16.mxu0 0
      %639 = vmatpush1.bf16.msra.mxu0 0
      %640 = vmatprep.subr.bf16.mxu0 0
      %641 = vmatpush1.bf16.msra.mxu0 0
      %642 = vmatprep.subr.bf16.mxu0 0
      %643 = vmatpush1.bf16.msra.mxu0 0
      %644 = vmatprep.subr.bf16.mxu0 0
      %645 = vmatpush1.bf16.msra.mxu0 0
      %646 = vmatprep.subr.bf16.mxu0 0
      %647 = vmatpush1.bf16.msra.mxu0 0
      %648 = vmatprep.subr.bf16.mxu0 0
      %649 = vmatpush1.bf16.msra.mxu0 0
      %650 = vmatprep.subr.bf16.mxu0 0
      %651 = vmatpush1.bf16.msra.mxu0 0
      %652 = vmatprep.mubr.bf16.mxu0 0
      %653 = vmatmul.mubr.bf16.gmra.mrb[0].mxu0 %v573
      %v654 = vpop.f32.mrb[0].mxu0
      %v655 = vadd.f32 %v394, %v654
      %v656 = vpop.f32.mrb[0].mxu0
      %v657 = vadd.f32 %v398, %v656
      %v658 = vpop.f32.mrb[0].mxu0
      %v659 = vadd.f32 %v394, %v658
      %v660 = vpop.f32.mrb[0].mxu0
      %v661 = vadd.f32 %v398, %v660
      %662 = vmatprep.mubr.bf16.mxu0 0
      %663 = vmatmul.mubr.bf16.gmra.mrb[0].mxu0 %v576
      %v664 = vpop.f32.mrb[0].mxu0
      %v665 = vadd.f32 %v394, %v664
      %v666 = vpop.f32.mrb[0].mxu0
      %v667 = vadd.f32 %v398, %v666
      %v668 = vpop.f32.mrb[0].mxu0
      %v669 = vadd.f32 %v394, %v668
      %v670 = vpop.f32.mrb[0].mxu0
      %v671 = vadd.f32 %v398, %v670
      %672 = vmatprep.mubr.bf16.mxu0 0
      %673 = vmatmul.mubr.bf16.gmra.mrb[0].mxu0 %v579
      %v674 = vpop.f32.mrb[0].mxu0
      %v675 = vadd.f32 %v394, %v674
      %v676 = vpop.f32.mrb[0].mxu0
      %v677 = vadd.f32 %v398, %v676
      %v678 = vpop.f32.mrb[0].mxu0
      %v679 = vadd.f32 %v394, %v678
      %v680 = vpop.f32.mrb[0].mxu0
      %v681 = vadd.f32 %v398, %v680
      %682 = vmatprep.mubr.bf16.mxu0 0
      %683 = vmatmul.mubr.bf16.gmra.mrb[0].mxu0 %v582
      %v684 = vpop.f32.mrb[0].mxu0
      %v685 = vadd.f32 %v394, %v684
      %v686 = vpop.f32.mrb[0].mxu0
      %v687 = vadd.f32 %v398, %v686
      %v688 = vpop.f32.mrb[0].mxu0
      %v689 = vadd.f32 %v394, %v688
      %v690 = vpop.f32.mrb[0].mxu0
      %v691 = vadd.f32 %v398, %v690
      %692 = vmatprep.mubr.bf16.mxu0 0
      %693 = vmatmul.mubr.bf16.gmra.mrb[0].mxu0 %v585
      %v694 = vpop.f32.mrb[0].mxu0
      %v695 = vadd.f32 %v394, %v694
      %v696 = vpop.f32.mrb[0].mxu0
      %v697 = vadd.f32 %v398, %v696
      %v698 = vpop.f32.mrb[0].mxu0
      %v699 = vadd.f32 %v394, %v698
      %v700 = vpop.f32.mrb[0].mxu0
      %v701 = vadd.f32 %v398, %v700
      %702 = vmatprep.mubr.bf16.mxu0 0
      %703 = vmatmul.mubr.bf16.gmra.mrb[0].mxu0 %v588
      %v704 = vpop.f32.mrb[0].mxu0
      %v705 = vadd.f32 %v394, %v704
      %v706 = vpop.f32.mrb[0].mxu0
      %v707 = vadd.f32 %v398, %v706
      %v708 = vpop.f32.mrb[0].mxu0
      %v709 = vadd.f32 %v394, %v708
      %v710 = vpop.f32.mrb[0].mxu0
      %v711 = vadd.f32 %v398, %v710
      %712 = vmatprep.mubr.bf16.mxu0 0
      %713 = vmatmul.mubr.bf16.gmra.mrb[0].mxu0 %v591
      %v714 = vpop.f32.mrb[0].mxu0
      %v715 = vadd.f32 %v394, %v714
      %v716 = vpop.f32.mrb[0].mxu0
      %v717 = vadd.f32 %v398, %v716
      %v718 = vpop.f32.mrb[0].mxu0
      %v719 = vadd.f32 %v394, %v718
      %v720 = vpop.f32.mrb[0].mxu0
      %v721 = vadd.f32 %v398, %v720
      %722 = vmatprep.mubr.bf16.mxu0 0
      %723 = vmatmul.mubr.bf16.gmra.mrb[0].mxu0 %v594
      %v724 = vpop.f32.mrb[0].mxu0
      %v725 = vadd.f32 %v394, %v724
      %v726 = vpop.f32.mrb[0].mxu0
      %v727 = vadd.f32 %v398, %v726
      %v728 = vpop.f32.mrb[0].mxu0
      %v729 = vadd.f32 %v394, %v728
      %v730 = vpop.f32.mrb[0].mxu0
      %v731 = vadd.f32 %v398, %v730
      %732 = vmatprep.mubr.bf16.mxu0 0
      %733 = vmatmul.mubr.bf16.gmra.mrb[0].mxu0 %v597
      %v734 = vpop.f32.mrb[0].mxu0
      %v735 = vadd.f32 %v394, %v734
      %v736 = vpop.f32.mrb[0].mxu0
      %v737 = vadd.f32 %v398, %v736
      %v738 = vpop.f32.mrb[0].mxu0
      %v739 = vadd.f32 %v394, %v738
      %v740 = vpop.f32.mrb[0].mxu0
      %v741 = vadd.f32 %v398, %v740
      %742 = vmatprep.mubr.bf16.mxu0 0
      %743 = vmatmul.mubr.bf16.gmra.mrb[0].mxu0 %v600
      %v744 = vpop.f32.mrb[0].mxu0
      %v745 = vadd.f32 %v394, %v744
      %v746 = vpop.f32.mrb[0].mxu0
      %v747 = vadd.f32 %v398, %v746
      %v748 = vpop.f32.mrb[0].mxu0
      %v749 = vadd.f32 %v394, %v748
      %v750 = vpop.f32.mrb[0].mxu0
      %v751 = vadd.f32 %v398, %v750
      %752 = vmatprep.mubr.bf16.mxu0 0
      %753 = vmatmul.mubr.bf16.gmra.mrb[0].mxu0 %v603
      %v754 = vpop.f32.mrb[0].mxu0
      %v755 = vadd.f32 %v394, %v754
      %v756 = vpop.f32.mrb[0].mxu0
      %v757 = vadd.f32 %v398, %v756
      %v758 = vpop.f32.mrb[0].mxu0
      %v759 = vadd.f32 %v394, %v758
      %v760 = vpop.f32.mrb[0].mxu0
      %v761 = vadd.f32 %v398, %v760
      %762 = vmatprep.mubr.bf16.mxu0 0
      %763 = vmatmul.mubr.bf16.gmra.mrb[0].mxu0 %v606
      %v764 = vpop.f32.mrb[0].mxu0
      %v765 = vadd.f32 %v394, %v764
      %v766 = vpop.f32.mrb[0].mxu0
      %v767 = vadd.f32 %v398, %v766
      %v768 = vpop.f32.mrb[0].mxu0
      %v769 = vadd.f32 %v394, %v768
      %v770 = vpop.f32.mrb[0].mxu0
      %v771 = vadd.f32 %v398, %v770
      %772 = vmatprep.mubr.bf16.mxu0 0
      %773 = vmatmul.mubr.bf16.gmra.mrb[0].mxu0 %v609
      %v774 = vpop.f32.mrb[0].mxu0
      %v775 = vadd.f32 %v394, %v774
      %v776 = vpop.f32.mrb[0].mxu0
      %v777 = vadd.f32 %v398, %v776
      %v778 = vpop.f32.mrb[0].mxu0
      %v779 = vadd.f32 %v394, %v778
      %v780 = vpop.f32.mrb[0].mxu0
      %v781 = vadd.f32 %v398, %v780
      %782 = vmatprep.mubr.bf16.mxu0 0
      %783 = vmatmul.mubr.bf16.gmra.mrb[0].mxu0 %v612
      %v784 = vpop.f32.mrb[0].mxu0
      %v785 = vadd.f32 %v394, %v784
      %v786 = vpop.f32.mrb[0].mxu0
      %v787 = vadd.f32 %v398, %v786
      %v788 = vpop.f32.mrb[0].mxu0
      %v789 = vadd.f32 %v394, %v788
      %v790 = vpop.f32.mrb[0].mxu0
      %v791 = vadd.f32 %v398, %v790
      %792 = vmatprep.mubr.bf16.mxu0 0
      %793 = vmatmul.mubr.bf16.gmra.mrb[0].mxu0 %v615
      %v794 = vpop.f32.mrb[0].mxu0
      %v795 = vadd.f32 %v394, %v794
      %v796 = vpop.f32.mrb[0].mxu0
      %v797 = vadd.f32 %v398, %v796
      %v798 = vpop.f32.mrb[0].mxu0
      %v799 = vadd.f32 %v394, %v798
      %v800 = vpop.f32.mrb[0].mxu0
      %v801 = vadd.f32 %v398, %v800
      %802 = vmatprep.mubr.bf16.mxu0 0
      %803 = vmatmul.mubr.bf16.gmra.mrb[0].mxu0 %v618
      %v804 = vpop.f32.mrb[0].mxu0
      %v805 = vadd.f32 %v394, %v804
      %v806 = vpop.f32.mrb[0].mxu0
      %v807 = vadd.f32 %v398, %v806
      %v808 = vpop.f32.mrb[0].mxu0
      %v809 = vadd.f32 %v394, %v808
      %v810 = vpop.f32.mrb[0].mxu0
      %v811 = vadd.f32 %v398, %v810
      %812 = vdwg.mxu0
      %813 = vmatprep.subr.bf16.mxu0 %v542
      %814 = vmatpush1.bf16.msra.mxu0 %v541
      %815 = vmatprep.subr.bf16.mxu0 %v546
      %816 = vmatpush1.bf16.msra.mxu0 %v545
      %817 = vmatprep.subr.bf16.mxu0 %v550
      %818 = vmatpush1.bf16.msra.mxu0 %v549
      %819 = vmatprep.subr.bf16.mxu0 %v554
      %820 = vmatpush1.bf16.msra.mxu0 %v553
      %821 = vmatprep.subr.bf16.mxu0 0
      %822 = vmatpush1.bf16.msra.mxu0 0
      %823 = vmatprep.subr.bf16.mxu0 0
      %824 = vmatpush1.bf16.msra.mxu0 0
      %825 = vmatprep.subr.bf16.mxu0 0
      %826 = vmatpush1.bf16.msra.mxu0 0
      %827 = vmatprep.subr.bf16.mxu0 0
      %828 = vmatpush1.bf16.msra.mxu0 0
      %829 = vmatprep.subr.bf16.mxu0 0
      %830 = vmatpush1.bf16.msra.mxu0 0
      %831 = vmatprep.subr.bf16.mxu0 0
      %832 = vmatpush1.bf16.msra.mxu0 0
      %833 = vmatprep.subr.bf16.mxu0 0
      %834 = vmatpush1.bf16.msra.mxu0 0
      %835 = vmatprep.subr.bf16.mxu0 0
      %836 = vmatpush1.bf16.msra.mxu0 0
      %837 = vmatprep.subr.bf16.mxu0 0
      %838 = vmatpush1.bf16.msra.mxu0 0
      %839 = vmatprep.subr.bf16.mxu0 0
      %840 = vmatpush1.bf16.msra.mxu0 0
      %841 = vmatprep.subr.bf16.mxu0 0
      %842 = vmatpush1.bf16.msra.mxu0 0
      %843 = vmatprep.subr.bf16.mxu0 0
      %844 = vmatpush1.bf16.msra.mxu0 0
      %845 = vmatprep.mubr.bf16.mxu0 0
      %846 = vmatmul.mubr.bf16.gmra.mrb[0].mxu0 %v573
      %v847 = vpop.f32.mrb[0].mxu0
      %v848 = vadd.f32 %v402, %v847
      %v849 = vpop.f32.mrb[0].mxu0
      %v850 = vadd.f32 %v406, %v849
      %v851 = vpop.f32.mrb[0].mxu0
      %v852 = vadd.f32 %v402, %v851
      %v853 = vpop.f32.mrb[0].mxu0
      %v854 = vadd.f32 %v406, %v853
      %855 = vmatprep.mubr.bf16.mxu0 0
      %856 = vmatmul.mubr.bf16.gmra.mrb[0].mxu0 %v576
      %v857 = vpop.f32.mrb[0].mxu0
      %v858 = vadd.f32 %v402, %v857
      %v859 = vpop.f32.mrb[0].mxu0
      %v860 = vadd.f32 %v406, %v859
      %v861 = vpop.f32.mrb[0].mxu0
      %v862 = vadd.f32 %v402, %v861
      %v863 = vpop.f32.mrb[0].mxu0
      %v864 = vadd.f32 %v406, %v863
      %865 = vmatprep.mubr.bf16.mxu0 0
      %866 = vmatmul.mubr.bf16.gmra.mrb[0].mxu0 %v579
      %v867 = vpop.f32.mrb[0].mxu0
      %v868 = vadd.f32 %v402, %v867
      %v869 = vpop.f32.mrb[0].mxu0
      %v870 = vadd.f32 %v406, %v869
      %v871 = vpop.f32.mrb[0].mxu0
      %v872 = vadd.f32 %v402, %v871
      %v873 = vpop.f32.mrb[0].mxu0
      %v874 = vadd.f32 %v406, %v873
      %875 = vmatprep.mubr.bf16.mxu0 0
      %876 = vmatmul.mubr.bf16.gmra.mrb[0].mxu0 %v582
      %v877 = vpop.f32.mrb[0].mxu0
      %v878 = vadd.f32 %v402, %v877
      %v879 = vpop.f32.mrb[0].mxu0
      %v880 = vadd.f32 %v406, %v879
      %v881 = vpop.f32.mrb[0].mxu0
      %v882 = vadd.f32 %v402, %v881
      %v883 = vpop.f32.mrb[0].mxu0
      %v884 = vadd.f32 %v406, %v883
      %885 = vmatprep.mubr.bf16.mxu0 0
      %886 = vmatmul.mubr.bf16.gmra.mrb[0].mxu0 %v585
      %v887 = vpop.f32.mrb[0].mxu0
      %v888 = vadd.f32 %v402, %v887
      %v889 = vpop.f32.mrb[0].mxu0
      %v890 = vadd.f32 %v406, %v889
      %v891 = vpop.f32.mrb[0].mxu0
      %v892 = vadd.f32 %v402, %v891
      %v893 = vpop.f32.mrb[0].mxu0
      %v894 = vadd.f32 %v406, %v893
      %895 = vmatprep.mubr.bf16.mxu0 0
      %896 = vmatmul.mubr.bf16.gmra.mrb[0].mxu0 %v588
      %v897 = vpop.f32.mrb[0].mxu0
      %v898 = vadd.f32 %v402, %v897
      %v899 = vpop.f32.mrb[0].mxu0
      %v900 = vadd.f32 %v406, %v899
      %v901 = vpop.f32.mrb[0].mxu0
      %v902 = vadd.f32 %v402, %v901
      %v903 = vpop.f32.mrb[0].mxu0
      %v904 = vadd.f32 %v406, %v903
      %905 = vmatprep.mubr.bf16.mxu0 0
      %906 = vmatmul.mubr.bf16.gmra.mrb[0].mxu0 %v591
      %v907 = vpop.f32.mrb[0].mxu0
      %v908 = vadd.f32 %v402, %v907
      %v909 = vpop.f32.mrb[0].mxu0
      %v910 = vadd.f32 %v406, %v909
      %v911 = vpop.f32.mrb[0].mxu0
      %v912 = vadd.f32 %v402, %v911
      %v913 = vpop.f32.mrb[0].mxu0
      %v914 = vadd.f32 %v406, %v913
      %915 = vmatprep.mubr.bf16.mxu0 0
      %916 = vmatmul.mubr.bf16.gmra.mrb[0].mxu0 %v594
      %v917 = vpop.f32.mrb[0].mxu0
      %v918 = vadd.f32 %v402, %v917
      %v919 = vpop.f32.mrb[0].mxu0
      %v920 = vadd.f32 %v406, %v919
      %v921 = vpop.f32.mrb[0].mxu0
      %v922 = vadd.f32 %v402, %v921
      %v923 = vpop.f32.mrb[0].mxu0
      %v924 = vadd.f32 %v406, %v923
      %925 = vmatprep.mubr.bf16.mxu0 0
      %926 = vmatmul.mubr.bf16.gmra.mrb[0].mxu0 %v597
      %v927 = vpop.f32.mrb[0].mxu0
      %v928 = vadd.f32 %v402, %v927
      %v929 = vpop.f32.mrb[0].mxu0
      %v930 = vadd.f32 %v406, %v929
      %v931 = vpop.f32.mrb[0].mxu0
      %v932 = vadd.f32 %v402, %v931
      %v933 = vpop.f32.mrb[0].mxu0
      %v934 = vadd.f32 %v406, %v933
      %935 = vmatprep.mubr.bf16.mxu0 0
      %936 = vmatmul.mubr.bf16.gmra.mrb[0].mxu0 %v600
      %v937 = vpop.f32.mrb[0].mxu0
      %v938 = vadd.f32 %v402, %v937
      %v939 = vpop.f32.mrb[0].mxu0
      %v940 = vadd.f32 %v406, %v939
      %v941 = vpop.f32.mrb[0].mxu0
      %v942 = vadd.f32 %v402, %v941
      %v943 = vpop.f32.mrb[0].mxu0
      %v944 = vadd.f32 %v406, %v943
      %945 = vmatprep.mubr.bf16.mxu0 0
      %946 = vmatmul.mubr.bf16.gmra.mrb[0].mxu0 %v603
      %v947 = vpop.f32.mrb[0].mxu0
      %v948 = vadd.f32 %v402, %v947
      %v949 = vpop.f32.mrb[0].mxu0
      %v950 = vadd.f32 %v406, %v949
      %v951 = vpop.f32.mrb[0].mxu0
      %v952 = vadd.f32 %v402, %v951
      %v953 = vpop.f32.mrb[0].mxu0
      %v954 = vadd.f32 %v406, %v953
      %955 = vmatprep.mubr.bf16.mxu0 0
      %956 = vmatmul.mubr.bf16.gmra.mrb[0].mxu0 %v606
      %v957 = vpop.f32.mrb[0].mxu0
      %v958 = vadd.f32 %v402, %v957
      %v959 = vpop.f32.mrb[0].mxu0
      %v960 = vadd.f32 %v406, %v959
      %v961 = vpop.f32.mrb[0].mxu0
      %v962 = vadd.f32 %v402, %v961
      %v963 = vpop.f32.mrb[0].mxu0
      %v964 = vadd.f32 %v406, %v963
      %965 = vmatprep.mubr.bf16.mxu0 0
      %966 = vmatmul.mubr.bf16.gmra.mrb[0].mxu0 %v609
      %v967 = vpop.f32.mrb[0].mxu0
      %v968 = vadd.f32 %v402, %v967
      %v969 = vpop.f32.mrb[0].mxu0
      %v970 = vadd.f32 %v406, %v969
      %v971 = vpop.f32.mrb[0].mxu0
      %v972 = vadd.f32 %v402, %v971
      %v973 = vpop.f32.mrb[0].mxu0
      %v974 = vadd.f32 %v406, %v973
      %975 = vmatprep.mubr.bf16.mxu0 0
      %976 = vmatmul.mubr.bf16.gmra.mrb[0].mxu0 %v612
      %v977 = vpop.f32.mrb[0].mxu0
      %v978 = vadd.f32 %v402, %v977
      %v979 = vpop.f32.mrb[0].mxu0
      %v980 = vadd.f32 %v406, %v979
      %v981 = vpop.f32.mrb[0].mxu0
      %v982 = vadd.f32 %v402, %v981
      %v983 = vpop.f32.mrb[0].mxu0
      %v984 = vadd.f32 %v406, %v983
      %985 = vmatprep.mubr.bf16.mxu0 0
      %986 = vmatmul.mubr.bf16.gmra.mrb[0].mxu0 %v615
      %v987 = vpop.f32.mrb[0].mxu0
      %v988 = vadd.f32 %v402, %v987
      %v989 = vpop.f32.mrb[0].mxu0
      %v990 = vadd.f32 %v406, %v989
      %v991 = vpop.f32.mrb[0].mxu0
      %v992 = vadd.f32 %v402, %v991
      %v993 = vpop.f32.mrb[0].mxu0
      %v994 = vadd.f32 %v406, %v993
      %995 = vmatprep.mubr.bf16.mxu0 0
      %996 = vmatmul.mubr.bf16.gmra.mrb[0].mxu0 %v618
      %v997 = vpop.f32.mrb[0].mxu0
      %v998 = vadd.f32 %v402, %v997
      %v999 = vpop.f32.mrb[0].mxu0
      %v1000 = vadd.f32 %v406, %v999
      %v1001 = vpop.f32.mrb[0].mxu0
      %v1002 = vadd.f32 %v402, %v1001
      %v1003 = vpop.f32.mrb[0].mxu0
      %v1004 = vadd.f32 %v406, %v1003
      %1005 = vdwg.mxu0
      %v1006 = vmul.f32 %v655, 1.442695
      %v1007 = vpow.pop %v1006
      %v1008 = vmul.f32 %v657, 1.442695
      %v1009 = vpow.pop %v1008
      %v1010 = vmul.f32 %v848, 1.442695
      %v1011 = vpow.pop %v1010
      %v1012 = vmul.f32 %v850, 1.442695
      %v1013 = vpow.pop %v1012
      %v1014 = vmul.f32 %v659, 1.442695
      %v1015 = vpow.pop %v1014
      %v1016 = vmul.f32 %v661, 1.442695
      %v1017 = vpow.pop %v1016
      %v1018 = vmul.f32 %v852, 1.442695
      %v1019 = vpow.pop %v1018
      %v1020 = vmul.f32 %v854, 1.442695
      %v1021 = vpow.pop %v1020
      %v1022 = vmul.f32 %v665, 1.442695
      %v1023 = vpow.pop %v1022
      %v1024 = vmul.f32 %v667, 1.442695
      %v1025 = vpow.pop %v1024
      %v1026 = vmul.f32 %v858, 1.442695
      %v1027 = vpow.pop %v1026
      %v1028 = vmul.f32 %v860, 1.442695
      %v1029 = vpow.pop %v1028
      %v1030 = vmul.f32 %v669, 1.442695
      %v1031 = vpow.pop %v1030
      %v1032 = vmul.f32 %v671, 1.442695
      %v1033 = vpow.pop %v1032
      %v1034 = vmul.f32 %v862, 1.442695
      %v1035 = vpow.pop %v1034
      %v1036 = vmul.f32 %v864, 1.442695
      %v1037 = vpow.pop %v1036
      %v1038 = vmul.f32 %v675, 1.442695
      %v1039 = vpow.pop %v1038
      %v1040 = vmul.f32 %v677, 1.442695
      %v1041 = vpow.pop %v1040
      %v1042 = vmul.f32 %v868, 1.442695
      %v1043 = vpow.pop %v1042
      %v1044 = vmul.f32 %v870, 1.442695
      %v1045 = vpow.pop %v1044
      %v1046 = vmul.f32 %v679, 1.442695
      %v1047 = vpow.pop %v1046
      %v1048 = vmul.f32 %v681, 1.442695
      %v1049 = vpow.pop %v1048
      %v1050 = vmul.f32 %v872, 1.442695
      %v1051 = vpow.pop %v1050
      %v1052 = vmul.f32 %v874, 1.442695
      %v1053 = vpow.pop %v1052
      %v1054 = vmul.f32 %v685, 1.442695
      %v1055 = vpow.pop %v1054
      %v1056 = vmul.f32 %v687, 1.442695
      %v1057 = vpow.pop %v1056
      %v1058 = vmul.f32 %v878, 1.442695
      %v1059 = vpow.pop %v1058
      %v1060 = vmul.f32 %v880, 1.442695
      %v1061 = vpow.pop %v1060
      %v1062 = vmul.f32 %v689, 1.442695
      %v1063 = vpow.pop %v1062
      %v1064 = vmul.f32 %v691, 1.442695
      %v1065 = vpow.pop %v1064
      %v1066 = vmul.f32 %v882, 1.442695
      %v1067 = vpow.pop %v1066
      %v1068 = vmul.f32 %v884, 1.442695
      %v1069 = vpow.pop %v1068
      %v1070 = vmul.f32 %v695, 1.442695
      %v1071 = vpow.pop %v1070
      %v1072 = vmul.f32 %v697, 1.442695
      %v1073 = vpow.pop %v1072
      %v1074 = vmul.f32 %v888, 1.442695
      %v1075 = vpow.pop %v1074
      %v1076 = vmul.f32 %v890, 1.442695
      %v1077 = vpow.pop %v1076
      %v1078 = vmul.f32 %v699, 1.442695
      %v1079 = vpow.pop %v1078
      %v1080 = vmul.f32 %v701, 1.442695
      %v1081 = vpow.pop %v1080
      %v1082 = vmul.f32 %v892, 1.442695
      %v1083 = vpow.pop %v1082
      %v1084 = vmul.f32 %v894, 1.442695
      %v1085 = vpow.pop %v1084
      %v1086 = vmul.f32 %v705, 1.442695
      %v1087 = vpow.pop %v1086
      %v1088 = vmul.f32 %v707, 1.442695
      %v1089 = vpow.pop %v1088
      %v1090 = vmul.f32 %v898, 1.442695
      %v1091 = vpow.pop %v1090
      %v1092 = vmul.f32 %v900, 1.442695
      %v1093 = vpow.pop %v1092
      %v1094 = vmul.f32 %v709, 1.442695
      %v1095 = vpow.pop %v1094
      %v1096 = vmul.f32 %v711, 1.442695
      %v1097 = vpow.pop %v1096
      %v1098 = vmul.f32 %v902, 1.442695
      %v1099 = vpow.pop %v1098
      %v1100 = vmul.f32 %v904, 1.442695
      %v1101 = vpow.pop %v1100
      %v1102 = vmul.f32 %v715, 1.442695
      %v1103 = vpow.pop %v1102
      %v1104 = vmul.f32 %v717, 1.442695
      %v1105 = vpow.pop %v1104
      %v1106 = vmul.f32 %v908, 1.442695
      %v1107 = vpow.pop %v1106
      %v1108 = vmul.f32 %v910, 1.442695
      %v1109 = vpow.pop %v1108
      %v1110 = vmul.f32 %v719, 1.442695
      %v1111 = vpow.pop %v1110
      %v1112 = vmul.f32 %v721, 1.442695
      %v1113 = vpow.pop %v1112
      %v1114 = vmul.f32 %v912, 1.442695
      %v1115 = vpow.pop %v1114
      %v1116 = vmul.f32 %v914, 1.442695
      %v1117 = vpow.pop %v1116
      %v1118 = vmul.f32 %v725, 1.442695
      %v1119 = vpow.pop %v1118
      %v1120 = vmul.f32 %v727, 1.442695
      %v1121 = vpow.pop %v1120
      %v1122 = vmul.f32 %v918, 1.442695
      %v1123 = vpow.pop %v1122
      %v1124 = vmul.f32 %v920, 1.442695
      %v1125 = vpow.pop %v1124
      %v1126 = vmul.f32 %v729, 1.442695
      %v1127 = vpow.pop %v1126
      %v1128 = vmul.f32 %v731, 1.442695
      %v1129 = vpow.pop %v1128
      %v1130 = vmul.f32 %v922, 1.442695
      %v1131 = vpow.pop %v1130
      %v1132 = vmul.f32 %v924, 1.442695
      %v1133 = vpow.pop %v1132
      %v1134 = vmul.f32 %v735, 1.442695
      %v1135 = vpow.pop %v1134
      %v1136 = vmul.f32 %v737, 1.442695
      %v1137 = vpow.pop %v1136
      %v1138 = vmul.f32 %v928, 1.442695
      %v1139 = vpow.pop %v1138
      %v1140 = vmul.f32 %v930, 1.442695
      %v1141 = vpow.pop %v1140
      %v1142 = vmul.f32 %v739, 1.442695
      %v1143 = vpow.pop %v1142
      %v1144 = vmul.f32 %v741, 1.442695
      %v1145 = vpow.pop %v1144
      %v1146 = vmul.f32 %v932, 1.442695
      %v1147 = vpow.pop %v1146
      %v1148 = vmul.f32 %v934, 1.442695
      %v1149 = vpow.pop %v1148
      %v1150 = vmul.f32 %v745, 1.442695
      %v1151 = vpow.pop %v1150
      %v1152 = vmul.f32 %v747, 1.442695
      %v1153 = vpow.pop %v1152
      %v1154 = vmul.f32 %v938, 1.442695
      %v1155 = vpow.pop %v1154
      %v1156 = vmul.f32 %v940, 1.442695
      %v1157 = vpow.pop %v1156
      %v1158 = vmul.f32 %v749, 1.442695
      %v1159 = vpow.pop %v1158
      %v1160 = vmul.f32 %v751, 1.442695
      %v1161 = vpow.pop %v1160
      %v1162 = vmul.f32 %v942, 1.442695
      %v1163 = vpow.pop %v1162
      %v1164 = vmul.f32 %v944, 1.442695
      %v1165 = vpow.pop %v1164
      %v1166 = vmul.f32 %v755, 1.442695
      %v1167 = vpow.pop %v1166
      %v1168 = vmul.f32 %v757, 1.442695
      %v1169 = vpow.pop %v1168
      %v1170 = vmul.f32 %v948, 1.442695
      %v1171 = vpow.pop %v1170
      %v1172 = vmul.f32 %v950, 1.442695
      %v1173 = vpow.pop %v1172
      %v1174 = vmul.f32 %v759, 1.442695
      %v1175 = vpow.pop %v1174
      %v1176 = vmul.f32 %v761, 1.442695
      %v1177 = vpow.pop %v1176
      %v1178 = vmul.f32 %v952, 1.442695
      %v1179 = vpow.pop %v1178
      %v1180 = vmul.f32 %v954, 1.442695
      %v1181 = vpow.pop %v1180
      %v1182 = vmul.f32 %v765, 1.442695
      %v1183 = vpow.pop %v1182
      %v1184 = vmul.f32 %v767, 1.442695
      %v1185 = vpow.pop %v1184
      %v1186 = vmul.f32 %v958, 1.442695
      %v1187 = vpow.pop %v1186
      %v1188 = vmul.f32 %v960, 1.442695
      %v1189 = vpow.pop %v1188
      %v1190 = vmul.f32 %v769, 1.442695
      %v1191 = vpow.pop %v1190
      %v1192 = vmul.f32 %v771, 1.442695
      %v1193 = vpow.pop %v1192
      %v1194 = vmul.f32 %v962, 1.442695
      %v1195 = vpow.pop %v1194
      %v1196 = vmul.f32 %v964, 1.442695
      %v1197 = vpow.pop %v1196
      %v1198 = vmul.f32 %v775, 1.442695
      %v1199 = vpow.pop %v1198
      %v1200 = vmul.f32 %v777, 1.442695
      %v1201 = vpow.pop %v1200
      %v1202 = vmul.f32 %v968, 1.442695
      %v1203 = vpow.pop %v1202
      %v1204 = vmul.f32 %v970, 1.442695
      %v1205 = vpow.pop %v1204
      %v1206 = vmul.f32 %v779, 1.442695
      %v1207 = vpow.pop %v1206
      %v1208 = vmul.f32 %v781, 1.442695
      %v1209 = vpow.pop %v1208
      %v1210 = vmul.f32 %v972, 1.442695
      %v1211 = vpow.pop %v1210
      %v1212 = vmul.f32 %v974, 1.442695
      %v1213 = vpow.pop %v1212
      %v1214 = vmul.f32 %v785, 1.442695
      %v1215 = vpow.pop %v1214
      %v1216 = vmul.f32 %v787, 1.442695
      %v1217 = vpow.pop %v1216
      %v1218 = vmul.f32 %v978, 1.442695
      %v1219 = vpow.pop %v1218
      %v1220 = vmul.f32 %v980, 1.442695
      %v1221 = vpow.pop %v1220
      %v1222 = vmul.f32 %v789, 1.442695
      %v1223 = vpow.pop %v1222
      %v1224 = vmul.f32 %v791, 1.442695
      %v1225 = vpow.pop %v1224
      %v1226 = vmul.f32 %v982, 1.442695
      %v1227 = vpow.pop %v1226
      %v1228 = vmul.f32 %v984, 1.442695
      %v1229 = vpow.pop %v1228
      %v1230 = vmul.f32 %v795, 1.442695
      %v1231 = vpow.pop %v1230
      %v1232 = vmul.f32 %v797, 1.442695
      %v1233 = vpow.pop %v1232
      %v1234 = vmul.f32 %v988, 1.442695
      %v1235 = vpow.pop %v1234
      %v1236 = vmul.f32 %v990, 1.442695
      %v1237 = vpow.pop %v1236
      %v1238 = vmul.f32 %v799, 1.442695
      %v1239 = vpow.pop %v1238
      %v1240 = vmul.f32 %v801, 1.442695
      %v1241 = vpow.pop %v1240
      %v1242 = vmul.f32 %v992, 1.442695
      %v1243 = vpow.pop %v1242
      %v1244 = vmul.f32 %v994, 1.442695
      %v1245 = vpow.pop %v1244
      %v1246 = vmul.f32 %v805, 1.442695
      %v1247 = vpow.pop %v1246
      %v1248 = vmul.f32 %v807, 1.442695
      %v1249 = vpow.pop %v1248
      %v1250 = vmul.f32 %v998, 1.442695
      %v1251 = vpow.pop %v1250
      %v1252 = vmul.f32 %v1000, 1.442695
      %v1253 = vpow.pop %v1252
      %v1254 = vmul.f32 %v809, 1.442695
      %v1255 = vpow.pop %v1254
      %v1256 = vmul.f32 %v811, 1.442695
      %v1257 = vpow.pop %v1256
      %v1258 = vmul.f32 %v1002, 1.442695
      %v1259 = vpow.pop %v1258
      %v1260 = vmul.f32 %v1004, 1.442695
      %v1261 = vpow.pop %v1260
      %v1262 = vadd.f32 %v1007, 1.0
      %v1263 = vadd.f32 %v1009, 1.0
      %v1264 = vadd.f32 %v1011, 1.0
      %v1265 = vadd.f32 %v1013, 1.0
      %v1266 = vadd.f32 %v1015, 1.0
      %v1267 = vadd.f32 %v1017, 1.0
      %v1268 = vadd.f32 %v1019, 1.0
      %v1269 = vadd.f32 %v1021, 1.0
      %v1270 = vadd.f32 %v1023, 1.0
      %v1271 = vadd.f32 %v1025, 1.0
      %v1272 = vadd.f32 %v1027, 1.0
      %v1273 = vadd.f32 %v1029, 1.0
      %v1274 = vadd.f32 %v1031, 1.0
      %v1275 = vadd.f32 %v1033, 1.0
      %v1276 = vadd.f32 %v1035, 1.0
      %v1277 = vadd.f32 %v1037, 1.0
      %v1278 = vadd.f32 %v1039, 1.0
      %v1279 = vadd.f32 %v1041, 1.0
      %v1280 = vadd.f32 %v1043, 1.0
      %v1281 = vadd.f32 %v1045, 1.0
      %v1282 = vadd.f32 %v1047, 1.0
      %v1283 = vadd.f32 %v1049, 1.0
      %v1284 = vadd.f32 %v1051, 1.0
      %v1285 = vadd.f32 %v1053, 1.0
      %v1286 = vadd.f32 %v1055, 1.0
      %v1287 = vadd.f32 %v1057, 1.0
      %v1288 = vadd.f32 %v1059, 1.0
      %v1289 = vadd.f32 %v1061, 1.0
      %v1290 = vadd.f32 %v1063, 1.0
      %v1291 = vadd.f32 %v1065, 1.0
      %v1292 = vadd.f32 %v1067, 1.0
      %v1293 = vadd.f32 %v1069, 1.0
      %v1294 = vadd.f32 %v1071, 1.0
      %v1295 = vadd.f32 %v1073, 1.0
      %v1296 = vadd.f32 %v1075, 1.0
      %v1297 = vadd.f32 %v1077, 1.0
      %v1298 = vadd.f32 %v1079, 1.0
      %v1299 = vadd.f32 %v1081, 1.0
      %v1300 = vadd.f32 %v1083, 1.0
      %v1301 = vadd.f32 %v1085, 1.0
      %v1302 = vadd.f32 %v1087, 1.0
      %v1303 = vadd.f32 %v1089, 1.0
      %v1304 = vadd.f32 %v1091, 1.0
      %v1305 = vadd.f32 %v1093, 1.0
      %v1306 = vadd.f32 %v1095, 1.0
      %v1307 = vadd.f32 %v1097, 1.0
      %v1308 = vadd.f32 %v1099, 1.0
      %v1309 = vadd.f32 %v1101, 1.0
      %v1310 = vadd.f32 %v1103, 1.0
      %v1311 = vadd.f32 %v1105, 1.0
      %v1312 = vadd.f32 %v1107, 1.0
      %v1313 = vadd.f32 %v1109, 1.0
      %v1314 = vadd.f32 %v1111, 1.0
      %v1315 = vadd.f32 %v1113, 1.0
      %v1316 = vadd.f32 %v1115, 1.0
      %v1317 = vadd.f32 %v1117, 1.0
      %v1318 = vadd.f32 %v1119, 1.0
      %v1319 = vadd.f32 %v1121, 1.0
      %v1320 = vadd.f32 %v1123, 1.0
      %v1321 = vadd.f32 %v1125, 1.0
      %v1322 = vadd.f32 %v1127, 1.0
      %v1323 = vadd.f32 %v1129, 1.0
      %v1324 = vadd.f32 %v1131, 1.0
      %v1325 = vadd.f32 %v1133, 1.0
      %v1326 = vadd.f32 %v1135, 1.0
      %v1327 = vadd.f32 %v1137, 1.0
      %v1328 = vadd.f32 %v1139, 1.0
      %v1329 = vadd.f32 %v1141, 1.0
      %v1330 = vadd.f32 %v1143, 1.0
      %v1331 = vadd.f32 %v1145, 1.0
      %v1332 = vadd.f32 %v1147, 1.0
      %v1333 = vadd.f32 %v1149, 1.0
      %v1334 = vadd.f32 %v1151, 1.0
      %v1335 = vadd.f32 %v1153, 1.0
      %v1336 = vadd.f32 %v1155, 1.0
      %v1337 = vadd.f32 %v1157, 1.0
      %v1338 = vadd.f32 %v1159, 1.0
      %v1339 = vadd.f32 %v1161, 1.0
      %v1340 = vadd.f32 %v1163, 1.0
      %v1341 = vadd.f32 %v1165, 1.0
      %v1342 = vadd.f32 %v1167, 1.0
      %v1343 = vadd.f32 %v1169, 1.0
      %v1344 = vadd.f32 %v1171, 1.0
      %v1345 = vadd.f32 %v1173, 1.0
      %v1346 = vadd.f32 %v1175, 1.0
      %v1347 = vadd.f32 %v1177, 1.0
      %v1348 = vadd.f32 %v1179, 1.0
      %v1349 = vadd.f32 %v1181, 1.0
      %v1350 = vadd.f32 %v1183, 1.0
      %v1351 = vadd.f32 %v1185, 1.0
      %v1352 = vadd.f32 %v1187, 1.0
      %v1353 = vadd.f32 %v1189, 1.0
      %v1354 = vadd.f32 %v1191, 1.0
      %v1355 = vadd.f32 %v1193, 1.0
      %v1356 = vadd.f32 %v1195, 1.0
      %v1357 = vadd.f32 %v1197, 1.0
      %v1358 = vadd.f32 %v1199, 1.0
      %v1359 = vadd.f32 %v1201, 1.0
      %v1360 = vadd.f32 %v1203, 1.0
      %v1361 = vadd.f32 %v1205, 1.0
      %v1362 = vadd.f32 %v1207, 1.0
      %v1363 = vadd.f32 %v1209, 1.0
      %v1364 = vadd.f32 %v1211, 1.0
      %v1365 = vadd.f32 %v1213, 1.0
      %v1366 = vadd.f32 %v1215, 1.0
      %v1367 = vadd.f32 %v1217, 1.0
      %v1368 = vadd.f32 %v1219, 1.0
      %v1369 = vadd.f32 %v1221, 1.0
      %v1370 = vadd.f32 %v1223, 1.0
      %v1371 = vadd.f32 %v1225, 1.0
      %v1372 = vadd.f32 %v1227, 1.0
      %v1373 = vadd.f32 %v1229, 1.0
      %v1374 = vadd.f32 %v1231, 1.0
      %v1375 = vadd.f32 %v1233, 1.0
      %v1376 = vadd.f32 %v1235, 1.0
      %v1377 = vadd.f32 %v1237, 1.0
      %v1378 = vadd.f32 %v1239, 1.0
      %v1379 = vadd.f32 %v1241, 1.0
      %v1380 = vadd.f32 %v1243, 1.0
      %v1381 = vadd.f32 %v1245, 1.0
      %v1382 = vadd.f32 %v1247, 1.0
      %v1383 = vadd.f32 %v1249, 1.0
      %v1384 = vadd.f32 %v1251, 1.0
      %v1385 = vadd.f32 %v1253, 1.0
      %v1386 = vadd.f32 %v1255, 1.0
      %v1387 = vadd.f32 %v1257, 1.0
      %v1388 = vadd.f32 %v1259, 1.0
      %v1389 = vadd.f32 %v1261, 1.0
      %v1390 = vmul.f32 %v1262, %v1262
      %v1391 = vmul.f32 %v1263, %v1263
      %v1392 = vmul.f32 %v1264, %v1264
      %v1393 = vmul.f32 %v1265, %v1265
      %v1394 = vmul.f32 %v1266, %v1266
      %v1395 = vmul.f32 %v1267, %v1267
      %v1396 = vmul.f32 %v1268, %v1268
      %v1397 = vmul.f32 %v1269, %v1269
      %v1398 = vmul.f32 %v1270, %v1270
      %v1399 = vmul.f32 %v1271, %v1271
      %v1400 = vmul.f32 %v1272, %v1272
      %v1401 = vmul.f32 %v1273, %v1273
      %v1402 = vmul.f32 %v1274, %v1274
      %v1403 = vmul.f32 %v1275, %v1275
      %v1404 = vmul.f32 %v1276, %v1276
      %v1405 = vmul.f32 %v1277, %v1277
      %v1406 = vmul.f32 %v1278, %v1278
      %v1407 = vmul.f32 %v1279, %v1279
      %v1408 = vmul.f32 %v1280, %v1280
      %v1409 = vmul.f32 %v1281, %v1281
      %v1410 = vmul.f32 %v1282, %v1282
      %v1411 = vmul.f32 %v1283, %v1283
      %v1412 = vmul.f32 %v1284, %v1284
      %v1413 = vmul.f32 %v1285, %v1285
      %v1414 = vmul.f32 %v1286, %v1286
      %v1415 = vmul.f32 %v1287, %v1287
      %v1416 = vmul.f32 %v1288, %v1288
      %v1417 = vmul.f32 %v1289, %v1289
      %v1418 = vmul.f32 %v1290, %v1290
      %v1419 = vmul.f32 %v1291, %v1291
      %v1420 = vmul.f32 %v1292, %v1292
      %v1421 = vmul.f32 %v1293, %v1293
      %v1422 = vmul.f32 %v1294, %v1294
      %v1423 = vmul.f32 %v1295, %v1295
      %v1424 = vmul.f32 %v1296, %v1296
      %v1425 = vmul.f32 %v1297, %v1297
      %v1426 = vmul.f32 %v1298, %v1298
      %v1427 = vmul.f32 %v1299, %v1299
      %v1428 = vmul.f32 %v1300, %v1300
      %v1429 = vmul.f32 %v1301, %v1301
      %v1430 = vmul.f32 %v1302, %v1302
      %v1431 = vmul.f32 %v1303, %v1303
      %v1432 = vmul.f32 %v1304, %v1304
      %v1433 = vmul.f32 %v1305, %v1305
      %v1434 = vmul.f32 %v1306, %v1306
      %v1435 = vmul.f32 %v1307, %v1307
      %v1436 = vmul.f32 %v1308, %v1308
      %v1437 = vmul.f32 %v1309, %v1309
      %v1438 = vmul.f32 %v1310, %v1310
      %v1439 = vmul.f32 %v1311, %v1311
      %v1440 = vmul.f32 %v1312, %v1312
      %v1441 = vmul.f32 %v1313, %v1313
      %v1442 = vmul.f32 %v1314, %v1314
      %v1443 = vmul.f32 %v1315, %v1315
      %v1444 = vmul.f32 %v1316, %v1316
      %v1445 = vmul.f32 %v1317, %v1317
      %v1446 = vmul.f32 %v1318, %v1318
      %v1447 = vmul.f32 %v1319, %v1319
      %v1448 = vmul.f32 %v1320, %v1320
      %v1449 = vmul.f32 %v1321, %v1321
      %v1450 = vmul.f32 %v1322, %v1322
      %v1451 = vmul.f32 %v1323, %v1323
      %v1452 = vmul.f32 %v1324, %v1324
      %v1453 = vmul.f32 %v1325, %v1325
      %v1454 = vmul.f32 %v1326, %v1326
      %v1455 = vmul.f32 %v1327, %v1327
      %v1456 = vmul.f32 %v1328, %v1328
      %v1457 = vmul.f32 %v1329, %v1329
      %v1458 = vmul.f32 %v1330, %v1330
      %v1459 = vmul.f32 %v1331, %v1331
      %v1460 = vmul.f32 %v1332, %v1332
      %v1461 = vmul.f32 %v1333, %v1333
      %v1462 = vmul.f32 %v1334, %v1334
      %v1463 = vmul.f32 %v1335, %v1335
      %v1464 = vmul.f32 %v1336, %v1336
      %v1465 = vmul.f32 %v1337, %v1337
      %v1466 = vmul.f32 %v1338, %v1338
      %v1467 = vmul.f32 %v1339, %v1339
      %v1468 = vmul.f32 %v1340, %v1340
      %v1469 = vmul.f32 %v1341, %v1341
      %v1470 = vmul.f32 %v1342, %v1342
      %v1471 = vmul.f32 %v1343, %v1343
      %v1472 = vmul.f32 %v1344, %v1344
      %v1473 = vmul.f32 %v1345, %v1345
      %v1474 = vmul.f32 %v1346, %v1346
      %v1475 = vmul.f32 %v1347, %v1347
      %v1476 = vmul.f32 %v1348, %v1348
      %v1477 = vmul.f32 %v1349, %v1349
      %v1478 = vmul.f32 %v1350, %v1350
      %v1479 = vmul.f32 %v1351, %v1351
      %v1480 = vmul.f32 %v1352, %v1352
      %v1481 = vmul.f32 %v1353, %v1353
      %v1482 = vmul.f32 %v1354, %v1354
      %v1483 = vmul.f32 %v1355, %v1355
      %v1484 = vmul.f32 %v1356, %v1356
      %v1485 = vmul.f32 %v1357, %v1357
      %v1486 = vmul.f32 %v1358, %v1358
      %v1487 = vmul.f32 %v1359, %v1359
      %v1488 = vmul.f32 %v1360, %v1360
      %v1489 = vmul.f32 %v1361, %v1361
      %v1490 = vmul.f32 %v1362, %v1362
      %v1491 = vmul.f32 %v1363, %v1363
      %v1492 = vmul.f32 %v1364, %v1364
      %v1493 = vmul.f32 %v1365, %v1365
      %v1494 = vmul.f32 %v1366, %v1366
      %v1495 = vmul.f32 %v1367, %v1367
      %v1496 = vmul.f32 %v1368, %v1368
      %v1497 = vmul.f32 %v1369, %v1369
      %v1498 = vmul.f32 %v1370, %v1370
      %v1499 = vmul.f32 %v1371, %v1371
      %v1500 = vmul.f32 %v1372, %v1372
      %v1501 = vmul.f32 %v1373, %v1373
      %v1502 = vmul.f32 %v1374, %v1374
      %v1503 = vmul.f32 %v1375, %v1375
      %v1504 = vmul.f32 %v1376, %v1376
      %v1505 = vmul.f32 %v1377, %v1377
      %v1506 = vmul.f32 %v1378, %v1378
      %v1507 = vmul.f32 %v1379, %v1379
      %v1508 = vmul.f32 %v1380, %v1380
      %v1509 = vmul.f32 %v1381, %v1381
      %v1510 = vmul.f32 %v1382, %v1382
      %v1511 = vmul.f32 %v1383, %v1383
      %v1512 = vmul.f32 %v1384, %v1384
      %v1513 = vmul.f32 %v1385, %v1385
      %v1514 = vmul.f32 %v1386, %v1386
      %v1515 = vmul.f32 %v1387, %v1387
      %v1516 = vmul.f32 %v1388, %v1388
      %v1517 = vmul.f32 %v1389, %v1389
      %v1518 = vadd.f32 %v1390, 1.0
      %v1519 = vadd.f32 %v1391, 1.0
      %v1520 = vadd.f32 %v1392, 1.0
      %v1521 = vadd.f32 %v1393, 1.0
      %v1522 = vadd.f32 %v1394, 1.0
      %v1523 = vadd.f32 %v1395, 1.0
      %v1524 = vadd.f32 %v1396, 1.0
      %v1525 = vadd.f32 %v1397, 1.0
      %v1526 = vadd.f32 %v1398, 1.0
      %v1527 = vadd.f32 %v1399, 1.0
      %v1528 = vadd.f32 %v1400, 1.0
      %v1529 = vadd.f32 %v1401, 1.0
      %v1530 = vadd.f32 %v1402, 1.0
      %v1531 = vadd.f32 %v1403, 1.0
      %v1532 = vadd.f32 %v1404, 1.0
      %v1533 = vadd.f32 %v1405, 1.0
      %v1534 = vadd.f32 %v1406, 1.0
      %v1535 = vadd.f32 %v1407, 1.0
      %v1536 = vadd.f32 %v1408, 1.0
      %v1537 = vadd.f32 %v1409, 1.0
      %v1538 = vadd.f32 %v1410, 1.0
      %v1539 = vadd.f32 %v1411, 1.0
      %v1540 = vadd.f32 %v1412, 1.0
      %v1541 = vadd.f32 %v1413, 1.0
      %v1542 = vadd.f32 %v1414, 1.0
      %v1543 = vadd.f32 %v1415, 1.0
      %v1544 = vadd.f32 %v1416, 1.0
      %v1545 = vadd.f32 %v1417, 1.0
      %v1546 = vadd.f32 %v1418, 1.0
      %v1547 = vadd.f32 %v1419, 1.0
      %v1548 = vadd.f32 %v1420, 1.0
      %v1549 = vadd.f32 %v1421, 1.0
      %v1550 = vadd.f32 %v1422, 1.0
      %v1551 = vadd.f32 %v1423, 1.0
      %v1552 = vadd.f32 %v1424, 1.0
      %v1553 = vadd.f32 %v1425, 1.0
      %v1554 = vadd.f32 %v1426, 1.0
      %v1555 = vadd.f32 %v1427, 1.0
      %v1556 = vadd.f32 %v1428, 1.0
      %v1557 = vadd.f32 %v1429, 1.0
      %v1558 = vadd.f32 %v1430, 1.0
      %v1559 = vadd.f32 %v1431, 1.0
      %v1560 = vadd.f32 %v1432, 1.0
      %v1561 = vadd.f32 %v1433, 1.0
      %v1562 = vadd.f32 %v1434, 1.0
      %v1563 = vadd.f32 %v1435, 1.0
      %v1564 = vadd.f32 %v1436, 1.0
      %v1565 = vadd.f32 %v1437, 1.0
      %v1566 = vadd.f32 %v1438, 1.0
      %v1567 = vadd.f32 %v1439, 1.0
      %v1568 = vadd.f32 %v1440, 1.0
      %v1569 = vadd.f32 %v1441, 1.0
      %v1570 = vadd.f32 %v1442, 1.0
      %v1571 = vadd.f32 %v1443, 1.0
      %v1572 = vadd.f32 %v1444, 1.0
      %v1573 = vadd.f32 %v1445, 1.0
      %v1574 = vadd.f32 %v1446, 1.0
      %v1575 = vadd.f32 %v1447, 1.0
      %v1576 = vadd.f32 %v1448, 1.0
      %v1577 = vadd.f32 %v1449, 1.0
      %v1578 = vadd.f32 %v1450, 1.0
      %v1579 = vadd.f32 %v1451, 1.0
      %v1580 = vadd.f32 %v1452, 1.0
      %v1581 = vadd.f32 %v1453, 1.0
      %v1582 = vadd.f32 %v1454, 1.0
      %v1583 = vadd.f32 %v1455, 1.0
      %v1584 = vadd.f32 %v1456, 1.0
      %v1585 = vadd.f32 %v1457, 1.0
      %v1586 = vadd.f32 %v1458, 1.0
      %v1587 = vadd.f32 %v1459, 1.0
      %v1588 = vadd.f32 %v1460, 1.0
      %v1589 = vadd.f32 %v1461, 1.0
      %v1590 = vadd.f32 %v1462, 1.0
      %v1591 = vadd.f32 %v1463, 1.0
      %v1592 = vadd.f32 %v1464, 1.0
      %v1593 = vadd.f32 %v1465, 1.0
      %v1594 = vadd.f32 %v1466, 1.0
      %v1595 = vadd.f32 %v1467, 1.0
      %v1596 = vadd.f32 %v1468, 1.0
      %v1597 = vadd.f32 %v1469, 1.0
      %v1598 = vadd.f32 %v1470, 1.0
      %v1599 = vadd.f32 %v1471, 1.0
      %v1600 = vadd.f32 %v1472, 1.0
      %v1601 = vadd.f32 %v1473, 1.0
      %v1602 = vadd.f32 %v1474, 1.0
      %v1603 = vadd.f32 %v1475, 1.0
      %v1604 = vadd.f32 %v1476, 1.0
      %v1605 = vadd.f32 %v1477, 1.0
      %v1606 = vadd.f32 %v1478, 1.0
      %v1607 = vadd.f32 %v1479, 1.0
      %v1608 = vadd.f32 %v1480, 1.0
      %v1609 = vadd.f32 %v1481, 1.0
      %v1610 = vadd.f32 %v1482, 1.0
      %v1611 = vadd.f32 %v1483, 1.0
      %v1612 = vadd.f32 %v1484, 1.0
      %v1613 = vadd.f32 %v1485, 1.0
      %v1614 = vadd.f32 %v1486, 1.0
      %v1615 = vadd.f32 %v1487, 1.0
      %v1616 = vadd.f32 %v1488, 1.0
      %v1617 = vadd.f32 %v1489, 1.0
      %v1618 = vadd.f32 %v1490, 1.0
      %v1619 = vadd.f32 %v1491, 1.0
      %v1620 = vadd.f32 %v1492, 1.0
      %v1621 = vadd.f32 %v1493, 1.0
      %v1622 = vadd.f32 %v1494, 1.0
      %v1623 = vadd.f32 %v1495, 1.0
      %v1624 = vadd.f32 %v1496, 1.0
      %v1625 = vadd.f32 %v1497, 1.0
      %v1626 = vadd.f32 %v1498, 1.0
      %v1627 = vadd.f32 %v1499, 1.0
      %v1628 = vadd.f32 %v1500, 1.0
      %v1629 = vadd.f32 %v1501, 1.0
      %v1630 = vadd.f32 %v1502, 1.0
      %v1631 = vadd.f32 %v1503, 1.0
      %v1632 = vadd.f32 %v1504, 1.0
      %v1633 = vadd.f32 %v1505, 1.0
      %v1634 = vadd.f32 %v1506, 1.0
      %v1635 = vadd.f32 %v1507, 1.0
      %v1636 = vadd.f32 %v1508, 1.0
      %v1637 = vadd.f32 %v1509, 1.0
      %v1638 = vadd.f32 %v1510, 1.0
      %v1639 = vadd.f32 %v1511, 1.0
      %v1640 = vadd.f32 %v1512, 1.0
      %v1641 = vadd.f32 %v1513, 1.0
      %v1642 = vadd.f32 %v1514, 1.0
      %v1643 = vadd.f32 %v1515, 1.0
      %v1644 = vadd.f32 %v1516, 1.0
      %v1645 = vadd.f32 %v1517, 1.0
      %v1646 = vrcp.pop %v1518
      %v1647 = vrcp.pop %v1519
      %v1648 = vrcp.pop %v1520
      %v1649 = vrcp.pop %v1521
      %v1650 = vrcp.pop %v1522
      %v1651 = vrcp.pop %v1523
      %v1652 = vrcp.pop %v1524
      %v1653 = vrcp.pop %v1525
      %v1654 = vrcp.pop %v1526
      %v1655 = vrcp.pop %v1527
      %v1656 = vrcp.pop %v1528
      %v1657 = vrcp.pop %v1529
      %v1658 = vrcp.pop %v1530
      %v1659 = vrcp.pop %v1531
      %v1660 = vrcp.pop %v1532
      %v1661 = vrcp.pop %v1533
      %v1662 = vrcp.pop %v1534
      %v1663 = vrcp.pop %v1535
      %v1664 = vrcp.pop %v1536
      %v1665 = vrcp.pop %v1537
      %v1666 = vrcp.pop %v1538
      %v1667 = vrcp.pop %v1539
      %v1668 = vrcp.pop %v1540
      %v1669 = vrcp.pop %v1541
      %v1670 = vrcp.pop %v1542
      %v1671 = vrcp.pop %v1543
      %v1672 = vrcp.pop %v1544
      %v1673 = vrcp.pop %v1545
      %v1674 = vrcp.pop %v1546
      %v1675 = vrcp.pop %v1547
      %v1676 = vrcp.pop %v1548
      %v1677 = vrcp.pop %v1549
      %v1678 = vrcp.pop %v1550
      %v1679 = vrcp.pop %v1551
      %v1680 = vrcp.pop %v1552
      %v1681 = vrcp.pop %v1553
      %v1682 = vrcp.pop %v1554
      %v1683 = vrcp.pop %v1555
      %v1684 = vrcp.pop %v1556
      %v1685 = vrcp.pop %v1557
      %v1686 = vrcp.pop %v1558
      %v1687 = vrcp.pop %v1559
      %v1688 = vrcp.pop %v1560
      %v1689 = vrcp.pop %v1561
      %v1690 = vrcp.pop %v1562
      %v1691 = vrcp.pop %v1563
      %v1692 = vrcp.pop %v1564
      %v1693 = vrcp.pop %v1565
      %v1694 = vrcp.pop %v1566
      %v1695 = vrcp.pop %v1567
      %v1696 = vrcp.pop %v1568
      %v1697 = vrcp.pop %v1569
      %v1698 = vrcp.pop %v1570
      %v1699 = vrcp.pop %v1571
      %v1700 = vrcp.pop %v1572
      %v1701 = vrcp.pop %v1573
      %v1702 = vrcp.pop %v1574
      %v1703 = vrcp.pop %v1575
      %v1704 = vrcp.pop %v1576
      %v1705 = vrcp.pop %v1577
      %v1706 = vrcp.pop %v1578
      %v1707 = vrcp.pop %v1579
      %v1708 = vrcp.pop %v1580
      %v1709 = vrcp.pop %v1581
      %v1710 = vrcp.pop %v1582
      %v1711 = vrcp.pop %v1583
      %v1712 = vrcp.pop %v1584
      %v1713 = vrcp.pop %v1585
      %v1714 = vrcp.pop %v1586
      %v1715 = vrcp.pop %v1587
      %v1716 = vrcp.pop %v1588
      %v1717 = vrcp.pop %v1589
      %v1718 = vrcp.pop %v1590
      %v1719 = vrcp.pop %v1591
      %v1720 = vrcp.pop %v1592
      %v1721 = vrcp.pop %v1593
      %v1722 = vrcp.pop %v1594
      %v1723 = vrcp.pop %v1595
      %v1724 = vrcp.pop %v1596
      %v1725 = vrcp.pop %v1597
      %v1726 = vrcp.pop %v1598
      %v1727 = vrcp.pop %v1599
      %v1728 = vrcp.pop %v1600
      %v1729 = vrcp.pop %v1601
      %v1730 = vrcp.pop %v1602
      %v1731 = vrcp.pop %v1603
      %v1732 = vrcp.pop %v1604
      %v1733 = vrcp.pop %v1605
      %v1734 = vrcp.pop %v1606
      %v1735 = vrcp.pop %v1607
      %v1736 = vrcp.pop %v1608
      %v1737 = vrcp.pop %v1609
      %v1738 = vrcp.pop %v1610
      %v1739 = vrcp.pop %v1611
      %v1740 = vrcp.pop %v1612
      %v1741 = vrcp.pop %v1613
      %v1742 = vrcp.pop %v1614
      %v1743 = vrcp.pop %v1615
      %v1744 = vrcp.pop %v1616
      %v1745 = vrcp.pop %v1617
      %v1746 = vrcp.pop %v1618
      %v1747 = vrcp.pop %v1619
      %v1748 = vrcp.pop %v1620
      %v1749 = vrcp.pop %v1621
      %v1750 = vrcp.pop %v1622
      %v1751 = vrcp.pop %v1623
      %v1752 = vrcp.pop %v1624
      %v1753 = vrcp.pop %v1625
      %v1754 = vrcp.pop %v1626
      %v1755 = vrcp.pop %v1627
      %v1756 = vrcp.pop %v1628
      %v1757 = vrcp.pop %v1629
      %v1758 = vrcp.pop %v1630
      %v1759 = vrcp.pop %v1631
      %v1760 = vrcp.pop %v1632
      %v1761 = vrcp.pop %v1633
      %v1762 = vrcp.pop %v1634
      %v1763 = vrcp.pop %v1635
      %v1764 = vrcp.pop %v1636
      %v1765 = vrcp.pop %v1637
      %v1766 = vrcp.pop %v1638
      %v1767 = vrcp.pop %v1639
      %v1768 = vrcp.pop %v1640
      %v1769 = vrcp.pop %v1641
      %v1770 = vrcp.pop %v1642
      %v1771 = vrcp.pop %v1643
      %v1772 = vrcp.pop %v1644
      %v1773 = vrcp.pop %v1645
      %v1774 = vmul.f32 %v1646, 2.0
      %v1775 = vmul.f32 %v1647, 2.0
      %v1776 = vmul.f32 %v1648, 2.0
      %v1777 = vmul.f32 %v1649, 2.0
      %v1778 = vmul.f32 %v1650, 2.0
      %v1779 = vmul.f32 %v1651, 2.0
      %v1780 = vmul.f32 %v1652, 2.0
      %v1781 = vmul.f32 %v1653, 2.0
      %v1782 = vmul.f32 %v1654, 2.0
      %v1783 = vmul.f32 %v1655, 2.0
      %v1784 = vmul.f32 %v1656, 2.0
      %v1785 = vmul.f32 %v1657, 2.0
      %v1786 = vmul.f32 %v1658, 2.0
      %v1787 = vmul.f32 %v1659, 2.0
      %v1788 = vmul.f32 %v1660, 2.0
      %v1789 = vmul.f32 %v1661, 2.0
      %v1790 = vmul.f32 %v1662, 2.0
      %v1791 = vmul.f32 %v1663, 2.0
      %v1792 = vmul.f32 %v1664, 2.0
      %v1793 = vmul.f32 %v1665, 2.0
      %v1794 = vmul.f32 %v1666, 2.0
      %v1795 = vmul.f32 %v1667, 2.0
      %v1796 = vmul.f32 %v1668, 2.0
      %v1797 = vmul.f32 %v1669, 2.0
      %v1798 = vmul.f32 %v1670, 2.0
      %v1799 = vmul.f32 %v1671, 2.0
      %v1800 = vmul.f32 %v1672, 2.0
      %v1801 = vmul.f32 %v1673, 2.0
      %v1802 = vmul.f32 %v1674, 2.0
      %v1803 = vmul.f32 %v1675, 2.0
      %v1804 = vmul.f32 %v1676, 2.0
      %v1805 = vmul.f32 %v1677, 2.0
      %v1806 = vmul.f32 %v1678, 2.0
      %v1807 = vmul.f32 %v1679, 2.0
      %v1808 = vmul.f32 %v1680, 2.0
      %v1809 = vmul.f32 %v1681, 2.0
      %v1810 = vmul.f32 %v1682, 2.0
      %v1811 = vmul.f32 %v1683, 2.0
      %v1812 = vmul.f32 %v1684, 2.0
      %v1813 = vmul.f32 %v1685, 2.0
      %v1814 = vmul.f32 %v1686, 2.0
      %v1815 = vmul.f32 %v1687, 2.0
      %v1816 = vmul.f32 %v1688, 2.0
      %v1817 = vmul.f32 %v1689, 2.0
      %v1818 = vmul.f32 %v1690, 2.0
      %v1819 = vmul.f32 %v1691, 2.0
      %v1820 = vmul.f32 %v1692, 2.0
      %v1821 = vmul.f32 %v1693, 2.0
      %v1822 = vmul.f32 %v1694, 2.0
      %v1823 = vmul.f32 %v1695, 2.0
      %v1824 = vmul.f32 %v1696, 2.0
      %v1825 = vmul.f32 %v1697, 2.0
      %v1826 = vmul.f32 %v1698, 2.0
      %v1827 = vmul.f32 %v1699, 2.0
      %v1828 = vmul.f32 %v1700, 2.0
      %v1829 = vmul.f32 %v1701, 2.0
      %v1830 = vmul.f32 %v1702, 2.0
      %v1831 = vmul.f32 %v1703, 2.0
      %v1832 = vmul.f32 %v1704, 2.0
      %v1833 = vmul.f32 %v1705, 2.0
      %v1834 = vmul.f32 %v1706, 2.0
      %v1835 = vmul.f32 %v1707, 2.0
      %v1836 = vmul.f32 %v1708, 2.0
      %v1837 = vmul.f32 %v1709, 2.0
      %v1838 = vmul.f32 %v1710, 2.0
      %v1839 = vmul.f32 %v1711, 2.0
      %v1840 = vmul.f32 %v1712, 2.0
      %v1841 = vmul.f32 %v1713, 2.0
      %v1842 = vmul.f32 %v1714, 2.0
      %v1843 = vmul.f32 %v1715, 2.0
      %v1844 = vmul.f32 %v1716, 2.0
      %v1845 = vmul.f32 %v1717, 2.0
      %v1846 = vmul.f32 %v1718, 2.0
      %v1847 = vmul.f32 %v1719, 2.0
      %v1848 = vmul.f32 %v1720, 2.0
      %v1849 = vmul.f32 %v1721, 2.0
      %v1850 = vmul.f32 %v1722, 2.0
      %v1851 = vmul.f32 %v1723, 2.0
      %v1852 = vmul.f32 %v1724, 2.0
      %v1853 = vmul.f32 %v1725, 2.0
      %v1854 = vmul.f32 %v1726, 2.0
      %v1855 = vmul.f32 %v1727, 2.0
      %v1856 = vmul.f32 %v1728, 2.0
      %v1857 = vmul.f32 %v1729, 2.0
      %v1858 = vmul.f32 %v1730, 2.0
      %v1859 = vmul.f32 %v1731, 2.0
      %v1860 = vmul.f32 %v1732, 2.0
      %v1861 = vmul.f32 %v1733, 2.0
      %v1862 = vmul.f32 %v1734, 2.0
      %v1863 = vmul.f32 %v1735, 2.0
      %v1864 = vmul.f32 %v1736, 2.0
      %v1865 = vmul.f32 %v1737, 2.0
      %v1866 = vmul.f32 %v1738, 2.0
      %v1867 = vmul.f32 %v1739, 2.0
      %v1868 = vmul.f32 %v1740, 2.0
      %v1869 = vmul.f32 %v1741, 2.0
      %v1870 = vmul.f32 %v1742, 2.0
      %v1871 = vmul.f32 %v1743, 2.0
      %v1872 = vmul.f32 %v1744, 2.0
      %v1873 = vmul.f32 %v1745, 2.0
      %v1874 = vmul.f32 %v1746, 2.0
      %v1875 = vmul.f32 %v1747, 2.0
      %v1876 = vmul.f32 %v1748, 2.0
      %v1877 = vmul.f32 %v1749, 2.0
      %v1878 = vmul.f32 %v1750, 2.0
      %v1879 = vmul.f32 %v1751, 2.0
      %v1880 = vmul.f32 %v1752, 2.0
      %v1881 = vmul.f32 %v1753, 2.0
      %v1882 = vmul.f32 %v1754, 2.0
      %v1883 = vmul.f32 %v1755, 2.0
      %v1884 = vmul.f32 %v1756, 2.0
      %v1885 = vmul.f32 %v1757, 2.0
      %v1886 = vmul.f32 %v1758, 2.0
      %v1887 = vmul.f32 %v1759, 2.0
      %v1888 = vmul.f32 %v1760, 2.0
      %v1889 = vmul.f32 %v1761, 2.0
      %v1890 = vmul.f32 %v1762, 2.0
      %v1891 = vmul.f32 %v1763, 2.0
      %v1892 = vmul.f32 %v1764, 2.0
      %v1893 = vmul.f32 %v1765, 2.0
      %v1894 = vmul.f32 %v1766, 2.0
      %v1895 = vmul.f32 %v1767, 2.0
      %v1896 = vmul.f32 %v1768, 2.0
      %v1897 = vmul.f32 %v1769, 2.0
      %v1898 = vmul.f32 %v1770, 2.0
      %v1899 = vmul.f32 %v1771, 2.0
      %v1900 = vmul.f32 %v1772, 2.0
      %v1901 = vmul.f32 %v1773, 2.0
      %v1902 = vsub.f32 1.0, %v1774
      %v1903 = vsub.f32 1.0, %v1775
      %v1904 = vsub.f32 1.0, %v1776
      %v1905 = vsub.f32 1.0, %v1777
      %v1906 = vsub.f32 1.0, %v1778
      %v1907 = vsub.f32 1.0, %v1779
      %v1908 = vsub.f32 1.0, %v1780
      %v1909 = vsub.f32 1.0, %v1781
      %v1910 = vsub.f32 1.0, %v1782
      %v1911 = vsub.f32 1.0, %v1783
      %v1912 = vsub.f32 1.0, %v1784
      %v1913 = vsub.f32 1.0, %v1785
      %v1914 = vsub.f32 1.0, %v1786
      %v1915 = vsub.f32 1.0, %v1787
      %v1916 = vsub.f32 1.0, %v1788
      %v1917 = vsub.f32 1.0, %v1789
      %v1918 = vsub.f32 1.0, %v1790
      %v1919 = vsub.f32 1.0, %v1791
      %v1920 = vsub.f32 1.0, %v1792
      %v1921 = vsub.f32 1.0, %v1793
      %v1922 = vsub.f32 1.0, %v1794
      %v1923 = vsub.f32 1.0, %v1795
      %v1924 = vsub.f32 1.0, %v1796
      %v1925 = vsub.f32 1.0, %v1797
      %v1926 = vsub.f32 1.0, %v1798
      %v1927 = vsub.f32 1.0, %v1799
      %v1928 = vsub.f32 1.0, %v1800
      %v1929 = vsub.f32 1.0, %v1801
      %v1930 = vsub.f32 1.0, %v1802
      %v1931 = vsub.f32 1.0, %v1803
      %v1932 = vsub.f32 1.0, %v1804
      %v1933 = vsub.f32 1.0, %v1805
      %v1934 = vsub.f32 1.0, %v1806
      %v1935 = vsub.f32 1.0, %v1807
      %v1936 = vsub.f32 1.0, %v1808
      %v1937 = vsub.f32 1.0, %v1809
      %v1938 = vsub.f32 1.0, %v1810
      %v1939 = vsub.f32 1.0, %v1811
      %v1940 = vsub.f32 1.0, %v1812
      %v1941 = vsub.f32 1.0, %v1813
      %v1942 = vsub.f32 1.0, %v1814
      %v1943 = vsub.f32 1.0, %v1815
      %v1944 = vsub.f32 1.0, %v1816
      %v1945 = vsub.f32 1.0, %v1817
      %v1946 = vsub.f32 1.0, %v1818
      %v1947 = vsub.f32 1.0, %v1819
      %v1948 = vsub.f32 1.0, %v1820
      %v1949 = vsub.f32 1.0, %v1821
      %v1950 = vsub.f32 1.0, %v1822
      %v1951 = vsub.f32 1.0, %v1823
      %v1952 = vsub.f32 1.0, %v1824
      %v1953 = vsub.f32 1.0, %v1825
      %v1954 = vsub.f32 1.0, %v1826
      %v1955 = vsub.f32 1.0, %v1827
      %v1956 = vsub.f32 1.0, %v1828
      %v1957 = vsub.f32 1.0, %v1829
      %v1958 = vsub.f32 1.0, %v1830
      %v1959 = vsub.f32 1.0, %v1831
      %v1960 = vsub.f32 1.0, %v1832
      %v1961 = vsub.f32 1.0, %v1833
      %v1962 = vsub.f32 1.0, %v1834
      %v1963 = vsub.f32 1.0, %v1835
      %v1964 = vsub.f32 1.0, %v1836
      %v1965 = vsub.f32 1.0, %v1837
      %v1966 = vsub.f32 1.0, %v1838
      %v1967 = vsub.f32 1.0, %v1839
      %v1968 = vsub.f32 1.0, %v1840
      %v1969 = vsub.f32 1.0, %v1841
      %v1970 = vsub.f32 1.0, %v1842
      %v1971 = vsub.f32 1.0, %v1843
      %v1972 = vsub.f32 1.0, %v1844
      %v1973 = vsub.f32 1.0, %v1845
      %v1974 = vsub.f32 1.0, %v1846
      %v1975 = vsub.f32 1.0, %v1847
      %v1976 = vsub.f32 1.0, %v1848
      %v1977 = vsub.f32 1.0, %v1849
      %v1978 = vsub.f32 1.0, %v1850
      %v1979 = vsub.f32 1.0, %v1851
      %v1980 = vsub.f32 1.0, %v1852
      %v1981 = vsub.f32 1.0, %v1853
      %v1982 = vsub.f32 1.0, %v1854
      %v1983 = vsub.f32 1.0, %v1855
      %v1984 = vsub.f32 1.0, %v1856
      %v1985 = vsub.f32 1.0, %v1857
      %v1986 = vsub.f32 1.0, %v1858
      %v1987 = vsub.f32 1.0, %v1859
      %v1988 = vsub.f32 1.0, %v1860
      %v1989 = vsub.f32 1.0, %v1861
      %v1990 = vsub.f32 1.0, %v1862
      %v1991 = vsub.f32 1.0, %v1863
      %v1992 = vsub.f32 1.0, %v1864
      %v1993 = vsub.f32 1.0, %v1865
      %v1994 = vsub.f32 1.0, %v1866
      %v1995 = vsub.f32 1.0, %v1867
      %v1996 = vsub.f32 1.0, %v1868
      %v1997 = vsub.f32 1.0, %v1869
      %v1998 = vsub.f32 1.0, %v1870
      %v1999 = vsub.f32 1.0, %v1871
      %v2000 = vsub.f32 1.0, %v1872
      %v2001 = vsub.f32 1.0, %v1873
      %v2002 = vsub.f32 1.0, %v1874
      %v2003 = vsub.f32 1.0, %v1875
      %v2004 = vsub.f32 1.0, %v1876
      %v2005 = vsub.f32 1.0, %v1877
      %v2006 = vsub.f32 1.0, %v1878
      %v2007 = vsub.f32 1.0, %v1879
      %v2008 = vsub.f32 1.0, %v1880
      %v2009 = vsub.f32 1.0, %v1881
      %v2010 = vsub.f32 1.0, %v1882
      %v2011 = vsub.f32 1.0, %v1883
      %v2012 = vsub.f32 1.0, %v1884
      %v2013 = vsub.f32 1.0, %v1885
      %v2014 = vsub.f32 1.0, %v1886
      %v2015 = vsub.f32 1.0, %v1887
      %v2016 = vsub.f32 1.0, %v1888
      %v2017 = vsub.f32 1.0, %v1889
      %v2018 = vsub.f32 1.0, %v1890
      %v2019 = vsub.f32 1.0, %v1891
      %v2020 = vsub.f32 1.0, %v1892
      %v2021 = vsub.f32 1.0, %v1893
      %v2022 = vsub.f32 1.0, %v1894
      %v2023 = vsub.f32 1.0, %v1895
      %v2024 = vsub.f32 1.0, %v1896
      %v2025 = vsub.f32 1.0, %v1897
      %v2026 = vsub.f32 1.0, %v1898
      %v2027 = vsub.f32 1.0, %v1899
      %v2028 = vsub.f32 1.0, %v1900
      %v2029 = vsub.f32 1.0, %v1901
      %v2030 = vmul.f32 %v655, %v1902
      %v2031 = vmul.f32 %v657, %v1903
      %v2032 = vmul.f32 %v848, %v1904
      %v2033 = vmul.f32 %v850, %v1905
      %v2034 = vmul.f32 %v659, %v1906
      %v2035 = vmul.f32 %v661, %v1907
      %v2036 = vmul.f32 %v852, %v1908
      %v2037 = vmul.f32 %v854, %v1909
      %v2038 = vmul.f32 %v665, %v1910
      %v2039 = vmul.f32 %v667, %v1911
      %v2040 = vmul.f32 %v858, %v1912
      %v2041 = vmul.f32 %v860, %v1913
      %v2042 = vmul.f32 %v669, %v1914
      %v2043 = vmul.f32 %v671, %v1915
      %v2044 = vmul.f32 %v862, %v1916
      %v2045 = vmul.f32 %v864, %v1917
      %v2046 = vmul.f32 %v675, %v1918
      %v2047 = vmul.f32 %v677, %v1919
      %v2048 = vmul.f32 %v868, %v1920
      %v2049 = vmul.f32 %v870, %v1921
      %v2050 = vmul.f32 %v679, %v1922
      %v2051 = vmul.f32 %v681, %v1923
      %v2052 = vmul.f32 %v872, %v1924
      %v2053 = vmul.f32 %v874, %v1925
      %v2054 = vmul.f32 %v685, %v1926
      %v2055 = vmul.f32 %v687, %v1927
      %v2056 = vmul.f32 %v878, %v1928
      %v2057 = vmul.f32 %v880, %v1929
      %v2058 = vmul.f32 %v689, %v1930
      %v2059 = vmul.f32 %v691, %v1931
      %v2060 = vmul.f32 %v882, %v1932
      %v2061 = vmul.f32 %v884, %v1933
      %v2062 = vmul.f32 %v695, %v1934
      %v2063 = vmul.f32 %v697, %v1935
      %v2064 = vmul.f32 %v888, %v1936
      %v2065 = vmul.f32 %v890, %v1937
      %v2066 = vmul.f32 %v699, %v1938
      %v2067 = vmul.f32 %v701, %v1939
      %v2068 = vmul.f32 %v892, %v1940
      %v2069 = vmul.f32 %v894, %v1941
      %v2070 = vmul.f32 %v705, %v1942
      %v2071 = vmul.f32 %v707, %v1943
      %v2072 = vmul.f32 %v898, %v1944
      %v2073 = vmul.f32 %v900, %v1945
      %v2074 = vmul.f32 %v709, %v1946
      %v2075 = vmul.f32 %v711, %v1947
      %v2076 = vmul.f32 %v902, %v1948
      %v2077 = vmul.f32 %v904, %v1949
      %v2078 = vmul.f32 %v715, %v1950
      %v2079 = vmul.f32 %v717, %v1951
      %v2080 = vmul.f32 %v908, %v1952
      %v2081 = vmul.f32 %v910, %v1953
      %v2082 = vmul.f32 %v719, %v1954
      %v2083 = vmul.f32 %v721, %v1955
      %v2084 = vmul.f32 %v912, %v1956
      %v2085 = vmul.f32 %v914, %v1957
      %v2086 = vmul.f32 %v725, %v1958
      %v2087 = vmul.f32 %v727, %v1959
      %v2088 = vmul.f32 %v918, %v1960
      %v2089 = vmul.f32 %v920, %v1961
      %v2090 = vmul.f32 %v729, %v1962
      %v2091 = vmul.f32 %v731, %v1963
      %v2092 = vmul.f32 %v922, %v1964
      %v2093 = vmul.f32 %v924, %v1965
      %v2094 = vmul.f32 %v735, %v1966
      %v2095 = vmul.f32 %v737, %v1967
      %v2096 = vmul.f32 %v928, %v1968
      %v2097 = vmul.f32 %v930, %v1969
      %v2098 = vmul.f32 %v739, %v1970
      %v2099 = vmul.f32 %v741, %v1971
      %v2100 = vmul.f32 %v932, %v1972
      %v2101 = vmul.f32 %v934, %v1973
      %v2102 = vmul.f32 %v745, %v1974
      %v2103 = vmul.f32 %v747, %v1975
      %v2104 = vmul.f32 %v938, %v1976
      %v2105 = vmul.f32 %v940, %v1977
      %v2106 = vmul.f32 %v749, %v1978
      %v2107 = vmul.f32 %v751, %v1979
      %v2108 = vmul.f32 %v942, %v1980
      %v2109 = vmul.f32 %v944, %v1981
      %v2110 = vmul.f32 %v755, %v1982
      %v2111 = vmul.f32 %v757, %v1983
      %v2112 = vmul.f32 %v948, %v1984
      %v2113 = vmul.f32 %v950, %v1985
      %v2114 = vmul.f32 %v759, %v1986
      %v2115 = vmul.f32 %v761, %v1987
      %v2116 = vmul.f32 %v952, %v1988
      %v2117 = vmul.f32 %v954, %v1989
      %v2118 = vmul.f32 %v765, %v1990
      %v2119 = vmul.f32 %v767, %v1991
      %v2120 = vmul.f32 %v958, %v1992
      %v2121 = vmul.f32 %v960, %v1993
      %v2122 = vmul.f32 %v769, %v1994
      %v2123 = vmul.f32 %v771, %v1995
      %v2124 = vmul.f32 %v962, %v1996
      %v2125 = vmul.f32 %v964, %v1997
      %v2126 = vmul.f32 %v775, %v1998
      %v2127 = vmul.f32 %v777, %v1999
      %v2128 = vmul.f32 %v968, %v2000
      %v2129 = vmul.f32 %v970, %v2001
      %v2130 = vmul.f32 %v779, %v2002
      %v2131 = vmul.f32 %v781, %v2003
      %v2132 = vmul.f32 %v972, %v2004
      %v2133 = vmul.f32 %v974, %v2005
      %v2134 = vmul.f32 %v785, %v2006
      %v2135 = vmul.f32 %v787, %v2007
      %v2136 = vmul.f32 %v978, %v2008
      %v2137 = vmul.f32 %v980, %v2009
      %v2138 = vmul.f32 %v789, %v2010
      %v2139 = vmul.f32 %v791, %v2011
      %v2140 = vmul.f32 %v982, %v2012
      %v2141 = vmul.f32 %v984, %v2013
      %v2142 = vmul.f32 %v795, %v2014
      %v2143 = vmul.f32 %v797, %v2015
      %v2144 = vmul.f32 %v988, %v2016
      %v2145 = vmul.f32 %v990, %v2017
      %v2146 = vmul.f32 %v799, %v2018
      %v2147 = vmul.f32 %v801, %v2019
      %v2148 = vmul.f32 %v992, %v2020
      %v2149 = vmul.f32 %v994, %v2021
      %v2150 = vmul.f32 %v805, %v2022
      %v2151 = vmul.f32 %v807, %v2023
      %v2152 = vmul.f32 %v998, %v2024
      %v2153 = vmul.f32 %v1000, %v2025
      %v2154 = vmul.f32 %v809, %v2026
      %v2155 = vmul.f32 %v811, %v2027
      %v2156 = vmul.f32 %v1002, %v2028
      %v2157 = vmul.f32 %v1004, %v2029
      %v2158 = vld [vmem:[%s3] sm:$0xff]
      %v2159 = vld [vmem:[%s3 + $0x8] sm:$0xff]
      %v2160 = vld [vmem:[%s3 + $0x10] sm:$0xff]
      %v2161 = vld [vmem:[%s3 + $0x18] sm:$0xff]
      %v2162 = vld [vmem:[%s3 + $0x20] sm:$0xff]
      %v2163 = vld [vmem:[%s3 + $0x28] sm:$0xff]
      %v2164 = vld [vmem:[%s3 + $0x30] sm:$0xff]
      %v2165 = vld [vmem:[%s3 + $0x38] sm:$0xff]
      %v2166 = vld [vmem:[%s3 + $0x40] sm:$0xff]
      %v2167 = vld [vmem:[%s3 + $0x48] sm:$0xff]
      %v2168 = vld [vmem:[%s3 + $0x50] sm:$0xff]
      %v2169 = vld [vmem:[%s3 + $0x58] sm:$0xff]
      %v2170 = vld [vmem:[%s3 + $0x60] sm:$0xff]
      %v2171 = vld [vmem:[%s3 + $0x68] sm:$0xff]
      %v2172 = vld [vmem:[%s3 + $0x70] sm:$0xff]
      %v2173 = vld [vmem:[%s3 + $0x78] sm:$0xff]
      %v2174 = vld [vmem:[%s4] sm:$0xf]
      %v2176 = vlaneseq
      %v2177 = vshrl.u32 %v2176, 7
      %v2178 = vsub.s32 0, %v2177
      %v2179 = vrot.slane %v2174, %v2178
      %v2180 = vlaneseq
      %v2181 = vshrl.u32 %v2180, 7
      %v2182 = vsub.s32 1, %v2181
      %v2183 = vrot.slane %v2174, %v2182
      %v2184 = vlaneseq
      %v2185 = vshrl.u32 %v2184, 7
      %v2186 = vsub.s32 2, %v2185
      %v2187 = vrot.slane %v2174, %v2186
      %v2188 = vlaneseq
      %v2189 = vshrl.u32 %v2188, 7
      %v2190 = vsub.s32 3, %v2189
      %v2191 = vrot.slane %v2174, %v2190
      %v2212 = vunpack.c.l.b16 %v2158
      %v2213 = vunpack.c.h.b16 %v2158
      %v2214 = vunpack.c.l.b16 %v2159
      %v2215 = vunpack.c.h.b16 %v2159
      %v2216 = vunpack.c.l.b16 %v2160
      %v2217 = vunpack.c.h.b16 %v2160
      %v2218 = vunpack.c.l.b16 %v2161
      %v2219 = vunpack.c.h.b16 %v2161
      %v2220 = vunpack.c.l.b16 %v2162
      %v2221 = vunpack.c.h.b16 %v2162
      %v2222 = vunpack.c.l.b16 %v2163
      %v2223 = vunpack.c.h.b16 %v2163
      %v2224 = vunpack.c.l.b16 %v2164
      %v2225 = vunpack.c.h.b16 %v2164
      %v2226 = vunpack.c.l.b16 %v2165
      %v2227 = vunpack.c.h.b16 %v2165
      %v2228 = vunpack.c.l.b16 %v2166
      %v2229 = vunpack.c.h.b16 %v2166
      %v2230 = vunpack.c.l.b16 %v2167
      %v2231 = vunpack.c.h.b16 %v2167
      %v2232 = vunpack.c.l.b16 %v2168
      %v2233 = vunpack.c.h.b16 %v2168
      %v2234 = vunpack.c.l.b16 %v2169
      %v2235 = vunpack.c.h.b16 %v2169
      %v2236 = vunpack.c.l.b16 %v2170
      %v2237 = vunpack.c.h.b16 %v2170
      %v2238 = vunpack.c.l.b16 %v2171
      %v2239 = vunpack.c.h.b16 %v2171
      %v2240 = vunpack.c.l.b16 %v2172
      %v2241 = vunpack.c.h.b16 %v2172
      %v2242 = vunpack.c.l.b16 %v2173
      %v2243 = vunpack.c.h.b16 %v2173
      %v2244 = vpack.c.b16 %v2216, %v2212
      %v2245 = vpack.c.b16 %v2217, %v2213
      %v2246 = vpack.c.b16 %v2218, %v2214
      %v2247 = vpack.c.b16 %v2219, %v2215
      %v2248 = vpack.c.b16 %v2224, %v2220
      %v2249 = vpack.c.b16 %v2225, %v2221
      %v2250 = vpack.c.b16 %v2226, %v2222
      %v2251 = vpack.c.b16 %v2227, %v2223
      %v2252 = vpack.c.b16 %v2232, %v2228
      %v2253 = vpack.c.b16 %v2233, %v2229
      %v2254 = vpack.c.b16 %v2234, %v2230
      %v2255 = vpack.c.b16 %v2235, %v2231
      %v2256 = vpack.c.b16 %v2240, %v2236
      %v2257 = vpack.c.b16 %v2241, %v2237
      %v2258 = vpack.c.b16 %v2242, %v2238
      %v2259 = vpack.c.b16 %v2243, %v2239
      %2276 = vmatprep.subr.bf16.mxu0 %v2245
      %2277 = vmatpush1.bf16.msra.mxu0 %v2244
      %2278 = vmatprep.subr.bf16.mxu0 %v2249
      %2279 = vmatpush1.bf16.msra.mxu0 %v2248
      %2280 = vmatprep.subr.bf16.mxu0 %v2253
      %2281 = vmatpush1.bf16.msra.mxu0 %v2252
      %2282 = vmatprep.subr.bf16.mxu0 %v2257
      %2283 = vmatpush1.bf16.msra.mxu0 %v2256
      %2284 = vmatprep.subr.bf16.mxu0 0
      %2285 = vmatpush1.bf16.msra.mxu0 0
      %2286 = vmatprep.subr.bf16.mxu0 0
      %2287 = vmatpush1.bf16.msra.mxu0 0
      %2288 = vmatprep.subr.bf16.mxu0 0
      %2289 = vmatpush1.bf16.msra.mxu0 0
      %2290 = vmatprep.subr.bf16.mxu0 0
      %2291 = vmatpush1.bf16.msra.mxu0 0
      %2292 = vmatprep.subr.bf16.mxu0 0
      %2293 = vmatpush1.bf16.msra.mxu0 0
      %2294 = vmatprep.subr.bf16.mxu0 0
      %2295 = vmatpush1.bf16.msra.mxu0 0
      %2296 = vmatprep.subr.bf16.mxu0 0
      %2297 = vmatpush1.bf16.msra.mxu0 0
      %2298 = vmatprep.subr.bf16.mxu0 0
      %2299 = vmatpush1.bf16.msra.mxu0 0
      %2300 = vmatprep.subr.bf16.mxu0 0
      %2301 = vmatpush1.bf16.msra.mxu0 0
      %2302 = vmatprep.subr.bf16.mxu0 0
      %2303 = vmatpush1.bf16.msra.mxu0 0
      %2304 = vmatprep.subr.bf16.mxu0 0
      %2305 = vmatpush1.bf16.msra.mxu0 0
      %2306 = vmatprep.subr.bf16.mxu0 0
      %2307 = vmatpush1.bf16.msra.mxu0 0
      %2308 = vmatprep.mubr.bf16.mxu0 0
      %2309 = vmatmul.mubr.bf16.gmra.mrb[0].mxu0 %v573
      %v2310 = vpop.f32.mrb[0].mxu0
      %v2311 = vadd.f32 %v2179, %v2310
      %v2312 = vpop.f32.mrb[0].mxu0
      %v2313 = vadd.f32 %v2183, %v2312
      %v2314 = vpop.f32.mrb[0].mxu0
      %v2315 = vadd.f32 %v2179, %v2314
      %v2316 = vpop.f32.mrb[0].mxu0
      %v2317 = vadd.f32 %v2183, %v2316
      %2318 = vmatprep.mubr.bf16.mxu0 0
      %2319 = vmatmul.mubr.bf16.gmra.mrb[0].mxu0 %v576
      %v2320 = vpop.f32.mrb[0].mxu0
      %v2321 = vadd.f32 %v2179, %v2320
      %v2322 = vpop.f32.mrb[0].mxu0
      %v2323 = vadd.f32 %v2183, %v2322
      %v2324 = vpop.f32.mrb[0].mxu0
      %v2325 = vadd.f32 %v2179, %v2324
      %v2326 = vpop.f32.mrb[0].mxu0
      %v2327 = vadd.f32 %v2183, %v2326
      %2328 = vmatprep.mubr.bf16.mxu0 0
      %2329 = vmatmul.mubr.bf16.gmra.mrb[0].mxu0 %v579
      %v2330 = vpop.f32.mrb[0].mxu0
      %v2331 = vadd.f32 %v2179, %v2330
      %v2332 = vpop.f32.mrb[0].mxu0
      %v2333 = vadd.f32 %v2183, %v2332
      %v2334 = vpop.f32.mrb[0].mxu0
      %v2335 = vadd.f32 %v2179, %v2334
      %v2336 = vpop.f32.mrb[0].mxu0
      %v2337 = vadd.f32 %v2183, %v2336
      %2338 = vmatprep.mubr.bf16.mxu0 0
      %2339 = vmatmul.mubr.bf16.gmra.mrb[0].mxu0 %v582
      %v2340 = vpop.f32.mrb[0].mxu0
      %v2341 = vadd.f32 %v2179, %v2340
      %v2342 = vpop.f32.mrb[0].mxu0
      %v2343 = vadd.f32 %v2183, %v2342
      %v2344 = vpop.f32.mrb[0].mxu0
      %v2345 = vadd.f32 %v2179, %v2344
      %v2346 = vpop.f32.mrb[0].mxu0
      %v2347 = vadd.f32 %v2183, %v2346
      %2348 = vmatprep.mubr.bf16.mxu0 0
      %2349 = vmatmul.mubr.bf16.gmra.mrb[0].mxu0 %v585
      %v2350 = vpop.f32.mrb[0].mxu0
      %v2351 = vadd.f32 %v2179, %v2350
      %v2352 = vpop.f32.mrb[0].mxu0
      %v2353 = vadd.f32 %v2183, %v2352
      %v2354 = vpop.f32.mrb[0].mxu0
      %v2355 = vadd.f32 %v2179, %v2354
      %v2356 = vpop.f32.mrb[0].mxu0
      %v2357 = vadd.f32 %v2183, %v2356
      %2358 = vmatprep.mubr.bf16.mxu0 0
      %2359 = vmatmul.mubr.bf16.gmra.mrb[0].mxu0 %v588
      %v2360 = vpop.f32.mrb[0].mxu0
      %v2361 = vadd.f32 %v2179, %v2360
      %v2362 = vpop.f32.mrb[0].mxu0
      %v2363 = vadd.f32 %v2183, %v2362
      %v2364 = vpop.f32.mrb[0].mxu0
      %v2365 = vadd.f32 %v2179, %v2364
      %v2366 = vpop.f32.mrb[0].mxu0
      %v2367 = vadd.f32 %v2183, %v2366
      %2368 = vmatprep.mubr.bf16.mxu0 0
      %2369 = vmatmul.mubr.bf16.gmra.mrb[0].mxu0 %v591
      %v2370 = vpop.f32.mrb[0].mxu0
      %v2371 = vadd.f32 %v2179, %v2370
      %v2372 = vpop.f32.mrb[0].mxu0
      %v2373 = vadd.f32 %v2183, %v2372
      %v2374 = vpop.f32.mrb[0].mxu0
      %v2375 = vadd.f32 %v2179, %v2374
      %v2376 = vpop.f32.mrb[0].mxu0
      %v2377 = vadd.f32 %v2183, %v2376
      %2378 = vmatprep.mubr.bf16.mxu0 0
      %2379 = vmatmul.mubr.bf16.gmra.mrb[0].mxu0 %v594
      %v2380 = vpop.f32.mrb[0].mxu0
      %v2381 = vadd.f32 %v2179, %v2380
      %v2382 = vpop.f32.mrb[0].mxu0
      %v2383 = vadd.f32 %v2183, %v2382
      %v2384 = vpop.f32.mrb[0].mxu0
      %v2385 = vadd.f32 %v2179, %v2384
      %v2386 = vpop.f32.mrb[0].mxu0
      %v2387 = vadd.f32 %v2183, %v2386
      %2388 = vmatprep.mubr.bf16.mxu0 0
      %2389 = vmatmul.mubr.bf16.gmra.mrb[0].mxu0 %v597
      %v2390 = vpop.f32.mrb[0].mxu0
      %v2391 = vadd.f32 %v2179, %v2390
      %v2392 = vpop.f32.mrb[0].mxu0
      %v2393 = vadd.f32 %v2183, %v2392
      %v2394 = vpop.f32.mrb[0].mxu0
      %v2395 = vadd.f32 %v2179, %v2394
      %v2396 = vpop.f32.mrb[0].mxu0
      %v2397 = vadd.f32 %v2183, %v2396
      %2398 = vmatprep.mubr.bf16.mxu0 0
      %2399 = vmatmul.mubr.bf16.gmra.mrb[0].mxu0 %v600
      %v2400 = vpop.f32.mrb[0].mxu0
      %v2401 = vadd.f32 %v2179, %v2400
      %v2402 = vpop.f32.mrb[0].mxu0
      %v2403 = vadd.f32 %v2183, %v2402
      %v2404 = vpop.f32.mrb[0].mxu0
      %v2405 = vadd.f32 %v2179, %v2404
      %v2406 = vpop.f32.mrb[0].mxu0
      %v2407 = vadd.f32 %v2183, %v2406
      %2408 = vmatprep.mubr.bf16.mxu0 0
      %2409 = vmatmul.mubr.bf16.gmra.mrb[0].mxu0 %v603
      %v2410 = vpop.f32.mrb[0].mxu0
      %v2411 = vadd.f32 %v2179, %v2410
      %v2412 = vpop.f32.mrb[0].mxu0
      %v2413 = vadd.f32 %v2183, %v2412
      %v2414 = vpop.f32.mrb[0].mxu0
      %v2415 = vadd.f32 %v2179, %v2414
      %v2416 = vpop.f32.mrb[0].mxu0
      %v2417 = vadd.f32 %v2183, %v2416
      %2418 = vmatprep.mubr.bf16.mxu0 0
      %2419 = vmatmul.mubr.bf16.gmra.mrb[0].mxu0 %v606
      %v2420 = vpop.f32.mrb[0].mxu0
      %v2421 = vadd.f32 %v2179, %v2420
      %v2422 = vpop.f32.mrb[0].mxu0
      %v2423 = vadd.f32 %v2183, %v2422
      %v2424 = vpop.f32.mrb[0].mxu0
      %v2425 = vadd.f32 %v2179, %v2424
      %v2426 = vpop.f32.mrb[0].mxu0
      %v2427 = vadd.f32 %v2183, %v2426
      %2428 = vmatprep.mubr.bf16.mxu0 0
      %2429 = vmatmul.mubr.bf16.gmra.mrb[0].mxu0 %v609
      %v2430 = vpop.f32.mrb[0].mxu0
      %v2431 = vadd.f32 %v2179, %v2430
      %v2432 = vpop.f32.mrb[0].mxu0
      %v2433 = vadd.f32 %v2183, %v2432
      %v2434 = vpop.f32.mrb[0].mxu0
      %v2435 = vadd.f32 %v2179, %v2434
      %v2436 = vpop.f32.mrb[0].mxu0
      %v2437 = vadd.f32 %v2183, %v2436
      %2438 = vmatprep.mubr.bf16.mxu0 0
      %2439 = vmatmul.mubr.bf16.gmra.mrb[0].mxu0 %v612
      %v2440 = vpop.f32.mrb[0].mxu0
      %v2441 = vadd.f32 %v2179, %v2440
      %v2442 = vpop.f32.mrb[0].mxu0
      %v2443 = vadd.f32 %v2183, %v2442
      %v2444 = vpop.f32.mrb[0].mxu0
      %v2445 = vadd.f32 %v2179, %v2444
      %v2446 = vpop.f32.mrb[0].mxu0
      %v2447 = vadd.f32 %v2183, %v2446
      %2448 = vmatprep.mubr.bf16.mxu0 0
      %2449 = vmatmul.mubr.bf16.gmra.mrb[0].mxu0 %v615
      %v2450 = vpop.f32.mrb[0].mxu0
      %v2451 = vadd.f32 %v2179, %v2450
      %v2452 = vpop.f32.mrb[0].mxu0
      %v2453 = vadd.f32 %v2183, %v2452
      %v2454 = vpop.f32.mrb[0].mxu0
      %v2455 = vadd.f32 %v2179, %v2454
      %v2456 = vpop.f32.mrb[0].mxu0
      %v2457 = vadd.f32 %v2183, %v2456
      %2458 = vmatprep.mubr.bf16.mxu0 0
      %2459 = vmatmul.mubr.bf16.gmra.mrb[0].mxu0 %v618
      %v2460 = vpop.f32.mrb[0].mxu0
      %v2461 = vadd.f32 %v2179, %v2460
      %v2462 = vpop.f32.mrb[0].mxu0
      %v2463 = vadd.f32 %v2183, %v2462
      %v2464 = vpop.f32.mrb[0].mxu0
      %v2465 = vadd.f32 %v2179, %v2464
      %v2466 = vpop.f32.mrb[0].mxu0
      %v2467 = vadd.f32 %v2183, %v2466
      %2468 = vdwg.mxu0
      %2469 = vmatprep.subr.bf16.mxu0 %v2247
      %2470 = vmatpush1.bf16.msra.mxu0 %v2246
      %2471 = vmatprep.subr.bf16.mxu0 %v2251
      %2472 = vmatpush1.bf16.msra.mxu0 %v2250
      %2473 = vmatprep.subr.bf16.mxu0 %v2255
      %2474 = vmatpush1.bf16.msra.mxu0 %v2254
      %2475 = vmatprep.subr.bf16.mxu0 %v2259
      %2476 = vmatpush1.bf16.msra.mxu0 %v2258
      %2477 = vmatprep.subr.bf16.mxu0 0
      %2478 = vmatpush1.bf16.msra.mxu0 0
      %2479 = vmatprep.subr.bf16.mxu0 0
      %2480 = vmatpush1.bf16.msra.mxu0 0
      %2481 = vmatprep.subr.bf16.mxu0 0
      %2482 = vmatpush1.bf16.msra.mxu0 0
      %2483 = vmatprep.subr.bf16.mxu0 0
      %2484 = vmatpush1.bf16.msra.mxu0 0
      %2485 = vmatprep.subr.bf16.mxu0 0
      %2486 = vmatpush1.bf16.msra.mxu0 0
      %2487 = vmatprep.subr.bf16.mxu0 0
      %2488 = vmatpush1.bf16.msra.mxu0 0
      %2489 = vmatprep.subr.bf16.mxu0 0
      %2490 = vmatpush1.bf16.msra.mxu0 0
      %2491 = vmatprep.subr.bf16.mxu0 0
      %2492 = vmatpush1.bf16.msra.mxu0 0
      %2493 = vmatprep.subr.bf16.mxu0 0
      %2494 = vmatpush1.bf16.msra.mxu0 0
      %2495 = vmatprep.subr.bf16.mxu0 0
      %2496 = vmatpush1.bf16.msra.mxu0 0
      %2497 = vmatprep.subr.bf16.mxu0 0
      %2498 = vmatpush1.bf16.msra.mxu0 0
      %2499 = vmatprep.subr.bf16.mxu0 0
      %2500 = vmatpush1.bf16.msra.mxu0 0
      %2501 = vmatprep.mubr.bf16.mxu0 0
      %2502 = vmatmul.mubr.bf16.gmra.mrb[0].mxu0 %v573
      %v2503 = vpop.f32.mrb[0].mxu0
      %v2504 = vadd.f32 %v2187, %v2503
      %v2505 = vpop.f32.mrb[0].mxu0
      %v2506 = vadd.f32 %v2191, %v2505
      %v2507 = vpop.f32.mrb[0].mxu0
      %v2508 = vadd.f32 %v2187, %v2507
      %v2509 = vpop.f32.mrb[0].mxu0
      %v2510 = vadd.f32 %v2191, %v2509
      %2511 = vmatprep.mubr.bf16.mxu0 0
      %2512 = vmatmul.mubr.bf16.gmra.mrb[0].mxu0 %v576
      %v2513 = vpop.f32.mrb[0].mxu0
      %v2514 = vadd.f32 %v2187, %v2513
      %v2515 = vpop.f32.mrb[0].mxu0
      %v2516 = vadd.f32 %v2191, %v2515
      %v2517 = vpop.f32.mrb[0].mxu0
      %v2518 = vadd.f32 %v2187, %v2517
      %v2519 = vpop.f32.mrb[0].mxu0
      %v2520 = vadd.f32 %v2191, %v2519
      %2521 = vmatprep.mubr.bf16.mxu0 0
      %2522 = vmatmul.mubr.bf16.gmra.mrb[0].mxu0 %v579
      %v2523 = vpop.f32.mrb[0].mxu0
      %v2524 = vadd.f32 %v2187, %v2523
      %v2525 = vpop.f32.mrb[0].mxu0
      %v2526 = vadd.f32 %v2191, %v2525
      %v2527 = vpop.f32.mrb[0].mxu0
      %v2528 = vadd.f32 %v2187, %v2527
      %v2529 = vpop.f32.mrb[0].mxu0
      %v2530 = vadd.f32 %v2191, %v2529
      %2531 = vmatprep.mubr.bf16.mxu0 0
      %2532 = vmatmul.mubr.bf16.gmra.mrb[0].mxu0 %v582
      %v2533 = vpop.f32.mrb[0].mxu0
      %v2534 = vadd.f32 %v2187, %v2533
      %v2535 = vpop.f32.mrb[0].mxu0
      %v2536 = vadd.f32 %v2191, %v2535
      %v2537 = vpop.f32.mrb[0].mxu0
      %v2538 = vadd.f32 %v2187, %v2537
      %v2539 = vpop.f32.mrb[0].mxu0
      %v2540 = vadd.f32 %v2191, %v2539
      %2541 = vmatprep.mubr.bf16.mxu0 0
      %2542 = vmatmul.mubr.bf16.gmra.mrb[0].mxu0 %v585
      %v2543 = vpop.f32.mrb[0].mxu0
      %v2544 = vadd.f32 %v2187, %v2543
      %v2545 = vpop.f32.mrb[0].mxu0
      %v2546 = vadd.f32 %v2191, %v2545
      %v2547 = vpop.f32.mrb[0].mxu0
      %v2548 = vadd.f32 %v2187, %v2547
      %v2549 = vpop.f32.mrb[0].mxu0
      %v2550 = vadd.f32 %v2191, %v2549
      %2551 = vmatprep.mubr.bf16.mxu0 0
      %2552 = vmatmul.mubr.bf16.gmra.mrb[0].mxu0 %v588
      %v2553 = vpop.f32.mrb[0].mxu0
      %v2554 = vadd.f32 %v2187, %v2553
      %v2555 = vpop.f32.mrb[0].mxu0
      %v2556 = vadd.f32 %v2191, %v2555
      %v2557 = vpop.f32.mrb[0].mxu0
      %v2558 = vadd.f32 %v2187, %v2557
      %v2559 = vpop.f32.mrb[0].mxu0
      %v2560 = vadd.f32 %v2191, %v2559
      %2561 = vmatprep.mubr.bf16.mxu0 0
      %2562 = vmatmul.mubr.bf16.gmra.mrb[0].mxu0 %v591
      %v2563 = vpop.f32.mrb[0].mxu0
      %v2564 = vadd.f32 %v2187, %v2563
      %v2565 = vpop.f32.mrb[0].mxu0
      %v2566 = vadd.f32 %v2191, %v2565
      %v2567 = vpop.f32.mrb[0].mxu0
      %v2568 = vadd.f32 %v2187, %v2567
      %v2569 = vpop.f32.mrb[0].mxu0
      %v2570 = vadd.f32 %v2191, %v2569
      %2571 = vmatprep.mubr.bf16.mxu0 0
      %2572 = vmatmul.mubr.bf16.gmra.mrb[0].mxu0 %v594
      %v2573 = vpop.f32.mrb[0].mxu0
      %v2574 = vadd.f32 %v2187, %v2573
      %v2575 = vpop.f32.mrb[0].mxu0
      %v2576 = vadd.f32 %v2191, %v2575
      %v2577 = vpop.f32.mrb[0].mxu0
      %v2578 = vadd.f32 %v2187, %v2577
      %v2579 = vpop.f32.mrb[0].mxu0
      %v2580 = vadd.f32 %v2191, %v2579
      %2581 = vmatprep.mubr.bf16.mxu0 0
      %2582 = vmatmul.mubr.bf16.gmra.mrb[0].mxu0 %v597
      %v2583 = vpop.f32.mrb[0].mxu0
      %v2584 = vadd.f32 %v2187, %v2583
      %v2585 = vpop.f32.mrb[0].mxu0
      %v2586 = vadd.f32 %v2191, %v2585
      %v2587 = vpop.f32.mrb[0].mxu0
      %v2588 = vadd.f32 %v2187, %v2587
      %v2589 = vpop.f32.mrb[0].mxu0
      %v2590 = vadd.f32 %v2191, %v2589
      %2591 = vmatprep.mubr.bf16.mxu0 0
      %2592 = vmatmul.mubr.bf16.gmra.mrb[0].mxu0 %v600
      %v2593 = vpop.f32.mrb[0].mxu0
      %v2594 = vadd.f32 %v2187, %v2593
      %v2595 = vpop.f32.mrb[0].mxu0
      %v2596 = vadd.f32 %v2191, %v2595
      %v2597 = vpop.f32.mrb[0].mxu0
      %v2598 = vadd.f32 %v2187, %v2597
      %v2599 = vpop.f32.mrb[0].mxu0
      %v2600 = vadd.f32 %v2191, %v2599
      %2601 = vmatprep.mubr.bf16.mxu0 0
      %2602 = vmatmul.mubr.bf16.gmra.mrb[0].mxu0 %v603
      %v2603 = vpop.f32.mrb[0].mxu0
      %v2604 = vadd.f32 %v2187, %v2603
      %v2605 = vpop.f32.mrb[0].mxu0
      %v2606 = vadd.f32 %v2191, %v2605
      %v2607 = vpop.f32.mrb[0].mxu0
      %v2608 = vadd.f32 %v2187, %v2607
      %v2609 = vpop.f32.mrb[0].mxu0
      %v2610 = vadd.f32 %v2191, %v2609
      %2611 = vmatprep.mubr.bf16.mxu0 0
      %2612 = vmatmul.mubr.bf16.gmra.mrb[0].mxu0 %v606
      %v2613 = vpop.f32.mrb[0].mxu0
      %v2614 = vadd.f32 %v2187, %v2613
      %v2615 = vpop.f32.mrb[0].mxu0
      %v2616 = vadd.f32 %v2191, %v2615
      %v2617 = vpop.f32.mrb[0].mxu0
      %v2618 = vadd.f32 %v2187, %v2617
      %v2619 = vpop.f32.mrb[0].mxu0
      %v2620 = vadd.f32 %v2191, %v2619
      %2621 = vmatprep.mubr.bf16.mxu0 0
      %2622 = vmatmul.mubr.bf16.gmra.mrb[0].mxu0 %v609
      %v2623 = vpop.f32.mrb[0].mxu0
      %v2624 = vadd.f32 %v2187, %v2623
      %v2625 = vpop.f32.mrb[0].mxu0
      %v2626 = vadd.f32 %v2191, %v2625
      %v2627 = vpop.f32.mrb[0].mxu0
      %v2628 = vadd.f32 %v2187, %v2627
      %v2629 = vpop.f32.mrb[0].mxu0
      %v2630 = vadd.f32 %v2191, %v2629
      %2631 = vmatprep.mubr.bf16.mxu0 0
      %2632 = vmatmul.mubr.bf16.gmra.mrb[0].mxu0 %v612
      %v2633 = vpop.f32.mrb[0].mxu0
      %v2634 = vadd.f32 %v2187, %v2633
      %v2635 = vpop.f32.mrb[0].mxu0
      %v2636 = vadd.f32 %v2191, %v2635
      %v2637 = vpop.f32.mrb[0].mxu0
      %v2638 = vadd.f32 %v2187, %v2637
      %v2639 = vpop.f32.mrb[0].mxu0
      %v2640 = vadd.f32 %v2191, %v2639
      %2641 = vmatprep.mubr.bf16.mxu0 0
      %2642 = vmatmul.mubr.bf16.gmra.mrb[0].mxu0 %v615
      %v2643 = vpop.f32.mrb[0].mxu0
      %v2644 = vadd.f32 %v2187, %v2643
      %v2645 = vpop.f32.mrb[0].mxu0
      %v2646 = vadd.f32 %v2191, %v2645
      %v2647 = vpop.f32.mrb[0].mxu0
      %v2648 = vadd.f32 %v2187, %v2647
      %v2649 = vpop.f32.mrb[0].mxu0
      %v2650 = vadd.f32 %v2191, %v2649
      %2651 = vmatprep.mubr.bf16.mxu0 0
      %2652 = vmatmul.mubr.bf16.gmra.mrb[0].mxu0 %v618
      %v2653 = vpop.f32.mrb[0].mxu0
      %v2654 = vadd.f32 %v2187, %v2653
      %v2655 = vpop.f32.mrb[0].mxu0
      %v2656 = vadd.f32 %v2191, %v2655
      %v2657 = vpop.f32.mrb[0].mxu0
      %v2658 = vadd.f32 %v2187, %v2657
      %v2659 = vpop.f32.mrb[0].mxu0
      %v2660 = vadd.f32 %v2191, %v2659
      %2661 = vdwg.mxu0
      %v2662 = vmul.f32 %v2030, %v2311
      %v2663 = vmul.f32 %v2031, %v2313
      %v2664 = vmul.f32 %v2032, %v2504
      %v2665 = vmul.f32 %v2033, %v2506
      %v2666 = vmul.f32 %v2034, %v2315
      %v2667 = vmul.f32 %v2035, %v2317
      %v2668 = vmul.f32 %v2036, %v2508
      %v2669 = vmul.f32 %v2037, %v2510
      %v2670 = vmul.f32 %v2038, %v2321
      %v2671 = vmul.f32 %v2039, %v2323
      %v2672 = vmul.f32 %v2040, %v2514
      %v2673 = vmul.f32 %v2041, %v2516
      %v2674 = vmul.f32 %v2042, %v2325
      %v2675 = vmul.f32 %v2043, %v2327
      %v2676 = vmul.f32 %v2044, %v2518
      %v2677 = vmul.f32 %v2045, %v2520
      %v2678 = vmul.f32 %v2046, %v2331
      %v2679 = vmul.f32 %v2047, %v2333
      %v2680 = vmul.f32 %v2048, %v2524
      %v2681 = vmul.f32 %v2049, %v2526
      %v2682 = vmul.f32 %v2050, %v2335
      %v2683 = vmul.f32 %v2051, %v2337
      %v2684 = vmul.f32 %v2052, %v2528
      %v2685 = vmul.f32 %v2053, %v2530
      %v2686 = vmul.f32 %v2054, %v2341
      %v2687 = vmul.f32 %v2055, %v2343
      %v2688 = vmul.f32 %v2056, %v2534
      %v2689 = vmul.f32 %v2057, %v2536
      %v2690 = vmul.f32 %v2058, %v2345
      %v2691 = vmul.f32 %v2059, %v2347
      %v2692 = vmul.f32 %v2060, %v2538
      %v2693 = vmul.f32 %v2061, %v2540
      %v2694 = vmul.f32 %v2062, %v2351
      %v2695 = vmul.f32 %v2063, %v2353
      %v2696 = vmul.f32 %v2064, %v2544
      %v2697 = vmul.f32 %v2065, %v2546
      %v2698 = vmul.f32 %v2066, %v2355
      %v2699 = vmul.f32 %v2067, %v2357
      %v2700 = vmul.f32 %v2068, %v2548
      %v2701 = vmul.f32 %v2069, %v2550
      %v2702 = vmul.f32 %v2070, %v2361
      %v2703 = vmul.f32 %v2071, %v2363
      %v2704 = vmul.f32 %v2072, %v2554
      %v2705 = vmul.f32 %v2073, %v2556
      %v2706 = vmul.f32 %v2074, %v2365
      %v2707 = vmul.f32 %v2075, %v2367
      %v2708 = vmul.f32 %v2076, %v2558
      %v2709 = vmul.f32 %v2077, %v2560
      %v2710 = vmul.f32 %v2078, %v2371
      %v2711 = vmul.f32 %v2079, %v2373
      %v2712 = vmul.f32 %v2080, %v2564
      %v2713 = vmul.f32 %v2081, %v2566
      %v2714 = vmul.f32 %v2082, %v2375
      %v2715 = vmul.f32 %v2083, %v2377
      %v2716 = vmul.f32 %v2084, %v2568
      %v2717 = vmul.f32 %v2085, %v2570
      %v2718 = vmul.f32 %v2086, %v2381
      %v2719 = vmul.f32 %v2087, %v2383
      %v2720 = vmul.f32 %v2088, %v2574
      %v2721 = vmul.f32 %v2089, %v2576
      %v2722 = vmul.f32 %v2090, %v2385
      %v2723 = vmul.f32 %v2091, %v2387
      %v2724 = vmul.f32 %v2092, %v2578
      %v2725 = vmul.f32 %v2093, %v2580
      %v2726 = vmul.f32 %v2094, %v2391
      %v2727 = vmul.f32 %v2095, %v2393
      %v2728 = vmul.f32 %v2096, %v2584
      %v2729 = vmul.f32 %v2097, %v2586
      %v2730 = vmul.f32 %v2098, %v2395
      %v2731 = vmul.f32 %v2099, %v2397
      %v2732 = vmul.f32 %v2100, %v2588
      %v2733 = vmul.f32 %v2101, %v2590
      %v2734 = vmul.f32 %v2102, %v2401
      %v2735 = vmul.f32 %v2103, %v2403
      %v2736 = vmul.f32 %v2104, %v2594
      %v2737 = vmul.f32 %v2105, %v2596
      %v2738 = vmul.f32 %v2106, %v2405
      %v2739 = vmul.f32 %v2107, %v2407
      %v2740 = vmul.f32 %v2108, %v2598
      %v2741 = vmul.f32 %v2109, %v2600
      %v2742 = vmul.f32 %v2110, %v2411
      %v2743 = vmul.f32 %v2111, %v2413
      %v2744 = vmul.f32 %v2112, %v2604
      %v2745 = vmul.f32 %v2113, %v2606
      %v2746 = vmul.f32 %v2114, %v2415
      %v2747 = vmul.f32 %v2115, %v2417
      %v2748 = vmul.f32 %v2116, %v2608
      %v2749 = vmul.f32 %v2117, %v2610
      %v2750 = vmul.f32 %v2118, %v2421
      %v2751 = vmul.f32 %v2119, %v2423
      %v2752 = vmul.f32 %v2120, %v2614
      %v2753 = vmul.f32 %v2121, %v2616
      %v2754 = vmul.f32 %v2122, %v2425
      %v2755 = vmul.f32 %v2123, %v2427
      %v2756 = vmul.f32 %v2124, %v2618
      %v2757 = vmul.f32 %v2125, %v2620
      %v2758 = vmul.f32 %v2126, %v2431
      %v2759 = vmul.f32 %v2127, %v2433
      %v2760 = vmul.f32 %v2128, %v2624
      %v2761 = vmul.f32 %v2129, %v2626
      %v2762 = vmul.f32 %v2130, %v2435
      %v2763 = vmul.f32 %v2131, %v2437
      %v2764 = vmul.f32 %v2132, %v2628
      %v2765 = vmul.f32 %v2133, %v2630
      %v2766 = vmul.f32 %v2134, %v2441
      %v2767 = vmul.f32 %v2135, %v2443
      %v2768 = vmul.f32 %v2136, %v2634
      %v2769 = vmul.f32 %v2137, %v2636
      %v2770 = vmul.f32 %v2138, %v2445
      %v2771 = vmul.f32 %v2139, %v2447
      %v2772 = vmul.f32 %v2140, %v2638
      %v2773 = vmul.f32 %v2141, %v2640
      %v2774 = vmul.f32 %v2142, %v2451
      %v2775 = vmul.f32 %v2143, %v2453
      %v2776 = vmul.f32 %v2144, %v2644
      %v2777 = vmul.f32 %v2145, %v2646
      %v2778 = vmul.f32 %v2146, %v2455
      %v2779 = vmul.f32 %v2147, %v2457
      %v2780 = vmul.f32 %v2148, %v2648
      %v2781 = vmul.f32 %v2149, %v2650
      %v2782 = vmul.f32 %v2150, %v2461
      %v2783 = vmul.f32 %v2151, %v2463
      %v2784 = vmul.f32 %v2152, %v2654
      %v2785 = vmul.f32 %v2153, %v2656
      %v2786 = vmul.f32 %v2154, %v2465
      %v2787 = vmul.f32 %v2155, %v2467
      %v2788 = vmul.f32 %v2156, %v2658
      %v2789 = vmul.f32 %v2157, %v2660
      %v2790 = vpack.c.bf16 %v2666, %v2662
      %v2791 = vpack.c.bf16 %v2667, %v2663
      %v2792 = vpack.c.bf16 %v2668, %v2664
      %v2793 = vpack.c.bf16 %v2669, %v2665
      %v2794 = vpack.c.bf16 %v2674, %v2670
      %v2795 = vpack.c.bf16 %v2675, %v2671
      %v2796 = vpack.c.bf16 %v2676, %v2672
      %v2797 = vpack.c.bf16 %v2677, %v2673
      %v2798 = vpack.c.bf16 %v2682, %v2678
      %v2799 = vpack.c.bf16 %v2683, %v2679
      %v2800 = vpack.c.bf16 %v2684, %v2680
      %v2801 = vpack.c.bf16 %v2685, %v2681
      %v2802 = vpack.c.bf16 %v2690, %v2686
      %v2803 = vpack.c.bf16 %v2691, %v2687
      %v2804 = vpack.c.bf16 %v2692, %v2688
      %v2805 = vpack.c.bf16 %v2693, %v2689
      %v2806 = vpack.c.bf16 %v2698, %v2694
      %v2807 = vpack.c.bf16 %v2699, %v2695
      %v2808 = vpack.c.bf16 %v2700, %v2696
      %v2809 = vpack.c.bf16 %v2701, %v2697
      %v2810 = vpack.c.bf16 %v2706, %v2702
      %v2811 = vpack.c.bf16 %v2707, %v2703
      %v2812 = vpack.c.bf16 %v2708, %v2704
      %v2813 = vpack.c.bf16 %v2709, %v2705
      %v2814 = vpack.c.bf16 %v2714, %v2710
      %v2815 = vpack.c.bf16 %v2715, %v2711
      %v2816 = vpack.c.bf16 %v2716, %v2712
      %v2817 = vpack.c.bf16 %v2717, %v2713
      %v2818 = vpack.c.bf16 %v2722, %v2718
      %v2819 = vpack.c.bf16 %v2723, %v2719
      %v2820 = vpack.c.bf16 %v2724, %v2720
      %v2821 = vpack.c.bf16 %v2725, %v2721
      %v2822 = vpack.c.bf16 %v2730, %v2726
      %v2823 = vpack.c.bf16 %v2731, %v2727
      %v2824 = vpack.c.bf16 %v2732, %v2728
      %v2825 = vpack.c.bf16 %v2733, %v2729
      %v2826 = vpack.c.bf16 %v2738, %v2734
      %v2827 = vpack.c.bf16 %v2739, %v2735
      %v2828 = vpack.c.bf16 %v2740, %v2736
      %v2829 = vpack.c.bf16 %v2741, %v2737
      %v2830 = vpack.c.bf16 %v2746, %v2742
      %v2831 = vpack.c.bf16 %v2747, %v2743
      %v2832 = vpack.c.bf16 %v2748, %v2744
      %v2833 = vpack.c.bf16 %v2749, %v2745
      %v2834 = vpack.c.bf16 %v2754, %v2750
      %v2835 = vpack.c.bf16 %v2755, %v2751
      %v2836 = vpack.c.bf16 %v2756, %v2752
      %v2837 = vpack.c.bf16 %v2757, %v2753
      %v2838 = vpack.c.bf16 %v2762, %v2758
      %v2839 = vpack.c.bf16 %v2763, %v2759
      %v2840 = vpack.c.bf16 %v2764, %v2760
      %v2841 = vpack.c.bf16 %v2765, %v2761
      %v2842 = vpack.c.bf16 %v2770, %v2766
      %v2843 = vpack.c.bf16 %v2771, %v2767
      %v2844 = vpack.c.bf16 %v2772, %v2768
      %v2845 = vpack.c.bf16 %v2773, %v2769
      %v2846 = vpack.c.bf16 %v2778, %v2774
      %v2847 = vpack.c.bf16 %v2779, %v2775
      %v2848 = vpack.c.bf16 %v2780, %v2776
      %v2849 = vpack.c.bf16 %v2781, %v2777
      %v2850 = vpack.c.bf16 %v2786, %v2782
      %v2851 = vpack.c.bf16 %v2787, %v2783
      %v2852 = vpack.c.bf16 %v2788, %v2784
      %v2853 = vpack.c.bf16 %v2789, %v2785
      %v2854 = vld [vmem:[%s5] sm:$0xf]
      %v2855 = vld [vmem:[%s5 + $0x4] sm:$0xf]
      %v2856 = vld [vmem:[%s5 + $0x8] sm:$0xf]
      %v2857 = vld [vmem:[%s5 + $0xc] sm:$0xf]
      %v2858 = vld [vmem:[%s5 + $0x10] sm:$0xf]
      %v2859 = vld [vmem:[%s5 + $0x14] sm:$0xf]
      %v2860 = vld [vmem:[%s5 + $0x18] sm:$0xf]
      %v2861 = vld [vmem:[%s5 + $0x1c] sm:$0xf]
      %v2862 = vld [vmem:[%s5 + $0x20] sm:$0xf]
      %v2863 = vld [vmem:[%s5 + $0x24] sm:$0xf]
      %v2864 = vld [vmem:[%s5 + $0x28] sm:$0xf]
      %v2865 = vld [vmem:[%s5 + $0x2c] sm:$0xf]
      %v2866 = vld [vmem:[%s5 + $0x30] sm:$0xf]
      %v2867 = vld [vmem:[%s5 + $0x34] sm:$0xf]
      %v2868 = vld [vmem:[%s5 + $0x38] sm:$0xf]
      %v2869 = vld [vmem:[%s5 + $0x3c] sm:$0xf]
      %v2870 = vld [vmem:[%s5 + $0x40] sm:$0xf]
      %v2871 = vld [vmem:[%s5 + $0x44] sm:$0xf]
      %v2872 = vld [vmem:[%s5 + $0x48] sm:$0xf]
      %v2873 = vld [vmem:[%s5 + $0x4c] sm:$0xf]
      %v2874 = vld [vmem:[%s5 + $0x50] sm:$0xf]
      %v2875 = vld [vmem:[%s5 + $0x54] sm:$0xf]
      %v2876 = vld [vmem:[%s5 + $0x58] sm:$0xf]
      %v2877 = vld [vmem:[%s5 + $0x5c] sm:$0xf]
      %v2878 = vld [vmem:[%s5 + $0x60] sm:$0xf]
      %v2879 = vld [vmem:[%s5 + $0x64] sm:$0xf]
      %v2880 = vld [vmem:[%s5 + $0x68] sm:$0xf]
      %v2881 = vld [vmem:[%s5 + $0x6c] sm:$0xf]
      %v2882 = vld [vmem:[%s5 + $0x70] sm:$0xf]
      %v2883 = vld [vmem:[%s5 + $0x74] sm:$0xf]
      %v2884 = vld [vmem:[%s5 + $0x78] sm:$0xf]
      %v2885 = vld [vmem:[%s5 + $0x7c] sm:$0xf]
      %v2886 = vld [vmem:[%s5 + $0x80] sm:$0xf]
      %v2887 = vld [vmem:[%s5 + $0x84] sm:$0xf]
      %v2888 = vld [vmem:[%s5 + $0x88] sm:$0xf]
      %v2889 = vld [vmem:[%s5 + $0x8c] sm:$0xf]
      %v2890 = vld [vmem:[%s5 + $0x90] sm:$0xf]
      %v2891 = vld [vmem:[%s5 + $0x94] sm:$0xf]
      %v2892 = vld [vmem:[%s5 + $0x98] sm:$0xf]
      %v2893 = vld [vmem:[%s5 + $0x9c] sm:$0xf]
      %v2894 = vld [vmem:[%s5 + $0xa0] sm:$0xf]
      %v2895 = vld [vmem:[%s5 + $0xa4] sm:$0xf]
      %v2896 = vld [vmem:[%s5 + $0xa8] sm:$0xf]
      %v2897 = vld [vmem:[%s5 + $0xac] sm:$0xf]
      %v2898 = vld [vmem:[%s5 + $0xb0] sm:$0xf]
      %v2899 = vld [vmem:[%s5 + $0xb4] sm:$0xf]
      %v2900 = vld [vmem:[%s5 + $0xb8] sm:$0xf]
      %v2901 = vld [vmem:[%s5 + $0xbc] sm:$0xf]
      %v2902 = vld [vmem:[%s5 + $0xc0] sm:$0xf]
      %v2903 = vld [vmem:[%s5 + $0xc4] sm:$0xf]
      %v2904 = vld [vmem:[%s5 + $0xc8] sm:$0xf]
      %v2905 = vld [vmem:[%s5 + $0xcc] sm:$0xf]
      %v2906 = vld [vmem:[%s5 + $0xd0] sm:$0xf]
      %v2907 = vld [vmem:[%s5 + $0xd4] sm:$0xf]
      %v2908 = vld [vmem:[%s5 + $0xd8] sm:$0xf]
      %v2909 = vld [vmem:[%s5 + $0xdc] sm:$0xf]
      %v2910 = vld [vmem:[%s5 + $0xe0] sm:$0xf]
      %v2911 = vld [vmem:[%s5 + $0xe4] sm:$0xf]
      %v2912 = vld [vmem:[%s5 + $0xe8] sm:$0xf]
      %v2913 = vld [vmem:[%s5 + $0xec] sm:$0xf]
      %v2914 = vld [vmem:[%s5 + $0xf0] sm:$0xf]
      %v2915 = vld [vmem:[%s5 + $0xf4] sm:$0xf]
      %v2916 = vld [vmem:[%s5 + $0xf8] sm:$0xf]
      %v2917 = vld [vmem:[%s5 + $0xfc] sm:$0xf]
      %v2918 = vld [vmem:[%s328] sm:$0xff]
      %v2919 = vld [vmem:[%s328 + $0x8] sm:$0xff]
      %v2920 = vld [vmem:[%s328 + $0x10] sm:$0xff]
      %v2921 = vld [vmem:[%s328 + $0x18] sm:$0xff]
      %v2922 = vld [vmem:[%s328 + $0x20] sm:$0xff]
      %v2923 = vld [vmem:[%s328 + $0x28] sm:$0xff]
      %v2924 = vld [vmem:[%s328 + $0x30] sm:$0xff]
      %v2925 = vld [vmem:[%s328 + $0x38] sm:$0xff]
      %v2926 = vld [vmem:[%s328 + $0x40] sm:$0xff]
      %v2927 = vld [vmem:[%s328 + $0x48] sm:$0xff]
      %v2928 = vld [vmem:[%s328 + $0x50] sm:$0xff]
      %v2929 = vld [vmem:[%s328 + $0x58] sm:$0xff]
      %v2930 = vld [vmem:[%s328 + $0x60] sm:$0xff]
      %v2931 = vld [vmem:[%s328 + $0x68] sm:$0xff]
      %v2932 = vld [vmem:[%s328 + $0x70] sm:$0xff]
      %v2933 = vld [vmem:[%s328 + $0x78] sm:$0xff]
      %v2934 = vld [vmem:[%s328 + $0x80] sm:$0xff]
      %v2935 = vld [vmem:[%s328 + $0x88] sm:$0xff]
      %v2936 = vld [vmem:[%s328 + $0x90] sm:$0xff]
      %v2937 = vld [vmem:[%s328 + $0x98] sm:$0xff]
      %v2938 = vld [vmem:[%s328 + $0xa0] sm:$0xff]
      %v2939 = vld [vmem:[%s328 + $0xa8] sm:$0xff]
      %v2940 = vld [vmem:[%s328 + $0xb0] sm:$0xff]
      %v2941 = vld [vmem:[%s328 + $0xb8] sm:$0xff]
      %v2942 = vld [vmem:[%s328 + $0xc0] sm:$0xff]
      %v2943 = vld [vmem:[%s328 + $0xc8] sm:$0xff]
      %v2944 = vld [vmem:[%s328 + $0xd0] sm:$0xff]
      %v2945 = vld [vmem:[%s328 + $0xd8] sm:$0xff]
      %v2946 = vld [vmem:[%s328 + $0xe0] sm:$0xff]
      %v2947 = vld [vmem:[%s328 + $0xe8] sm:$0xff]
      %v2948 = vld [vmem:[%s328 + $0xf0] sm:$0xff]
      %v2949 = vld [vmem:[%s328 + $0xf8] sm:$0xff]
      %v3014 = vunpack.c.l.b16 %v2854
      %v3015 = vunpack.c.l.b16 %v2855
      %v3016 = vunpack.c.l.b16 %v2856
      %v3017 = vunpack.c.l.b16 %v2857
      %v3018 = vunpack.c.l.b16 %v2858
      %v3019 = vunpack.c.l.b16 %v2859
      %v3020 = vunpack.c.l.b16 %v2860
      %v3021 = vunpack.c.l.b16 %v2861
      %v3022 = vunpack.c.l.b16 %v2862
      %v3023 = vunpack.c.l.b16 %v2863
      %v3024 = vunpack.c.l.b16 %v2864
      %v3025 = vunpack.c.l.b16 %v2865
      %v3026 = vunpack.c.l.b16 %v2866
      %v3027 = vunpack.c.l.b16 %v2867
      %v3028 = vunpack.c.l.b16 %v2868
      %v3029 = vunpack.c.l.b16 %v2869
      %v3030 = vunpack.c.l.b16 %v2870
      %v3031 = vunpack.c.l.b16 %v2871
      %v3032 = vunpack.c.l.b16 %v2872
      %v3033 = vunpack.c.l.b16 %v2873
      %v3034 = vunpack.c.l.b16 %v2874
      %v3035 = vunpack.c.l.b16 %v2875
      %v3036 = vunpack.c.l.b16 %v2876
      %v3037 = vunpack.c.l.b16 %v2877
      %v3038 = vunpack.c.l.b16 %v2878
      %v3039 = vunpack.c.l.b16 %v2879
      %v3040 = vunpack.c.l.b16 %v2880
      %v3041 = vunpack.c.l.b16 %v2881
      %v3042 = vunpack.c.l.b16 %v2882
      %v3043 = vunpack.c.l.b16 %v2883
      %v3044 = vunpack.c.l.b16 %v2884
      %v3045 = vunpack.c.l.b16 %v2885
      %v3046 = vunpack.c.l.b16 %v2886
      %v3047 = vunpack.c.l.b16 %v2887
      %v3048 = vunpack.c.l.b16 %v2888
      %v3049 = vunpack.c.l.b16 %v2889
      %v3050 = vunpack.c.l.b16 %v2890
      %v3051 = vunpack.c.l.b16 %v2891
      %v3052 = vunpack.c.l.b16 %v2892
      %v3053 = vunpack.c.l.b16 %v2893
      %v3054 = vunpack.c.l.b16 %v2894
      %v3055 = vunpack.c.l.b16 %v2895
      %v3056 = vunpack.c.l.b16 %v2896
      %v3057 = vunpack.c.l.b16 %v2897
      %v3058 = vunpack.c.l.b16 %v2898
      %v3059 = vunpack.c.l.b16 %v2899
      %v3060 = vunpack.c.l.b16 %v2900
      %v3061 = vunpack.c.l.b16 %v2901
      %v3062 = vunpack.c.l.b16 %v2902
      %v3063 = vunpack.c.l.b16 %v2903
      %v3064 = vunpack.c.l.b16 %v2904
      %v3065 = vunpack.c.l.b16 %v2905
      %v3066 = vunpack.c.l.b16 %v2906
      %v3067 = vunpack.c.l.b16 %v2907
      %v3068 = vunpack.c.l.b16 %v2908
      %v3069 = vunpack.c.l.b16 %v2909
      %v3070 = vunpack.c.l.b16 %v2910
      %v3071 = vunpack.c.l.b16 %v2911
      %v3072 = vunpack.c.l.b16 %v2912
      %v3073 = vunpack.c.l.b16 %v2913
      %v3074 = vunpack.c.l.b16 %v2914
      %v3075 = vunpack.c.l.b16 %v2915
      %v3076 = vunpack.c.l.b16 %v2916
      %v3077 = vunpack.c.l.b16 %v2917
      %v3078 = vpack.c.b16 %v3015, %v3014
      %v3079 = vpack.c.b16 %v3017, %v3016
      %v3080 = vpack.c.b16 %v3019, %v3018
      %v3081 = vpack.c.b16 %v3021, %v3020
      %v3082 = vpack.c.b16 %v3023, %v3022
      %v3083 = vpack.c.b16 %v3025, %v3024
      %v3084 = vpack.c.b16 %v3027, %v3026
      %v3085 = vpack.c.b16 %v3029, %v3028
      %v3086 = vpack.c.b16 %v3031, %v3030
      %v3087 = vpack.c.b16 %v3033, %v3032
      %v3088 = vpack.c.b16 %v3035, %v3034
      %v3089 = vpack.c.b16 %v3037, %v3036
      %v3090 = vpack.c.b16 %v3039, %v3038
      %v3091 = vpack.c.b16 %v3041, %v3040
      %v3092 = vpack.c.b16 %v3043, %v3042
      %v3093 = vpack.c.b16 %v3045, %v3044
      %v3094 = vpack.c.b16 %v3047, %v3046
      %v3095 = vpack.c.b16 %v3049, %v3048
      %v3096 = vpack.c.b16 %v3051, %v3050
      %v3097 = vpack.c.b16 %v3053, %v3052
      %v3098 = vpack.c.b16 %v3055, %v3054
      %v3099 = vpack.c.b16 %v3057, %v3056
      %v3100 = vpack.c.b16 %v3059, %v3058
      %v3101 = vpack.c.b16 %v3061, %v3060
      %v3102 = vpack.c.b16 %v3063, %v3062
      %v3103 = vpack.c.b16 %v3065, %v3064
      %v3104 = vpack.c.b16 %v3067, %v3066
      %v3105 = vpack.c.b16 %v3069, %v3068
      %v3106 = vpack.c.b16 %v3071, %v3070
      %v3107 = vpack.c.b16 %v3073, %v3072
      %v3108 = vpack.c.b16 %v3075, %v3074
      %v3109 = vpack.c.b16 %v3077, %v3076
      %3142 = vmatprep.subr.bf16.mxu0 0
      %3143 = vmatpush1.bf16.msra.mxu0 %v3078
      %3144 = vmatprep.subr.bf16.mxu0 0
      %3145 = vmatpush1.bf16.msra.mxu0 %v3079
      %3146 = vmatprep.subr.bf16.mxu0 0
      %3147 = vmatpush1.bf16.msra.mxu0 %v3080
      %3148 = vmatprep.subr.bf16.mxu0 0
      %3149 = vmatpush1.bf16.msra.mxu0 %v3081
      %3150 = vmatprep.subr.bf16.mxu0 0
      %3151 = vmatpush1.bf16.msra.mxu0 %v3082
      %3152 = vmatprep.subr.bf16.mxu0 0
      %3153 = vmatpush1.bf16.msra.mxu0 %v3083
      %3154 = vmatprep.subr.bf16.mxu0 0
      %3155 = vmatpush1.bf16.msra.mxu0 %v3084
      %3156 = vmatprep.subr.bf16.mxu0 0
      %3157 = vmatpush1.bf16.msra.mxu0 %v3085
      %3158 = vmatprep.subr.bf16.mxu0 0
      %3159 = vmatpush1.bf16.msra.mxu0 %v3086
      %3160 = vmatprep.subr.bf16.mxu0 0
      %3161 = vmatpush1.bf16.msra.mxu0 %v3087
      %3162 = vmatprep.subr.bf16.mxu0 0
      %3163 = vmatpush1.bf16.msra.mxu0 %v3088
      %3164 = vmatprep.subr.bf16.mxu0 0
      %3165 = vmatpush1.bf16.msra.mxu0 %v3089
      %3166 = vmatprep.subr.bf16.mxu0 0
      %3167 = vmatpush1.bf16.msra.mxu0 %v3090
      %3168 = vmatprep.subr.bf16.mxu0 0
      %3169 = vmatpush1.bf16.msra.mxu0 %v3091
      %3170 = vmatprep.subr.bf16.mxu0 0
      %3171 = vmatpush1.bf16.msra.mxu0 %v3092
      %3172 = vmatprep.subr.bf16.mxu0 0
      %3173 = vmatpush1.bf16.msra.mxu0 %v3093
      %3174 = vmatprep.mubr.bf16.mxu0 %v2791
      %3175 = vmatmul.mubr.bf16.gmra.mrb[0].mxu0 %v2790
      %v3176 = vpop.f32.mrb[0].mxu0
      %v3177 = vadd.f32 %v2918, %v3176
      %v3178 = vpop.f32.mrb[0].mxu0
      %v3179 = vpop.f32.mrb[0].mxu0
      %v3180 = vadd.f32 %v2919, %v3179
      %v3181 = vpop.f32.mrb[0].mxu0
      %3182 = vmatprep.mubr.bf16.mxu0 %v2795
      %3183 = vmatmul.mubr.bf16.gmra.mrb[0].mxu0 %v2794
      %v3184 = vpop.f32.mrb[0].mxu0
      %v3185 = vadd.f32 %v2920, %v3184
      %v3186 = vpop.f32.mrb[0].mxu0
      %v3187 = vpop.f32.mrb[0].mxu0
      %v3188 = vadd.f32 %v2921, %v3187
      %v3189 = vpop.f32.mrb[0].mxu0
      %3190 = vmatprep.mubr.bf16.mxu0 %v2799
      %3191 = vmatmul.mubr.bf16.gmra.mrb[0].mxu0 %v2798
      %v3192 = vpop.f32.mrb[0].mxu0
      %v3193 = vadd.f32 %v2922, %v3192
      %v3194 = vpop.f32.mrb[0].mxu0
      %v3195 = vpop.f32.mrb[0].mxu0
      %v3196 = vadd.f32 %v2923, %v3195
      %v3197 = vpop.f32.mrb[0].mxu0
      %3198 = vmatprep.mubr.bf16.mxu0 %v2803
      %3199 = vmatmul.mubr.bf16.gmra.mrb[0].mxu0 %v2802
      %v3200 = vpop.f32.mrb[0].mxu0
      %v3201 = vadd.f32 %v2924, %v3200
      %v3202 = vpop.f32.mrb[0].mxu0
      %v3203 = vpop.f32.mrb[0].mxu0
      %v3204 = vadd.f32 %v2925, %v3203
      %v3205 = vpop.f32.mrb[0].mxu0
      %3206 = vmatprep.mubr.bf16.mxu0 %v2807
      %3207 = vmatmul.mubr.bf16.gmra.mrb[0].mxu0 %v2806
      %v3208 = vpop.f32.mrb[0].mxu0
      %v3209 = vadd.f32 %v2926, %v3208
      %v3210 = vpop.f32.mrb[0].mxu0
      %v3211 = vpop.f32.mrb[0].mxu0
      %v3212 = vadd.f32 %v2927, %v3211
      %v3213 = vpop.f32.mrb[0].mxu0
      %3214 = vmatprep.mubr.bf16.mxu0 %v2811
      %3215 = vmatmul.mubr.bf16.gmra.mrb[0].mxu0 %v2810
      %v3216 = vpop.f32.mrb[0].mxu0
      %v3217 = vadd.f32 %v2928, %v3216
      %v3218 = vpop.f32.mrb[0].mxu0
      %v3219 = vpop.f32.mrb[0].mxu0
      %v3220 = vadd.f32 %v2929, %v3219
      %v3221 = vpop.f32.mrb[0].mxu0
      %3222 = vmatprep.mubr.bf16.mxu0 %v2815
      %3223 = vmatmul.mubr.bf16.gmra.mrb[0].mxu0 %v2814
      %v3224 = vpop.f32.mrb[0].mxu0
      %v3225 = vadd.f32 %v2930, %v3224
      %v3226 = vpop.f32.mrb[0].mxu0
      %v3227 = vpop.f32.mrb[0].mxu0
      %v3228 = vadd.f32 %v2931, %v3227
      %v3229 = vpop.f32.mrb[0].mxu0
      %3230 = vmatprep.mubr.bf16.mxu0 %v2819
      %3231 = vmatmul.mubr.bf16.gmra.mrb[0].mxu0 %v2818
      %v3232 = vpop.f32.mrb[0].mxu0
      %v3233 = vadd.f32 %v2932, %v3232
      %v3234 = vpop.f32.mrb[0].mxu0
      %v3235 = vpop.f32.mrb[0].mxu0
      %v3236 = vadd.f32 %v2933, %v3235
      %v3237 = vpop.f32.mrb[0].mxu0
      %3238 = vmatprep.mubr.bf16.mxu0 %v2823
      %3239 = vmatmul.mubr.bf16.gmra.mrb[0].mxu0 %v2822
      %v3240 = vpop.f32.mrb[0].mxu0
      %v3241 = vadd.f32 %v2934, %v3240
      %v3242 = vpop.f32.mrb[0].mxu0
      %v3243 = vpop.f32.mrb[0].mxu0
      %v3244 = vadd.f32 %v2935, %v3243
      %v3245 = vpop.f32.mrb[0].mxu0
      %3246 = vmatprep.mubr.bf16.mxu0 %v2827
      %3247 = vmatmul.mubr.bf16.gmra.mrb[0].mxu0 %v2826
      %v3248 = vpop.f32.mrb[0].mxu0
      %v3249 = vadd.f32 %v2936, %v3248
      %v3250 = vpop.f32.mrb[0].mxu0
      %v3251 = vpop.f32.mrb[0].mxu0
      %v3252 = vadd.f32 %v2937, %v3251
      %v3253 = vpop.f32.mrb[0].mxu0
      %3254 = vmatprep.mubr.bf16.mxu0 %v2831
      %3255 = vmatmul.mubr.bf16.gmra.mrb[0].mxu0 %v2830
      %v3256 = vpop.f32.mrb[0].mxu0
      %v3257 = vadd.f32 %v2938, %v3256
      %v3258 = vpop.f32.mrb[0].mxu0
      %v3259 = vpop.f32.mrb[0].mxu0
      %v3260 = vadd.f32 %v2939, %v3259
      %v3261 = vpop.f32.mrb[0].mxu0
      %3262 = vmatprep.mubr.bf16.mxu0 %v2835
      %3263 = vmatmul.mubr.bf16.gmra.mrb[0].mxu0 %v2834
      %v3264 = vpop.f32.mrb[0].mxu0
      %v3265 = vadd.f32 %v2940, %v3264
      %v3266 = vpop.f32.mrb[0].mxu0
      %v3267 = vpop.f32.mrb[0].mxu0
      %v3268 = vadd.f32 %v2941, %v3267
      %v3269 = vpop.f32.mrb[0].mxu0
      %3270 = vmatprep.mubr.bf16.mxu0 %v2839
      %3271 = vmatmul.mubr.bf16.gmra.mrb[0].mxu0 %v2838
      %v3272 = vpop.f32.mrb[0].mxu0
      %v3273 = vadd.f32 %v2942, %v3272
      %v3274 = vpop.f32.mrb[0].mxu0
      %v3275 = vpop.f32.mrb[0].mxu0
      %v3276 = vadd.f32 %v2943, %v3275
      %v3277 = vpop.f32.mrb[0].mxu0
      %3278 = vmatprep.mubr.bf16.mxu0 %v2843
      %3279 = vmatmul.mubr.bf16.gmra.mrb[0].mxu0 %v2842
      %v3280 = vpop.f32.mrb[0].mxu0
      %v3281 = vadd.f32 %v2944, %v3280
      %v3282 = vpop.f32.mrb[0].mxu0
      %v3283 = vpop.f32.mrb[0].mxu0
      %v3284 = vadd.f32 %v2945, %v3283
      %v3285 = vpop.f32.mrb[0].mxu0
      %3286 = vmatprep.mubr.bf16.mxu0 %v2847
      %3287 = vmatmul.mubr.bf16.gmra.mrb[0].mxu0 %v2846
      %v3288 = vpop.f32.mrb[0].mxu0
      %v3289 = vadd.f32 %v2946, %v3288
      %v3290 = vpop.f32.mrb[0].mxu0
      %v3291 = vpop.f32.mrb[0].mxu0
      %v3292 = vadd.f32 %v2947, %v3291
      %v3293 = vpop.f32.mrb[0].mxu0
      %3294 = vmatprep.mubr.bf16.mxu0 %v2851
      %3295 = vmatmul.mubr.bf16.gmra.mrb[0].mxu0 %v2850
      %v3296 = vpop.f32.mrb[0].mxu0
      %v3297 = vadd.f32 %v2948, %v3296
      %v3298 = vpop.f32.mrb[0].mxu0
      %v3299 = vpop.f32.mrb[0].mxu0
      %v3300 = vadd.f32 %v2949, %v3299
      %v3301 = vpop.f32.mrb[0].mxu0
      %3302 = vdwg.mxu0
      %3303 = vmatprep.subr.bf16.mxu0 0
      %3304 = vmatpush1.bf16.msra.mxu0 %v3094
      %3305 = vmatprep.subr.bf16.mxu0 0
      %3306 = vmatpush1.bf16.msra.mxu0 %v3095
      %3307 = vmatprep.subr.bf16.mxu0 0
      %3308 = vmatpush1.bf16.msra.mxu0 %v3096
      %3309 = vmatprep.subr.bf16.mxu0 0
      %3310 = vmatpush1.bf16.msra.mxu0 %v3097
      %3311 = vmatprep.subr.bf16.mxu0 0
      %3312 = vmatpush1.bf16.msra.mxu0 %v3098
      %3313 = vmatprep.subr.bf16.mxu0 0
      %3314 = vmatpush1.bf16.msra.mxu0 %v3099
      %3315 = vmatprep.subr.bf16.mxu0 0
      %3316 = vmatpush1.bf16.msra.mxu0 %v3100
      %3317 = vmatprep.subr.bf16.mxu0 0
      %3318 = vmatpush1.bf16.msra.mxu0 %v3101
      %3319 = vmatprep.subr.bf16.mxu0 0
      %3320 = vmatpush1.bf16.msra.mxu0 %v3102
      %3321 = vmatprep.subr.bf16.mxu0 0
      %3322 = vmatpush1.bf16.msra.mxu0 %v3103
      %3323 = vmatprep.subr.bf16.mxu0 0
      %3324 = vmatpush1.bf16.msra.mxu0 %v3104
      %3325 = vmatprep.subr.bf16.mxu0 0
      %3326 = vmatpush1.bf16.msra.mxu0 %v3105
      %3327 = vmatprep.subr.bf16.mxu0 0
      %3328 = vmatpush1.bf16.msra.mxu0 %v3106
      %3329 = vmatprep.subr.bf16.mxu0 0
      %3330 = vmatpush1.bf16.msra.mxu0 %v3107
      %3331 = vmatprep.subr.bf16.mxu0 0
      %3332 = vmatpush1.bf16.msra.mxu0 %v3108
      %3333 = vmatprep.subr.bf16.mxu0 0
      %3334 = vmatpush1.bf16.msra.mxu0 %v3109
      %3335 = vmatprep.mubr.bf16.mxu0 %v2793
      %3336 = vmatmul.mubr.bf16.gmra.mrb[0].mxu0 %v2792
      %v3337 = vpop.f32.mrb[0].mxu0
      %v3338 = vadd.f32 %v3177, %v3337
      %v3339 = vpop.f32.mrb[0].mxu0
      %v3340 = vpop.f32.mrb[0].mxu0
      %v3341 = vadd.f32 %v3180, %v3340
      %v3342 = vpop.f32.mrb[0].mxu0
      %3343 = vmatprep.mubr.bf16.mxu0 %v2797
      %3344 = vmatmul.mubr.bf16.gmra.mrb[0].mxu0 %v2796
      %v3345 = vpop.f32.mrb[0].mxu0
      %v3346 = vadd.f32 %v3185, %v3345
      %v3347 = vpop.f32.mrb[0].mxu0
      %v3348 = vpop.f32.mrb[0].mxu0
      %v3349 = vadd.f32 %v3188, %v3348
      %v3350 = vpop.f32.mrb[0].mxu0
      %3351 = vmatprep.mubr.bf16.mxu0 %v2801
      %3352 = vmatmul.mubr.bf16.gmra.mrb[0].mxu0 %v2800
      %v3353 = vpop.f32.mrb[0].mxu0
      %v3354 = vadd.f32 %v3193, %v3353
      %v3355 = vpop.f32.mrb[0].mxu0
      %v3356 = vpop.f32.mrb[0].mxu0
      %v3357 = vadd.f32 %v3196, %v3356
      %v3358 = vpop.f32.mrb[0].mxu0
      %3359 = vmatprep.mubr.bf16.mxu0 %v2805
      %3360 = vmatmul.mubr.bf16.gmra.mrb[0].mxu0 %v2804
      %v3361 = vpop.f32.mrb[0].mxu0
      %v3362 = vadd.f32 %v3201, %v3361
      %v3363 = vpop.f32.mrb[0].mxu0
      %v3364 = vpop.f32.mrb[0].mxu0
      %v3365 = vadd.f32 %v3204, %v3364
      %v3366 = vpop.f32.mrb[0].mxu0
      %3367 = vmatprep.mubr.bf16.mxu0 %v2809
      %3368 = vmatmul.mubr.bf16.gmra.mrb[0].mxu0 %v2808
      %v3369 = vpop.f32.mrb[0].mxu0
      %v3370 = vadd.f32 %v3209, %v3369
      %v3371 = vpop.f32.mrb[0].mxu0
      %v3372 = vpop.f32.mrb[0].mxu0
      %v3373 = vadd.f32 %v3212, %v3372
      %v3374 = vpop.f32.mrb[0].mxu0
      %3375 = vmatprep.mubr.bf16.mxu0 %v2813
      %3376 = vmatmul.mubr.bf16.gmra.mrb[0].mxu0 %v2812
      %v3377 = vpop.f32.mrb[0].mxu0
      %v3378 = vadd.f32 %v3217, %v3377
      %v3379 = vpop.f32.mrb[0].mxu0
      %v3380 = vpop.f32.mrb[0].mxu0
      %v3381 = vadd.f32 %v3220, %v3380
      %v3382 = vpop.f32.mrb[0].mxu0
      %3383 = vmatprep.mubr.bf16.mxu0 %v2817
      %3384 = vmatmul.mubr.bf16.gmra.mrb[0].mxu0 %v2816
      %v3385 = vpop.f32.mrb[0].mxu0
      %v3386 = vadd.f32 %v3225, %v3385
      %v3387 = vpop.f32.mrb[0].mxu0
      %v3388 = vpop.f32.mrb[0].mxu0
      %v3389 = vadd.f32 %v3228, %v3388
      %v3390 = vpop.f32.mrb[0].mxu0
      %3391 = vmatprep.mubr.bf16.mxu0 %v2821
      %3392 = vmatmul.mubr.bf16.gmra.mrb[0].mxu0 %v2820
      %v3393 = vpop.f32.mrb[0].mxu0
      %v3394 = vadd.f32 %v3233, %v3393
      %v3395 = vpop.f32.mrb[0].mxu0
      %v3396 = vpop.f32.mrb[0].mxu0
      %v3397 = vadd.f32 %v3236, %v3396
      %v3398 = vpop.f32.mrb[0].mxu0
      %3399 = vmatprep.mubr.bf16.mxu0 %v2825
      %3400 = vmatmul.mubr.bf16.gmra.mrb[0].mxu0 %v2824
      %v3401 = vpop.f32.mrb[0].mxu0
      %v3402 = vadd.f32 %v3241, %v3401
      %v3403 = vpop.f32.mrb[0].mxu0
      %v3404 = vpop.f32.mrb[0].mxu0
      %v3405 = vadd.f32 %v3244, %v3404
      %v3406 = vpop.f32.mrb[0].mxu0
      %3407 = vmatprep.mubr.bf16.mxu0 %v2829
      %3408 = vmatmul.mubr.bf16.gmra.mrb[0].mxu0 %v2828
      %v3409 = vpop.f32.mrb[0].mxu0
      %v3410 = vadd.f32 %v3249, %v3409
      %v3411 = vpop.f32.mrb[0].mxu0
      %v3412 = vpop.f32.mrb[0].mxu0
      %v3413 = vadd.f32 %v3252, %v3412
      %v3414 = vpop.f32.mrb[0].mxu0
      %3415 = vmatprep.mubr.bf16.mxu0 %v2833
      %3416 = vmatmul.mubr.bf16.gmra.mrb[0].mxu0 %v2832
      %v3417 = vpop.f32.mrb[0].mxu0
      %v3418 = vadd.f32 %v3257, %v3417
      %v3419 = vpop.f32.mrb[0].mxu0
      %v3420 = vpop.f32.mrb[0].mxu0
      %v3421 = vadd.f32 %v3260, %v3420
      %v3422 = vpop.f32.mrb[0].mxu0
      %3423 = vmatprep.mubr.bf16.mxu0 %v2837
      %3424 = vmatmul.mubr.bf16.gmra.mrb[0].mxu0 %v2836
      %v3425 = vpop.f32.mrb[0].mxu0
      %v3426 = vadd.f32 %v3265, %v3425
      %v3427 = vpop.f32.mrb[0].mxu0
      %v3428 = vpop.f32.mrb[0].mxu0
      %v3429 = vadd.f32 %v3268, %v3428
      %v3430 = vpop.f32.mrb[0].mxu0
      %3431 = vmatprep.mubr.bf16.mxu0 %v2841
      %3432 = vmatmul.mubr.bf16.gmra.mrb[0].mxu0 %v2840
      %v3433 = vpop.f32.mrb[0].mxu0
      %v3434 = vadd.f32 %v3273, %v3433
      %v3435 = vpop.f32.mrb[0].mxu0
      %v3436 = vpop.f32.mrb[0].mxu0
      %v3437 = vadd.f32 %v3276, %v3436
      %v3438 = vpop.f32.mrb[0].mxu0
      %3439 = vmatprep.mubr.bf16.mxu0 %v2845
      %3440 = vmatmul.mubr.bf16.gmra.mrb[0].mxu0 %v2844
      %v3441 = vpop.f32.mrb[0].mxu0
      %v3442 = vadd.f32 %v3281, %v3441
      %v3443 = vpop.f32.mrb[0].mxu0
      %v3444 = vpop.f32.mrb[0].mxu0
      %v3445 = vadd.f32 %v3284, %v3444
      %v3446 = vpop.f32.mrb[0].mxu0
      %3447 = vmatprep.mubr.bf16.mxu0 %v2849
      %3448 = vmatmul.mubr.bf16.gmra.mrb[0].mxu0 %v2848
      %v3449 = vpop.f32.mrb[0].mxu0
      %v3450 = vadd.f32 %v3289, %v3449
      %v3451 = vpop.f32.mrb[0].mxu0
      %v3452 = vpop.f32.mrb[0].mxu0
      %v3453 = vadd.f32 %v3292, %v3452
      %v3454 = vpop.f32.mrb[0].mxu0
      %3455 = vmatprep.mubr.bf16.mxu0 %v2853
      %3456 = vmatmul.mubr.bf16.gmra.mrb[0].mxu0 %v2852
      %v3457 = vpop.f32.mrb[0].mxu0
      %v3458 = vadd.f32 %v3297, %v3457
      %v3459 = vpop.f32.mrb[0].mxu0
      %v3460 = vpop.f32.mrb[0].mxu0
      %v3461 = vadd.f32 %v3300, %v3460
      %v3462 = vpop.f32.mrb[0].mxu0
      %3463 = vdwg.mxu0
      %3464 = vst [vmem:[%s338] sm:$0xff] %v3338
      %3465 = vst [vmem:[%s338 + $0x8] sm:$0xff] %v3341
      %3466 = vst [vmem:[%s338 + $0x10] sm:$0xff] %v3346
      %3467 = vst [vmem:[%s338 + $0x18] sm:$0xff] %v3349
      %3468 = vst [vmem:[%s338 + $0x20] sm:$0xff] %v3354
      %3469 = vst [vmem:[%s338 + $0x28] sm:$0xff] %v3357
      %3470 = vst [vmem:[%s338 + $0x30] sm:$0xff] %v3362
      %3471 = vst [vmem:[%s338 + $0x38] sm:$0xff] %v3365
      %3472 = vst [vmem:[%s338 + $0x40] sm:$0xff] %v3370
      %3473 = vst [vmem:[%s338 + $0x48] sm:$0xff] %v3373
      %3474 = vst [vmem:[%s338 + $0x50] sm:$0xff] %v3378
      %3475 = vst [vmem:[%s338 + $0x58] sm:$0xff] %v3381
      %3476 = vst [vmem:[%s338 + $0x60] sm:$0xff] %v3386
      %3477 = vst [vmem:[%s338 + $0x68] sm:$0xff] %v3389
      %3478 = vst [vmem:[%s338 + $0x70] sm:$0xff] %v3394
      %3479 = vst [vmem:[%s338 + $0x78] sm:$0xff] %v3397
      %3480 = vst [vmem:[%s338 + $0x80] sm:$0xff] %v3402
      %3481 = vst [vmem:[%s338 + $0x88] sm:$0xff] %v3405
      %3482 = vst [vmem:[%s338 + $0x90] sm:$0xff] %v3410
      %3483 = vst [vmem:[%s338 + $0x98] sm:$0xff] %v3413
      %3484 = vst [vmem:[%s338 + $0xa0] sm:$0xff] %v3418
      %3485 = vst [vmem:[%s338 + $0xa8] sm:$0xff] %v3421
      %3486 = vst [vmem:[%s338 + $0xb0] sm:$0xff] %v3426
      %3487 = vst [vmem:[%s338 + $0xb8] sm:$0xff] %v3429
      %3488 = vst [vmem:[%s338 + $0xc0] sm:$0xff] %v3434
      %3489 = vst [vmem:[%s338 + $0xc8] sm:$0xff] %v3437
      %3490 = vst [vmem:[%s338 + $0xd0] sm:$0xff] %v3442
      %3491 = vst [vmem:[%s338 + $0xd8] sm:$0xff] %v3445
      %3492 = vst [vmem:[%s338 + $0xe0] sm:$0xff] %v3450
      %3493 = vst [vmem:[%s338 + $0xe8] sm:$0xff] %v3453
      %3494 = vst [vmem:[%s338 + $0xf0] sm:$0xff] %v3458
      %3495 = vst [vmem:[%s338 + $0xf8] sm:$0xff] %v3461
      %s3496 = smul.u32 32, %s23
      %p3497 = scmp.lt.s32.totalorder %s22, 1
      %s3498 = scalar_select %p3497, %s22, 1
      %p3499 = scmp.lt.s32.totalorder %s3496, 31
      %s3500 = scalar_select %p3499, %s3496, 31
      %s3501 = smul.addr %s3498, 32
      %s3502 = sadd.s32 %s3500, %s3501
      %s3503 = smul.addr %s3502, 8
      %s3504 = scalar_lea.vmem %s7, %s3503
      // Predicated region
      $region49: #{make_patches_forward.1} parent=47 // pred_check
        %p3505 = pneg %p209
      $region50: #{make_patches_forward.1} parent=47 // pred_check_branch
        %3507 = sbr.rel (%p3505) target = $region52
      $region51: #{make_patches_forward.1} parent=47 // pred_region
        %s3508 = smul.u32 32, %s23
      $region52: #{make_patches_forward.1} parent=47 // pred_fallthru
        _
    $region48: #{make_patches_forward.1} parent=5 // pred_fallthru
      _
    %p3509 = scmp.le.s32.totalorder 2, %s13
    // Predicated region
    $region53: #{make_patches_forward.1} parent=5 // pred_check
      %p3510 = pneg %p3509
    $region54: #{make_patches_forward.1} parent=5 // pred_check_branch
      %3512 = sbr.rel (%p3510) target = $region56
    $region55: #{make_patches_forward.1} parent=5 // pred_region
      %s3513 = ssub.s32 %s13, 2
      // Predicated region
      $region57: #{make_patches_forward.1} parent=55 // pred_check
        %p3514 = pneg %p215
      $region58: #{make_patches_forward.1} parent=55 // pred_check_branch
        %3516 = sbr.rel (%p3514) target = $region60
      $region59: #{make_patches_forward.1} parent=55 // pred_region
        %s3517 = smul.u32 32, %s25
        %p3518 = scmp.lt.s32.totalorder %s24, 1
        %s3519 = scalar_select %p3518, %s24, 1
        %p3520 = scmp.lt.s32.totalorder %s3517, 31
        %s3521 = scalar_select %p3520, %s3517, 31
        %s3522 = smul.addr %s3519, 32
        %s3523 = sadd.s32 %s3521, %s3522
        %s3524 = smul.addr %s3523, 8
        %s3525 = scalar_lea.vmem %s7, %s3524
      $region60: #{make_patches_forward.1} parent=55 // pred_fallthru
        _
    $region56: #{make_patches_forward.1} parent=5 // pred_fallthru
      _
  $region6: #{make_patches_forward.1} parent=0 // loop_footer
    %s17 = sadd.s32 1, %s13
  $region7: #{make_patches_forward.1} parent=0 // loop_footer_branch
    %12 = sbr.rel target = $region3
  $region8: #{make_patches_forward.1} parent=0 // loop_exit
    _

</llo_original>
